<compile_context>
chip_gen: v6e
topology: v6e:2x2x1
jax: 0.10.0
libtpu: 0.0.40
codegen_flags: <defaults>
</compile_context>

<pallas_src>
import functools
import math

import jax
import jax.numpy as jnp
import numpy as np
from jax import lax
from jax.experimental import pallas as pl
from jax.experimental.pallas import tpu as pltpu

_LOG2PI = math.log(2.0 * math.pi)


def _bdot(a, b):
    """MXU matmul with bf16 operands / f32 accumulation (coupling net only)."""
    return jnp.dot(a.astype(jnp.bfloat16), b.astype(jnp.bfloat16),
                   preferred_element_type=jnp.float32)


def _fdot(a, b):
    return jnp.dot(a, b, preferred_element_type=jnp.float32)


# ------------------------- fused per-sample kernel --------------------------
# One grid step == one sample; its (2C, V*T/2) activation tile stays resident in
# VMEM/vregs across all K flows, the prior conv and the likelihood reduction.

def _block_kernel(*refs, k_flows, c_half, split):
    if split:
        (x_ref, cond_ref, wmix_ref, bmix_ref,
         w1z_ref, w1c_ref, b1_ref, w2_ref, b2_ref,
         wsh_ref, bsh_ref, wrw_ref, brw_ref, bt_ref,
         pt_ref, wtm_ref, wts_ref, bm_ref, bs_ref,
         z_ref, red_ref) = refs
    else:
        (x_ref, cond_ref, wmix_ref, bmix_ref,
         w1z_ref, w1c_ref, b1_ref, w2_ref, b2_ref,
         wsh_ref, bsh_ref, wrw_ref, brw_ref, bt_ref,
         meanb_ref, logsdb_ref,
         z_ref, red_ref) = refs

    c2, vt = z_ref.shape
    x = x_ref[...]                                # (2C, V*T2) current activation
    cond = cond_ref[...]                          # (Cc, V*T2)
    bt16 = bt_ref[...].astype(jnp.bfloat16)       # A_hat (x) I_T right-mult matrix

    row = lax.broadcasted_iota(jnp.int32, (c2, vt), 0)
    bottom = row >= c_half                        # rows of the coupled (z2) half

    dlog = jnp.zeros((1, 1), jnp.float32)
    for k in range(k_flows):
        # fused ActNorm + LU 1x1 invconv:  x <- W' @ x + b'
        x = _fdot(wmix_ref[k], x) + bmix_ref[k]
        # coupling net (2-layer GCN).  w1z is zero-padded over the z2 columns so only
        # the z1 half of x feeds the net; joint mixing is a right-mult by bt.
        h = _bdot(w1z_ref[k], x) + _bdot(w1c_ref[k], cond) + b1_ref[k]
        h = jnp.maximum(jnp.dot(h.astype(jnp.bfloat16), bt16,
                                preferred_element_type=jnp.float32), 0.0)
        h = _bdot(w2_ref[k], h) + b2_ref[k]
        h = jnp.maximum(jnp.dot(h.astype(jnp.bfloat16), bt16,
                                preferred_element_type=jnp.float32), 0.0)
        # zero-init 1x1 head; weights are zero-padded in glue so shift / raw arrive
        # already aligned with the z2 rows (no sublane slicing / concatenation).
        shift = _bdot(wsh_ref[k], h) + bsh_ref[k]             # == 0 on z1 rows
        u = _bdot(wrw_ref[k], h) + brw_ref[k] + 2.0
        # log(sigmoid(u)) without a division; exp(logsig) == sigmoid(u)
        logsig = jnp.where(bottom,
                           jnp.minimum(u, 0.0) - jnp.log(1.0 + jnp.exp(-jnp.abs(u))),
                           0.0)
        scale = jnp.exp(logsig)                               # == 1 on z1 rows
        x = (x + shift) * scale                               # couple z2, keep z1
        dlog = dlog + jnp.sum(logsig, keepdims=True)

    if split:
        # prior Conv2dZeros(C, 2C) on the z1 half via 9 shift-matrix taps; wtm/wts are
        # zero-padded so mean/logsd are produced on rows aligned with the z2 half.
        mean = jnp.zeros((c2, vt), jnp.float32)
        logsd = jnp.zeros((c2, vt), jnp.float32)
        for tap in range(9):
            xs = _fdot(x, pt_ref[tap])                        # shifted activations
            mean = mean + _fdot(wtm_ref[tap], xs)
            logsd = logsd + _fdot(wts_ref[tap], xs)
        mean = mean + bm_ref[...]
        logsd = logsd + bs_ref[...]
        diff = x - mean
        ll = jnp.where(bottom,
                       -0.5 * (_LOG2PI - logsd + diff * diff) * jnp.exp(-2.0 * logsd),
                       0.0)
    else:
        logsd = logsdb_ref[...]                               # (2C, 1) per-channel
        diff = x - meanb_ref[...]
        ll = -0.5 * (_LOG2PI - logsd + diff * diff) * jnp.exp(-2.0 * logsd)
    logp = jnp.sum(ll, keepdims=True)

    z_ref[...] = x
    # per-sample scalars packed into one lane-dense (8,128) tile:
    #   row 0 = coupling logdet contribution, row 1 = logp
    sub = lax.broadcasted_iota(jnp.int32, (8, 128), 0)
    red_ref[...] = (dlog * (sub == 0).astype(jnp.float32)
                    + logp * (sub == 1).astype(jnp.float32))


# ----------------------------- layout / glue helpers ------------------------

def _full_spec(a):
    shape = tuple(a.shape)
    zero = (0,) * len(shape)
    return pl.BlockSpec(shape, lambda i, _z=zero: _z)


def _to_cm(x):                                  # (N,C,V,T) -> (C, N*V*T)
    n, c, v, t = x.shape
    return jnp.transpose(x, (1, 0, 2, 3)).reshape(c, n * v * t)


def _from_cm(xm, n, v, t):                      # (C, N*V*T) -> (N,C,V,T)
    c = xm.shape[0]
    return jnp.transpose(xm.reshape(c, n, v, t), (1, 0, 2, 3))


def _shift_matrices(v, t):
    """(9, V*T, V*T) right-mult matrices = the 9 taps of a 3x3 'same' conv over (V,T)."""
    vt = v * t
    mats = np.zeros((9, vt, vt), np.float32)
    tap = 0
    for di in range(3):
        for dj in range(3):
            dv, dt = di - 1, dj - 1
            for vv in range(v):
                vs = vv + dv
                if vs < 0 or vs >= v:
                    continue
                for tt in range(t):
                    ts = tt + dt
                    if 0 <= ts < t:
                        mats[tap, vs * t + ts, vv * t + tt] = 1.0
            tap += 1
    return mats


# ------------------------------ Block forward --------------------------------

def block_forward(x, cond, params, split=True):
    n, c, v, t = x.shape
    assert t % 2 == 0
    t2 = t // 2
    c2 = 2 * c
    vt = v * t2
    assert vt % 128 == 0, "V * (T//2) must be a multiple of 128 (lane tiling)"
    c_cond = cond.shape[1]
    assert cond.shape == (n, c_cond, v, t2)
    k_flows = len(params['flows'])
    hid = params['flows'][0]['coupling']['w1'].shape[0]

    # squeeze (N,C,V,T) -> (N,2C,V,T//2), then a single boundary transpose to (C, M).
    sq = x.reshape(n, c, v, t2, 2).transpose(0, 1, 4, 2, 3).reshape(n, c2, v, t2)
    x_cm = _to_cm(sq)                              # (2C, N*V*T2)
    cond_cm = _to_cm(cond)                         # (Cc, N*V*T2)

    # ---- per-flow parameter folding (tiny (C,C)-sized JAX glue) ----
    wmix_l, bmix_l = [], []
    w1z_l, w1c_l, b1_l, w2_l, b2_l = [], [], [], [], []
    wsh_l, bsh_l, wrw_l, brw_l = [], [], [], []
    ld_const = jnp.zeros((), jnp.float32)
    for fp in params['flows']:
        an, ic, cp = fp['actnorm'], fp['invconv'], fp['coupling']
        # ActNorm folded into the LU 1x1 conv:
        #   W @ ((x + b) * exp(logs)) == (W * exp(logs)^T) @ x + (W * exp(logs)^T) @ b
        s = jnp.exp(an['logs'][:, 0])                                        # (2C,)
        w = ic['perm'] @ (jnp.tril(ic['lower'], -1) + jnp.eye(c2, dtype=jnp.float32)) \
            @ (jnp.triu(ic['upper'], 1) + jnp.diag(ic['sign_s'] * jnp.exp(ic['log_s'])))
        wmix = w * s[None, :]
        wmix_l.append(wmix)
        bmix_l.append(wmix @ an['bias'])
        ld_const = ld_const + (jnp.sum(an['logs']) + jnp.sum(ic['log_s'])) * float(vt)
        # coupling-net weights, zero-padded so the kernel only uses full-height tiles
        w1z_l.append(jnp.concatenate(
            [cp['w1'][:, :c], jnp.zeros((hid, c2 - c), jnp.float32)], axis=1))
        w1c_l.append(cp['w1'][:, c:])
        b1_l.append(cp['b1'])
        w2_l.append(cp['w2'])
        b2_l.append(cp['b2'])
        scale3 = jnp.exp(cp['logs_out'] * 3.0)       # Conv2dZeros logscale_factor=3
        wo = cp['w_out'] * scale3
        bo = cp['b_out'] * scale3
        zw = jnp.zeros((c, hid), jnp.float32)
        zb = jnp.zeros((c, 1), jnp.float32)
        wsh_l.append(jnp.concatenate([zw, wo[:c]], axis=0))    # shift rows -> z2 rows
        bsh_l.append(jnp.concatenate([zb, bo[:c]], axis=0))
        wrw_l.append(jnp.concatenate([zw, wo[c:]], axis=0))    # raw rows  -> z2 rows
        brw_l.append(jnp.concatenate([zb, bo[c:]], axis=0))

    st = lambda xs: jnp.stack(xs, axis=0)
    args = [x_cm, cond_cm, st(wmix_l), st(bmix_l), st(w1z_l), st(w1c_l),
            st(b1_l), st(w2_l), st(b2_l), st(wsh_l), st(bsh_l), st(wrw_l), st(brw_l)]

    # A_hat mixing over joints as a right-multiplication on the per-sample pixel axis.
    bt = jnp.kron(params['a_hat'].T, jnp.eye(t2, dtype=jnp.float32))   # (vt, vt)
    args.append(bt)

    if split:
        scale3p = jnp.exp(params['prior']['logs'] * 3.0)               # (2C, 1)
        wtap = params['prior']['w'] * scale3p[:, :, None, None]        # (2C, C, 3, 3)
        bprior = params['prior']['b'].reshape(c2, 1) * scale3p
        wtm_l, wts_l = [], []
        for di in range(3):
            for dj in range(3):
                tap = wtap[:, :, di, dj]                               # (2C, C)
                wtm_l.append(jnp.zeros((c2, c2), jnp.float32).at[c:, :c].set(tap[:c]))
                wts_l.append(jnp.zeros((c2, c2), jnp.float32).at[c:, :c].set(tap[c:]))
        bm = jnp.zeros((c2, 1), jnp.float32).at[c:].set(bprior[:c])
        bs = jnp.zeros((c2, 1), jnp.float32).at[c:].set(bprior[c:])
        pt = jnp.asarray(_shift_matrices(v, t2))                       # (9, vt, vt)
        args += [pt, st(wtm_l), st(wts_l), bm, bs]
    else:
        # prior(zeros) for Conv2dZeros(2C, 4C): just the scaled bias per channel.
        scale3p = jnp.exp(params['prior']['logs'] * 3.0)               # (4C, 1)
        hb = params['prior']['b'].reshape(-1, 1) * scale3p
        args += [hb[:c2], hb[c2:]]

    kernel = functools.partial(_block_kernel, k_flows=k_flows, c_half=c, split=split)
    grid_spec = pltpu.PrefetchScalarGridSpec(
        num_scalar_prefetch=0,
        grid=(n,),                                     # one sample per grid step
        in_specs=[pl.BlockSpec((c2, vt), lambda i: (0, i)),
                  pl.BlockSpec((c_cond, vt), lambda i: (0, i))]
                 + [_full_spec(a) for a in args[2:]],
        out_specs=(pl.BlockSpec((c2, vt), lambda i: (0, i)),
                   pl.BlockSpec((8, 128), lambda i: (i, 0))),
    )
    z_cm, red = pl.pallas_call(
        kernel,
        out_shape=(jax.ShapeDtypeStruct((c2, n * vt), jnp.float32),
                   jax.ShapeDtypeStruct((n * 8, 128), jnp.float32)),
        grid_spec=grid_spec,
        compiler_params=pltpu.CompilerParams(
            dimension_semantics=("parallel",)),        # samples shard across TCs (v7x)
    )(*args)

    red = red.reshape(n, 8, 128)
    logdet = red[:, 0, 0] + ld_const                   # const part precomputed in glue
    logp = red[:, 1, 0]
    z4 = _from_cm(z_cm, n, v, t2)                      # (N, 2C, V, T2)
    if split:
        return logdet, logp, z4[:, :c], z4[:, c:]
    return logdet, logp, z4, z4


# ------------------------------ parameter init -------------------------------

def init_params(key, in_channels, hidden, k_flows, c_cond, v, split=True):
    c2 = in_channels * 2
    keys = jax.random.split(key, k_flows + 1)

    def nrm(k, shape, s=0.1):
        return s * jax.random.normal(k, shape, jnp.float32)

    flows = []
    for i in range(k_flows):
        ks = jax.random.split(keys[i], 11)
        perm = jnp.eye(c2, dtype=jnp.float32)[jax.random.permutation(ks[0], c2)]
        flows.append(dict(
            actnorm=dict(bias=nrm(ks[1], (c2, 1), 0.05), logs=nrm(ks[2], (c2, 1), 0.05)),
            invconv=dict(perm=perm,
                         lower=nrm(ks[3], (c2, c2)),
                         upper=nrm(ks[4], (c2, c2)),
                         log_s=nrm(ks[5], (c2,), 0.05),
                         sign_s=jnp.where(jax.random.bernoulli(ks[6], 0.5, (c2,)), 1.0, -1.0)),
            coupling=dict(
                w1=nrm(ks[7], (hidden, in_channels + c_cond)),
                b1=jnp.zeros((hidden, 1), jnp.float32),
                w2=nrm(ks[8], (hidden, hidden)),
                b2=jnp.zeros((hidden, 1), jnp.float32),
                w_out=nrm(ks[9], (c2, hidden), 0.02),      # synthetic non-zero init
                b_out=jnp.zeros((c2, 1), jnp.float32),
                logs_out=nrm(ks[10], (c2, 1), 0.02)),
        ))

    kp = jax.random.split(keys[k_flows], 2)
    co = c2 if split else 2 * c2
    ci = in_channels if split else c2
    prior = dict(w=nrm(kp[0], (co, ci, 3, 3), 0.02),       # Conv2dZeros (synthetic init)
                 b=jnp.zeros((co,), jnp.float32),
                 logs=nrm(kp[1], (co, 1), 0.02))

    # ring-graph adjacency with self loops, symmetric normalization (graph_scale=1.0)
    a = np.eye(v, dtype=np.float32)
    for i in range(v):
        a[i, (i + 1) % v] = 1.0
        a[i, (i - 1) % v] = 1.0
    d = a.sum(1)
    a_hat = a / np.sqrt(d[:, None] * d[None, :])
    return dict(flows=flows, prior=prior, a_hat=jnp.asarray(a_hat))


# ----------------------------------- main -------------------------------------

if __name__ == "__main__":
    N, C, V, T = 2, 4, 16, 16          # x: (N, C, V, T), T even for the squeeze
    HIDDEN, K, C_COND = 32, 2, 4
    key = jax.random.PRNGKey(0)
    kx, kc, kp = jax.random.split(key, 3)
    x = jax.random.normal(kx, (N, C, V, T), jnp.float32)
    cond = jax.random.normal(kc, (N, C_COND, V, T // 2), jnp.float32)
    params = init_params(kp, C, HIDDEN, K, C_COND, V, split=True)

    fwd = jax.jit(functools.partial(block_forward, split=True))
    logdet, logp, out, z = fwd(x, cond, params)
    jax.block_until_ready((logdet, logp, out, z))

    assert logdet.shape == (N,) and logp.shape == (N,)
    assert out.shape == (N, C, V, T // 2) and z.shape == (N, C, V, T // 2)
    assert all(bool(jnp.all(jnp.isfinite(a))) for a in (logdet, logp, out, z))
    print("KERNEL_OK")
</pallas_src>

<mosaic_0001>
module attributes {stable_mosaic.version = 11 : i64} {
  func.func @_block_kernel(%arg0: i32, %arg1: memref<8x128xf32, #tpu.memory_space<vmem>>, %arg2: memref<4x128xf32, #tpu.memory_space<vmem>>, %arg3: memref<2x8x8xf32, #tpu.memory_space<vmem>>, %arg4: memref<2x8x1xf32, #tpu.memory_space<vmem>>, %arg5: memref<2x32x8xf32, #tpu.memory_space<vmem>>, %arg6: memref<2x32x4xf32, #tpu.memory_space<vmem>>, %arg7: memref<2x32x1xf32, #tpu.memory_space<vmem>>, %arg8: memref<2x32x32xf32, #tpu.memory_space<vmem>>, %arg9: memref<2x32x1xf32, #tpu.memory_space<vmem>>, %arg10: memref<2x8x32xf32, #tpu.memory_space<vmem>>, %arg11: memref<2x8x1xf32, #tpu.memory_space<vmem>>, %arg12: memref<2x8x32xf32, #tpu.memory_space<vmem>>, %arg13: memref<2x8x1xf32, #tpu.memory_space<vmem>>, %arg14: memref<128x128xf32, #tpu.memory_space<vmem>>, %arg15: memref<9x128x128xf32, #tpu.memory_space<vmem>>, %arg16: memref<9x8x8xf32, #tpu.memory_space<vmem>>, %arg17: memref<9x8x8xf32, #tpu.memory_space<vmem>>, %arg18: memref<8x1xf32, #tpu.memory_space<vmem>>, %arg19: memref<8x1xf32, #tpu.memory_space<vmem>>, %arg20: memref<8x128xf32, #tpu.memory_space<vmem>>, %arg21: memref<8x128xf32, #tpu.memory_space<vmem>>) attributes {dimension_semantics = [#tpu.dimension_semantics<parallel>], iteration_bounds = array<i64: 2>, scalar_prefetch = 0 : i64, scratch_operands = 0 : i64, tpu.core_type = #tpu.core_type<tc>, window_params = [{transform_indices = @transform_0, window_bounds = array<i64: 8, 128>}, {transform_indices = @transform_1, window_bounds = array<i64: 4, 128>}, {pipeline_mode = #tpu.pipeline_mode<synchronous>, transform_indices = @transform_2, window_bounds = array<i64: 2, 8, 8>}, {pipeline_mode = #tpu.pipeline_mode<synchronous>, transform_indices = @transform_3, window_bounds = array<i64: 2, 8, 1>}, {pipeline_mode = #tpu.pipeline_mode<synchronous>, transform_indices = @transform_4, window_bounds = array<i64: 2, 32, 8>}, {pipeline_mode = #tpu.pipeline_mode<synchronous>, transform_indices = @transform_5, window_bounds = array<i64: 2, 32, 4>}, {pipeline_mode = #tpu.pipeline_mode<synchronous>, transform_indices = @transform_6, window_bounds = array<i64: 2, 32, 1>}, {pipeline_mode = #tpu.pipeline_mode<synchronous>, transform_indices = @transform_7, window_bounds = array<i64: 2, 32, 32>}, {pipeline_mode = #tpu.pipeline_mode<synchronous>, transform_indices = @transform_8, window_bounds = array<i64: 2, 32, 1>}, {pipeline_mode = #tpu.pipeline_mode<synchronous>, transform_indices = @transform_9, window_bounds = array<i64: 2, 8, 32>}, {pipeline_mode = #tpu.pipeline_mode<synchronous>, transform_indices = @transform_10, window_bounds = array<i64: 2, 8, 1>}, {pipeline_mode = #tpu.pipeline_mode<synchronous>, transform_indices = @transform_11, window_bounds = array<i64: 2, 8, 32>}, {pipeline_mode = #tpu.pipeline_mode<synchronous>, transform_indices = @transform_12, window_bounds = array<i64: 2, 8, 1>}, {pipeline_mode = #tpu.pipeline_mode<synchronous>, transform_indices = @transform_13, window_bounds = array<i64: 128, 128>}, {pipeline_mode = #tpu.pipeline_mode<synchronous>, transform_indices = @transform_14, window_bounds = array<i64: 9, 128, 128>}, {pipeline_mode = #tpu.pipeline_mode<synchronous>, transform_indices = @transform_15, window_bounds = array<i64: 9, 8, 8>}, {pipeline_mode = #tpu.pipeline_mode<synchronous>, transform_indices = @transform_16, window_bounds = array<i64: 9, 8, 8>}, {pipeline_mode = #tpu.pipeline_mode<synchronous>, transform_indices = @transform_17, window_bounds = array<i64: 8, 1>}, {pipeline_mode = #tpu.pipeline_mode<synchronous>, transform_indices = @transform_18, window_bounds = array<i64: 8, 1>}, {transform_indices = @transform_19, window_bounds = array<i64: 8, 128>}, {transform_indices = @transform_20, window_bounds = array<i64: 8, 128>}]} {
    %c0 = arith.constant 0 : index
    %c0_0 = arith.constant 0 : index
    %0 = vector.load %arg1[%c0, %c0_0] : memref<8x128xf32, #tpu.memory_space<vmem>>, vector<8x128xf32>
    %c0_1 = arith.constant 0 : index
    %c0_2 = arith.constant 0 : index
    %1 = vector.load %arg2[%c0_1, %c0_2] : memref<4x128xf32, #tpu.memory_space<vmem>>, vector<4x128xf32>
    %c0_3 = arith.constant 0 : index
    %c0_4 = arith.constant 0 : index
    %2 = vector.load %arg14[%c0_3, %c0_4] : memref<128x128xf32, #tpu.memory_space<vmem>>, vector<128x128xf32>
    %3 = arith.truncf %2 : vector<128x128xf32> to vector<128x128xbf16>
    %4 = tpu.iota {dimensions = array<i32: 0>} : vector<8x128xi32>
    %c4_i32 = arith.constant 4 : i32
    %5 = vector.broadcast %c4_i32 : i32 to vector<8x128xi32>
    %6 = arith.cmpi sge, %4, %5 : vector<8x128xi32>
    %cst = arith.constant 0.000000e+00 : f32
    %7 = vector.broadcast %cst : f32 to vector<1x1xf32>
    %c0_5 = arith.constant 0 : index
    %c0_6 = arith.constant 0 : index
    %c0_7 = arith.constant 0 : index
    %8 = vector.load %arg3[%c0_5, %c0_6, %c0_7] : memref<2x8x8xf32, #tpu.memory_space<vmem>>, vector<1x8x8xf32>
    %9 = vector.shape_cast %8 : vector<1x8x8xf32> to vector<8x8xf32>
    %cst_8 = arith.constant dense<0.000000e+00> : vector<8x128xf32>
    %10 = tpu.matmul %9, %0, %cst_8 {dimension_numbers = #tpu.dot_dimension_numbers<[1], [0], [0], [1], [0, 0, 1, 1], [], []>} : vector<8x8xf32>, vector<8x128xf32>, vector<8x128xf32> -> vector<8x128xf32>
    %c0_9 = arith.constant 0 : index
    %c0_10 = arith.constant 0 : index
    %c0_11 = arith.constant 0 : index
    %11 = vector.load %arg4[%c0_9, %c0_10, %c0_11] : memref<2x8x1xf32, #tpu.memory_space<vmem>>, vector<1x8x1xf32>
    %12 = vector.shape_cast %11 : vector<1x8x1xf32> to vector<8x1xf32>
    %13 = vector.broadcast %12 : vector<8x1xf32> to vector<8x128xf32>
    %14 = arith.addf %10, %13 : vector<8x128xf32>
    %c0_12 = arith.constant 0 : index
    %c0_13 = arith.constant 0 : index
    %c0_14 = arith.constant 0 : index
    %15 = vector.load %arg5[%c0_12, %c0_13, %c0_14] : memref<2x32x8xf32, #tpu.memory_space<vmem>>, vector<1x32x8xf32>
    %16 = vector.shape_cast %15 : vector<1x32x8xf32> to vector<32x8xf32>
    %17 = arith.truncf %16 : vector<32x8xf32> to vector<32x8xbf16>
    %18 = arith.truncf %14 : vector<8x128xf32> to vector<8x128xbf16>
    %cst_15 = arith.constant dense<0.000000e+00> : vector<32x128xf32>
    %19 = tpu.matmul %17, %18, %cst_15 {dimension_numbers = #tpu.dot_dimension_numbers<[1], [0], [0], [1], [0, 0, 1, 1], [], []>} : vector<32x8xbf16>, vector<8x128xbf16>, vector<32x128xf32> -> vector<32x128xf32>
    %c0_16 = arith.constant 0 : index
    %c0_17 = arith.constant 0 : index
    %c0_18 = arith.constant 0 : index
    %20 = vector.load %arg6[%c0_16, %c0_17, %c0_18] : memref<2x32x4xf32, #tpu.memory_space<vmem>>, vector<1x32x4xf32>
    %21 = vector.shape_cast %20 : vector<1x32x4xf32> to vector<32x4xf32>
    %22 = arith.truncf %21 : vector<32x4xf32> to vector<32x4xbf16>
    %23 = arith.truncf %1 : vector<4x128xf32> to vector<4x128xbf16>
    %cst_19 = arith.constant dense<0.000000e+00> : vector<32x128xf32>
    %24 = tpu.matmul %22, %23, %cst_19 {dimension_numbers = #tpu.dot_dimension_numbers<[1], [0], [0], [1], [0, 0, 1, 1], [], []>} : vector<32x4xbf16>, vector<4x128xbf16>, vector<32x128xf32> -> vector<32x128xf32>
    %25 = arith.addf %19, %24 : vector<32x128xf32>
    %c0_20 = arith.constant 0 : index
    %c0_21 = arith.constant 0 : index
    %c0_22 = arith.constant 0 : index
    %26 = vector.load %arg7[%c0_20, %c0_21, %c0_22] : memref<2x32x1xf32, #tpu.memory_space<vmem>>, vector<1x32x1xf32>
    %27 = vector.shape_cast %26 : vector<1x32x1xf32> to vector<32x1xf32>
    %28 = vector.broadcast %27 : vector<32x1xf32> to vector<32x128xf32>
    %29 = arith.addf %25, %28 : vector<32x128xf32>
    %30 = arith.truncf %29 : vector<32x128xf32> to vector<32x128xbf16>
    %cst_23 = arith.constant dense<0.000000e+00> : vector<32x128xf32>
    %31 = tpu.matmul %30, %3, %cst_23 {dimension_numbers = #tpu.dot_dimension_numbers<[1], [0], [0], [1], [0, 0, 1, 1], [], []>} : vector<32x128xbf16>, vector<128x128xbf16>, vector<32x128xf32> -> vector<32x128xf32>
    %cst_24 = arith.constant 0.000000e+00 : f32
    %32 = vector.broadcast %cst_24 : f32 to vector<32x128xf32>
    %33 = arith.maximumf %31, %32 : vector<32x128xf32>
    %c0_25 = arith.constant 0 : index
    %c0_26 = arith.constant 0 : index
    %c0_27 = arith.constant 0 : index
    %34 = vector.load %arg8[%c0_25, %c0_26, %c0_27] : memref<2x32x32xf32, #tpu.memory_space<vmem>>, vector<1x32x32xf32>
    %35 = vector.shape_cast %34 : vector<1x32x32xf32> to vector<32x32xf32>
    %36 = arith.truncf %35 : vector<32x32xf32> to vector<32x32xbf16>
    %37 = arith.truncf %33 : vector<32x128xf32> to vector<32x128xbf16>
    %cst_28 = arith.constant dense<0.000000e+00> : vector<32x128xf32>
    %38 = tpu.matmul %36, %37, %cst_28 {dimension_numbers = #tpu.dot_dimension_numbers<[1], [0], [0], [1], [0, 0, 1, 1], [], []>} : vector<32x32xbf16>, vector<32x128xbf16>, vector<32x128xf32> -> vector<32x128xf32>
    %c0_29 = arith.constant 0 : index
    %c0_30 = arith.constant 0 : index
    %c0_31 = arith.constant 0 : index
    %39 = vector.load %arg9[%c0_29, %c0_30, %c0_31] : memref<2x32x1xf32, #tpu.memory_space<vmem>>, vector<1x32x1xf32>
    %40 = vector.shape_cast %39 : vector<1x32x1xf32> to vector<32x1xf32>
    %41 = vector.broadcast %40 : vector<32x1xf32> to vector<32x128xf32>
    %42 = arith.addf %38, %41 : vector<32x128xf32>
    %43 = arith.truncf %42 : vector<32x128xf32> to vector<32x128xbf16>
    %cst_32 = arith.constant dense<0.000000e+00> : vector<32x128xf32>
    %44 = tpu.matmul %43, %3, %cst_32 {dimension_numbers = #tpu.dot_dimension_numbers<[1], [0], [0], [1], [0, 0, 1, 1], [], []>} : vector<32x128xbf16>, vector<128x128xbf16>, vector<32x128xf32> -> vector<32x128xf32>
    %cst_33 = arith.constant 0.000000e+00 : f32
    %45 = vector.broadcast %cst_33 : f32 to vector<32x128xf32>
    %46 = arith.maximumf %44, %45 : vector<32x128xf32>
    %c0_34 = arith.constant 0 : index
    %c0_35 = arith.constant 0 : index
    %c0_36 = arith.constant 0 : index
    %47 = vector.load %arg10[%c0_34, %c0_35, %c0_36] : memref<2x8x32xf32, #tpu.memory_space<vmem>>, vector<1x8x32xf32>
    %48 = vector.shape_cast %47 : vector<1x8x32xf32> to vector<8x32xf32>
    %49 = arith.truncf %48 : vector<8x32xf32> to vector<8x32xbf16>
    %50 = arith.truncf %46 : vector<32x128xf32> to vector<32x128xbf16>
    %cst_37 = arith.constant dense<0.000000e+00> : vector<8x128xf32>
    %51 = tpu.matmul %49, %50, %cst_37 {dimension_numbers = #tpu.dot_dimension_numbers<[1], [0], [0], [1], [0, 0, 1, 1], [], []>} : vector<8x32xbf16>, vector<32x128xbf16>, vector<8x128xf32> -> vector<8x128xf32>
    %c0_38 = arith.constant 0 : index
    %c0_39 = arith.constant 0 : index
    %c0_40 = arith.constant 0 : index
    %52 = vector.load %arg11[%c0_38, %c0_39, %c0_40] : memref<2x8x1xf32, #tpu.memory_space<vmem>>, vector<1x8x1xf32>
    %53 = vector.shape_cast %52 : vector<1x8x1xf32> to vector<8x1xf32>
    %54 = vector.broadcast %53 : vector<8x1xf32> to vector<8x128xf32>
    %55 = arith.addf %51, %54 : vector<8x128xf32>
    %c0_41 = arith.constant 0 : index
    %c0_42 = arith.constant 0 : index
    %c0_43 = arith.constant 0 : index
    %56 = vector.load %arg12[%c0_41, %c0_42, %c0_43] : memref<2x8x32xf32, #tpu.memory_space<vmem>>, vector<1x8x32xf32>
    %57 = vector.shape_cast %56 : vector<1x8x32xf32> to vector<8x32xf32>
    %58 = arith.truncf %57 : vector<8x32xf32> to vector<8x32xbf16>
    %59 = arith.truncf %46 : vector<32x128xf32> to vector<32x128xbf16>
    %cst_44 = arith.constant dense<0.000000e+00> : vector<8x128xf32>
    %60 = tpu.matmul %58, %59, %cst_44 {dimension_numbers = #tpu.dot_dimension_numbers<[1], [0], [0], [1], [0, 0, 1, 1], [], []>} : vector<8x32xbf16>, vector<32x128xbf16>, vector<8x128xf32> -> vector<8x128xf32>
    %c0_45 = arith.constant 0 : index
    %c0_46 = arith.constant 0 : index
    %c0_47 = arith.constant 0 : index
    %61 = vector.load %arg13[%c0_45, %c0_46, %c0_47] : memref<2x8x1xf32, #tpu.memory_space<vmem>>, vector<1x8x1xf32>
    %62 = vector.shape_cast %61 : vector<1x8x1xf32> to vector<8x1xf32>
    %63 = vector.broadcast %62 : vector<8x1xf32> to vector<8x128xf32>
    %64 = arith.addf %60, %63 : vector<8x128xf32>
    %cst_48 = arith.constant 2.000000e+00 : f32
    %65 = vector.broadcast %cst_48 : f32 to vector<8x128xf32>
    %66 = arith.addf %64, %65 : vector<8x128xf32>
    %cst_49 = arith.constant 0.000000e+00 : f32
    %67 = vector.broadcast %cst_49 : f32 to vector<8x128xf32>
    %68 = arith.minimumf %66, %67 : vector<8x128xf32>
    %69 = math.absf %66 : vector<8x128xf32>
    %cst_50 = arith.constant 0.000000e+00 : f32
    %70 = vector.broadcast %cst_50 : f32 to vector<8x128xf32>
    %71 = arith.subf %70, %69 : vector<8x128xf32>
    %72 = math.exp %71 : vector<8x128xf32>
    %cst_51 = arith.constant 1.000000e+00 : f32
    %73 = vector.broadcast %cst_51 : f32 to vector<8x128xf32>
    %74 = arith.addf %73, %72 : vector<8x128xf32>
    %75 = math.log %74 : vector<8x128xf32>
    %76 = arith.subf %68, %75 : vector<8x128xf32>
    %cst_52 = arith.constant 0.000000e+00 : f32
    %77 = vector.broadcast %cst_52 : f32 to vector<8x128xf32>
    %78 = arith.select %6, %76, %77 : vector<8x128xi1>, vector<8x128xf32>
    %79 = math.exp %78 : vector<8x128xf32>
    %80 = arith.addf %14, %55 : vector<8x128xf32>
    %81 = arith.mulf %80, %79 : vector<8x128xf32>
    %82 = vector.shape_cast %78 : vector<8x128xf32> to vector<1x8x128xf32>
    %cst_53 = arith.constant dense<0.000000e+00> : vector<1xf32>
    %83 = vector.multi_reduction <add>, %82, %cst_53 [1, 2] : vector<1x8x128xf32> to vector<1xf32>
    %84 = vector.shape_cast %83 : vector<1xf32> to vector<1x1x1xf32>
    %85 = vector.extract %84[0, 0, 0] : f32 from vector<1x1x1xf32>
    %86 = vector.broadcast %85 : f32 to vector<1x1xf32>
    %87 = arith.addf %7, %86 : vector<1x1xf32>
    %c1 = arith.constant 1 : index
    %c0_54 = arith.constant 0 : index
    %c0_55 = arith.constant 0 : index
    %88 = vector.load %arg3[%c1, %c0_54, %c0_55] : memref<2x8x8xf32, #tpu.memory_space<vmem>>, vector<1x8x8xf32>
    %89 = vector.shape_cast %88 : vector<1x8x8xf32> to vector<8x8xf32>
    %cst_56 = arith.constant dense<0.000000e+00> : vector<8x128xf32>
    %90 = tpu.matmul %89, %81, %cst_56 {dimension_numbers = #tpu.dot_dimension_numbers<[1], [0], [0], [1], [0, 0, 1, 1], [], []>} : vector<8x8xf32>, vector<8x128xf32>, vector<8x128xf32> -> vector<8x128xf32>
    %c1_57 = arith.constant 1 : index
    %c0_58 = arith.constant 0 : index
    %c0_59 = arith.constant 0 : index
    %91 = vector.load %arg4[%c1_57, %c0_58, %c0_59] : memref<2x8x1xf32, #tpu.memory_space<vmem>>, vector<1x8x1xf32>
    %92 = vector.shape_cast %91 : vector<1x8x1xf32> to vector<8x1xf32>
    %93 = vector.broadcast %92 : vector<8x1xf32> to vector<8x128xf32>
    %94 = arith.addf %90, %93 : vector<8x128xf32>
    %c1_60 = arith.constant 1 : index
    %c0_61 = arith.constant 0 : index
    %c0_62 = arith.constant 0 : index
    %95 = vector.load %arg5[%c1_60, %c0_61, %c0_62] : memref<2x32x8xf32, #tpu.memory_space<vmem>>, vector<1x32x8xf32>
    %96 = vector.shape_cast %95 : vector<1x32x8xf32> to vector<32x8xf32>
    %97 = arith.truncf %96 : vector<32x8xf32> to vector<32x8xbf16>
    %98 = arith.truncf %94 : vector<8x128xf32> to vector<8x128xbf16>
    %cst_63 = arith.constant dense<0.000000e+00> : vector<32x128xf32>
    %99 = tpu.matmul %97, %98, %cst_63 {dimension_numbers = #tpu.dot_dimension_numbers<[1], [0], [0], [1], [0, 0, 1, 1], [], []>} : vector<32x8xbf16>, vector<8x128xbf16>, vector<32x128xf32> -> vector<32x128xf32>
    %c1_64 = arith.constant 1 : index
    %c0_65 = arith.constant 0 : index
    %c0_66 = arith.constant 0 : index
    %100 = vector.load %arg6[%c1_64, %c0_65, %c0_66] : memref<2x32x4xf32, #tpu.memory_space<vmem>>, vector<1x32x4xf32>
    %101 = vector.shape_cast %100 : vector<1x32x4xf32> to vector<32x4xf32>
    %102 = arith.truncf %101 : vector<32x4xf32> to vector<32x4xbf16>
    %103 = arith.truncf %1 : vector<4x128xf32> to vector<4x128xbf16>
    %cst_67 = arith.constant dense<0.000000e+00> : vector<32x128xf32>
    %104 = tpu.matmul %102, %103, %cst_67 {dimension_numbers = #tpu.dot_dimension_numbers<[1], [0], [0], [1], [0, 0, 1, 1], [], []>} : vector<32x4xbf16>, vector<4x128xbf16>, vector<32x128xf32> -> vector<32x128xf32>
    %105 = arith.addf %99, %104 : vector<32x128xf32>
    %c1_68 = arith.constant 1 : index
    %c0_69 = arith.constant 0 : index
    %c0_70 = arith.constant 0 : index
    %106 = vector.load %arg7[%c1_68, %c0_69, %c0_70] : memref<2x32x1xf32, #tpu.memory_space<vmem>>, vector<1x32x1xf32>
    %107 = vector.shape_cast %106 : vector<1x32x1xf32> to vector<32x1xf32>
    %108 = vector.broadcast %107 : vector<32x1xf32> to vector<32x128xf32>
    %109 = arith.addf %105, %108 : vector<32x128xf32>
    %110 = arith.truncf %109 : vector<32x128xf32> to vector<32x128xbf16>
    %cst_71 = arith.constant dense<0.000000e+00> : vector<32x128xf32>
    %111 = tpu.matmul %110, %3, %cst_71 {dimension_numbers = #tpu.dot_dimension_numbers<[1], [0], [0], [1], [0, 0, 1, 1], [], []>} : vector<32x128xbf16>, vector<128x128xbf16>, vector<32x128xf32> -> vector<32x128xf32>
    %cst_72 = arith.constant 0.000000e+00 : f32
    %112 = vector.broadcast %cst_72 : f32 to vector<32x128xf32>
    %113 = arith.maximumf %111, %112 : vector<32x128xf32>
    %c1_73 = arith.constant 1 : index
    %c0_74 = arith.constant 0 : index
    %c0_75 = arith.constant 0 : index
    %114 = vector.load %arg8[%c1_73, %c0_74, %c0_75] : memref<2x32x32xf32, #tpu.memory_space<vmem>>, vector<1x32x32xf32>
    %115 = vector.shape_cast %114 : vector<1x32x32xf32> to vector<32x32xf32>
    %116 = arith.truncf %115 : vector<32x32xf32> to vector<32x32xbf16>
    %117 = arith.truncf %113 : vector<32x128xf32> to vector<32x128xbf16>
    %cst_76 = arith.constant dense<0.000000e+00> : vector<32x128xf32>
    %118 = tpu.matmul %116, %117, %cst_76 {dimension_numbers = #tpu.dot_dimension_numbers<[1], [0], [0], [1], [0, 0, 1, 1], [], []>} : vector<32x32xbf16>, vector<32x128xbf16>, vector<32x128xf32> -> vector<32x128xf32>
    %c1_77 = arith.constant 1 : index
    %c0_78 = arith.constant 0 : index
    %c0_79 = arith.constant 0 : index
    %119 = vector.load %arg9[%c1_77, %c0_78, %c0_79] : memref<2x32x1xf32, #tpu.memory_space<vmem>>, vector<1x32x1xf32>
    %120 = vector.shape_cast %119 : vector<1x32x1xf32> to vector<32x1xf32>
    %121 = vector.broadcast %120 : vector<32x1xf32> to vector<32x128xf32>
    %122 = arith.addf %118, %121 : vector<32x128xf32>
    %123 = arith.truncf %122 : vector<32x128xf32> to vector<32x128xbf16>
    %cst_80 = arith.constant dense<0.000000e+00> : vector<32x128xf32>
    %124 = tpu.matmul %123, %3, %cst_80 {dimension_numbers = #tpu.dot_dimension_numbers<[1], [0], [0], [1], [0, 0, 1, 1], [], []>} : vector<32x128xbf16>, vector<128x128xbf16>, vector<32x128xf32> -> vector<32x128xf32>
    %cst_81 = arith.constant 0.000000e+00 : f32
    %125 = vector.broadcast %cst_81 : f32 to vector<32x128xf32>
    %126 = arith.maximumf %124, %125 : vector<32x128xf32>
    %c1_82 = arith.constant 1 : index
    %c0_83 = arith.constant 0 : index
    %c0_84 = arith.constant 0 : index
    %127 = vector.load %arg10[%c1_82, %c0_83, %c0_84] : memref<2x8x32xf32, #tpu.memory_space<vmem>>, vector<1x8x32xf32>
    %128 = vector.shape_cast %127 : vector<1x8x32xf32> to vector<8x32xf32>
    %129 = arith.truncf %128 : vector<8x32xf32> to vector<8x32xbf16>
    %130 = arith.truncf %126 : vector<32x128xf32> to vector<32x128xbf16>
    %cst_85 = arith.constant dense<0.000000e+00> : vector<8x128xf32>
    %131 = tpu.matmul %129, %130, %cst_85 {dimension_numbers = #tpu.dot_dimension_numbers<[1], [0], [0], [1], [0, 0, 1, 1], [], []>} : vector<8x32xbf16>, vector<32x128xbf16>, vector<8x128xf32> -> vector<8x128xf32>
    %c1_86 = arith.constant 1 : index
    %c0_87 = arith.constant 0 : index
    %c0_88 = arith.constant 0 : index
    %132 = vector.load %arg11[%c1_86, %c0_87, %c0_88] : memref<2x8x1xf32, #tpu.memory_space<vmem>>, vector<1x8x1xf32>
    %133 = vector.shape_cast %132 : vector<1x8x1xf32> to vector<8x1xf32>
    %134 = vector.broadcast %133 : vector<8x1xf32> to vector<8x128xf32>
    %135 = arith.addf %131, %134 : vector<8x128xf32>
    %c1_89 = arith.constant 1 : index
    %c0_90 = arith.constant 0 : index
    %c0_91 = arith.constant 0 : index
    %136 = vector.load %arg12[%c1_89, %c0_90, %c0_91] : memref<2x8x32xf32, #tpu.memory_space<vmem>>, vector<1x8x32xf32>
    %137 = vector.shape_cast %136 : vector<1x8x32xf32> to vector<8x32xf32>
    %138 = arith.truncf %137 : vector<8x32xf32> to vector<8x32xbf16>
    %139 = arith.truncf %126 : vector<32x128xf32> to vector<32x128xbf16>
    %cst_92 = arith.constant dense<0.000000e+00> : vector<8x128xf32>
    %140 = tpu.matmul %138, %139, %cst_92 {dimension_numbers = #tpu.dot_dimension_numbers<[1], [0], [0], [1], [0, 0, 1, 1], [], []>} : vector<8x32xbf16>, vector<32x128xbf16>, vector<8x128xf32> -> vector<8x128xf32>
    %c1_93 = arith.constant 1 : index
    %c0_94 = arith.constant 0 : index
    %c0_95 = arith.constant 0 : index
    %141 = vector.load %arg13[%c1_93, %c0_94, %c0_95] : memref<2x8x1xf32, #tpu.memory_space<vmem>>, vector<1x8x1xf32>
    %142 = vector.shape_cast %141 : vector<1x8x1xf32> to vector<8x1xf32>
    %143 = vector.broadcast %142 : vector<8x1xf32> to vector<8x128xf32>
    %144 = arith.addf %140, %143 : vector<8x128xf32>
    %cst_96 = arith.constant 2.000000e+00 : f32
    %145 = vector.broadcast %cst_96 : f32 to vector<8x128xf32>
    %146 = arith.addf %144, %145 : vector<8x128xf32>
    %cst_97 = arith.constant 0.000000e+00 : f32
    %147 = vector.broadcast %cst_97 : f32 to vector<8x128xf32>
    %148 = arith.minimumf %146, %147 : vector<8x128xf32>
    %149 = math.absf %146 : vector<8x128xf32>
    %cst_98 = arith.constant 0.000000e+00 : f32
    %150 = vector.broadcast %cst_98 : f32 to vector<8x128xf32>
    %151 = arith.subf %150, %149 : vector<8x128xf32>
    %152 = math.exp %151 : vector<8x128xf32>
    %cst_99 = arith.constant 1.000000e+00 : f32
    %153 = vector.broadcast %cst_99 : f32 to vector<8x128xf32>
    %154 = arith.addf %153, %152 : vector<8x128xf32>
    %155 = math.log %154 : vector<8x128xf32>
    %156 = arith.subf %148, %155 : vector<8x128xf32>
    %cst_100 = arith.constant 0.000000e+00 : f32
    %157 = vector.broadcast %cst_100 : f32 to vector<8x128xf32>
    %158 = arith.select %6, %156, %157 : vector<8x128xi1>, vector<8x128xf32>
    %159 = math.exp %158 : vector<8x128xf32>
    %160 = arith.addf %94, %135 : vector<8x128xf32>
    %161 = arith.mulf %160, %159 : vector<8x128xf32>
    %162 = vector.shape_cast %158 : vector<8x128xf32> to vector<1x8x128xf32>
    %cst_101 = arith.constant dense<0.000000e+00> : vector<1xf32>
    %163 = vector.multi_reduction <add>, %162, %cst_101 [1, 2] : vector<1x8x128xf32> to vector<1xf32>
    %164 = vector.shape_cast %163 : vector<1xf32> to vector<1x1x1xf32>
    %165 = vector.extract %164[0, 0, 0] : f32 from vector<1x1x1xf32>
    %166 = vector.broadcast %165 : f32 to vector<1x1xf32>
    %167 = arith.addf %87, %166 : vector<1x1xf32>
    %cst_102 = arith.constant 0.000000e+00 : f32
    %168 = vector.broadcast %cst_102 : f32 to vector<8x128xf32>
    %cst_103 = arith.constant 0.000000e+00 : f32
    %169 = vector.broadcast %cst_103 : f32 to vector<8x128xf32>
    %c0_104 = arith.constant 0 : index
    %c0_105 = arith.constant 0 : index
    %c0_106 = arith.constant 0 : index
    %170 = vector.load %arg15[%c0_104, %c0_105, %c0_106] : memref<9x128x128xf32, #tpu.memory_space<vmem>>, vector<1x128x128xf32>
    %171 = vector.shape_cast %170 : vector<1x128x128xf32> to vector<128x128xf32>
    %cst_107 = arith.constant dense<0.000000e+00> : vector<8x128xf32>
    %172 = tpu.matmul %161, %171, %cst_107 {dimension_numbers = #tpu.dot_dimension_numbers<[1], [0], [0], [1], [0, 0, 1, 1], [], []>} : vector<8x128xf32>, vector<128x128xf32>, vector<8x128xf32> -> vector<8x128xf32>
    %c0_108 = arith.constant 0 : index
    %c0_109 = arith.constant 0 : index
    %c0_110 = arith.constant 0 : index
    %173 = vector.load %arg16[%c0_108, %c0_109, %c0_110] : memref<9x8x8xf32, #tpu.memory_space<vmem>>, vector<1x8x8xf32>
    %174 = vector.shape_cast %173 : vector<1x8x8xf32> to vector<8x8xf32>
    %cst_111 = arith.constant dense<0.000000e+00> : vector<8x128xf32>
    %175 = tpu.matmul %174, %172, %cst_111 {dimension_numbers = #tpu.dot_dimension_numbers<[1], [0], [0], [1], [0, 0, 1, 1], [], []>} : vector<8x8xf32>, vector<8x128xf32>, vector<8x128xf32> -> vector<8x128xf32>
    %176 = arith.addf %168, %175 : vector<8x128xf32>
    %c0_112 = arith.constant 0 : index
    %c0_113 = arith.constant 0 : index
    %c0_114 = arith.constant 0 : index
    %177 = vector.load %arg17[%c0_112, %c0_113, %c0_114] : memref<9x8x8xf32, #tpu.memory_space<vmem>>, vector<1x8x8xf32>
    %178 = vector.shape_cast %177 : vector<1x8x8xf32> to vector<8x8xf32>
    %cst_115 = arith.constant dense<0.000000e+00> : vector<8x128xf32>
    %179 = tpu.matmul %178, %172, %cst_115 {dimension_numbers = #tpu.dot_dimension_numbers<[1], [0], [0], [1], [0, 0, 1, 1], [], []>} : vector<8x8xf32>, vector<8x128xf32>, vector<8x128xf32> -> vector<8x128xf32>
    %180 = arith.addf %169, %179 : vector<8x128xf32>
    %c1_116 = arith.constant 1 : index
    %c0_117 = arith.constant 0 : index
    %c0_118 = arith.constant 0 : index
    %181 = vector.load %arg15[%c1_116, %c0_117, %c0_118] : memref<9x128x128xf32, #tpu.memory_space<vmem>>, vector<1x128x128xf32>
    %182 = vector.shape_cast %181 : vector<1x128x128xf32> to vector<128x128xf32>
    %cst_119 = arith.constant dense<0.000000e+00> : vector<8x128xf32>
    %183 = tpu.matmul %161, %182, %cst_119 {dimension_numbers = #tpu.dot_dimension_numbers<[1], [0], [0], [1], [0, 0, 1, 1], [], []>} : vector<8x128xf32>, vector<128x128xf32>, vector<8x128xf32> -> vector<8x128xf32>
    %c1_120 = arith.constant 1 : index
    %c0_121 = arith.constant 0 : index
    %c0_122 = arith.constant 0 : index
    %184 = vector.load %arg16[%c1_120, %c0_121, %c0_122] : memref<9x8x8xf32, #tpu.memory_space<vmem>>, vector<1x8x8xf32>
    %185 = vector.shape_cast %184 : vector<1x8x8xf32> to vector<8x8xf32>
    %cst_123 = arith.constant dense<0.000000e+00> : vector<8x128xf32>
    %186 = tpu.matmul %185, %183, %cst_123 {dimension_numbers = #tpu.dot_dimension_numbers<[1], [0], [0], [1], [0, 0, 1, 1], [], []>} : vector<8x8xf32>, vector<8x128xf32>, vector<8x128xf32> -> vector<8x128xf32>
    %187 = arith.addf %176, %186 : vector<8x128xf32>
    %c1_124 = arith.constant 1 : index
    %c0_125 = arith.constant 0 : index
    %c0_126 = arith.constant 0 : index
    %188 = vector.load %arg17[%c1_124, %c0_125, %c0_126] : memref<9x8x8xf32, #tpu.memory_space<vmem>>, vector<1x8x8xf32>
    %189 = vector.shape_cast %188 : vector<1x8x8xf32> to vector<8x8xf32>
    %cst_127 = arith.constant dense<0.000000e+00> : vector<8x128xf32>
    %190 = tpu.matmul %189, %183, %cst_127 {dimension_numbers = #tpu.dot_dimension_numbers<[1], [0], [0], [1], [0, 0, 1, 1], [], []>} : vector<8x8xf32>, vector<8x128xf32>, vector<8x128xf32> -> vector<8x128xf32>
    %191 = arith.addf %180, %190 : vector<8x128xf32>
    %c2 = arith.constant 2 : index
    %c0_128 = arith.constant 0 : index
    %c0_129 = arith.constant 0 : index
    %192 = vector.load %arg15[%c2, %c0_128, %c0_129] : memref<9x128x128xf32, #tpu.memory_space<vmem>>, vector<1x128x128xf32>
    %193 = vector.shape_cast %192 : vector<1x128x128xf32> to vector<128x128xf32>
    %cst_130 = arith.constant dense<0.000000e+00> : vector<8x128xf32>
    %194 = tpu.matmul %161, %193, %cst_130 {dimension_numbers = #tpu.dot_dimension_numbers<[1], [0], [0], [1], [0, 0, 1, 1], [], []>} : vector<8x128xf32>, vector<128x128xf32>, vector<8x128xf32> -> vector<8x128xf32>
    %c2_131 = arith.constant 2 : index
    %c0_132 = arith.constant 0 : index
    %c0_133 = arith.constant 0 : index
    %195 = vector.load %arg16[%c2_131, %c0_132, %c0_133] : memref<9x8x8xf32, #tpu.memory_space<vmem>>, vector<1x8x8xf32>
    %196 = vector.shape_cast %195 : vector<1x8x8xf32> to vector<8x8xf32>
    %cst_134 = arith.constant dense<0.000000e+00> : vector<8x128xf32>
    %197 = tpu.matmul %196, %194, %cst_134 {dimension_numbers = #tpu.dot_dimension_numbers<[1], [0], [0], [1], [0, 0, 1, 1], [], []>} : vector<8x8xf32>, vector<8x128xf32>, vector<8x128xf32> -> vector<8x128xf32>
    %198 = arith.addf %187, %197 : vector<8x128xf32>
    %c2_135 = arith.constant 2 : index
    %c0_136 = arith.constant 0 : index
    %c0_137 = arith.constant 0 : index
    %199 = vector.load %arg17[%c2_135, %c0_136, %c0_137] : memref<9x8x8xf32, #tpu.memory_space<vmem>>, vector<1x8x8xf32>
    %200 = vector.shape_cast %199 : vector<1x8x8xf32> to vector<8x8xf32>
    %cst_138 = arith.constant dense<0.000000e+00> : vector<8x128xf32>
    %201 = tpu.matmul %200, %194, %cst_138 {dimension_numbers = #tpu.dot_dimension_numbers<[1], [0], [0], [1], [0, 0, 1, 1], [], []>} : vector<8x8xf32>, vector<8x128xf32>, vector<8x128xf32> -> vector<8x128xf32>
    %202 = arith.addf %191, %201 : vector<8x128xf32>
    %c3 = arith.constant 3 : index
    %c0_139 = arith.constant 0 : index
    %c0_140 = arith.constant 0 : index
    %203 = vector.load %arg15[%c3, %c0_139, %c0_140] : memref<9x128x128xf32, #tpu.memory_space<vmem>>, vector<1x128x128xf32>
    %204 = vector.shape_cast %203 : vector<1x128x128xf32> to vector<128x128xf32>
    %cst_141 = arith.constant dense<0.000000e+00> : vector<8x128xf32>
    %205 = tpu.matmul %161, %204, %cst_141 {dimension_numbers = #tpu.dot_dimension_numbers<[1], [0], [0], [1], [0, 0, 1, 1], [], []>} : vector<8x128xf32>, vector<128x128xf32>, vector<8x128xf32> -> vector<8x128xf32>
    %c3_142 = arith.constant 3 : index
    %c0_143 = arith.constant 0 : index
    %c0_144 = arith.constant 0 : index
    %206 = vector.load %arg16[%c3_142, %c0_143, %c0_144] : memref<9x8x8xf32, #tpu.memory_space<vmem>>, vector<1x8x8xf32>
    %207 = vector.shape_cast %206 : vector<1x8x8xf32> to vector<8x8xf32>
    %cst_145 = arith.constant dense<0.000000e+00> : vector<8x128xf32>
    %208 = tpu.matmul %207, %205, %cst_145 {dimension_numbers = #tpu.dot_dimension_numbers<[1], [0], [0], [1], [0, 0, 1, 1], [], []>} : vector<8x8xf32>, vector<8x128xf32>, vector<8x128xf32> -> vector<8x128xf32>
    %209 = arith.addf %198, %208 : vector<8x128xf32>
    %c3_146 = arith.constant 3 : index
    %c0_147 = arith.constant 0 : index
    %c0_148 = arith.constant 0 : index
    %210 = vector.load %arg17[%c3_146, %c0_147, %c0_148] : memref<9x8x8xf32, #tpu.memory_space<vmem>>, vector<1x8x8xf32>
    %211 = vector.shape_cast %210 : vector<1x8x8xf32> to vector<8x8xf32>
    %cst_149 = arith.constant dense<0.000000e+00> : vector<8x128xf32>
    %212 = tpu.matmul %211, %205, %cst_149 {dimension_numbers = #tpu.dot_dimension_numbers<[1], [0], [0], [1], [0, 0, 1, 1], [], []>} : vector<8x8xf32>, vector<8x128xf32>, vector<8x128xf32> -> vector<8x128xf32>
    %213 = arith.addf %202, %212 : vector<8x128xf32>
    %c4 = arith.constant 4 : index
    %c0_150 = arith.constant 0 : index
    %c0_151 = arith.constant 0 : index
    %214 = vector.load %arg15[%c4, %c0_150, %c0_151] : memref<9x128x128xf32, #tpu.memory_space<vmem>>, vector<1x128x128xf32>
    %215 = vector.shape_cast %214 : vector<1x128x128xf32> to vector<128x128xf32>
    %cst_152 = arith.constant dense<0.000000e+00> : vector<8x128xf32>
    %216 = tpu.matmul %161, %215, %cst_152 {dimension_numbers = #tpu.dot_dimension_numbers<[1], [0], [0], [1], [0, 0, 1, 1], [], []>} : vector<8x128xf32>, vector<128x128xf32>, vector<8x128xf32> -> vector<8x128xf32>
    %c4_153 = arith.constant 4 : index
    %c0_154 = arith.constant 0 : index
    %c0_155 = arith.constant 0 : index
    %217 = vector.load %arg16[%c4_153, %c0_154, %c0_155] : memref<9x8x8xf32, #tpu.memory_space<vmem>>, vector<1x8x8xf32>
    %218 = vector.shape_cast %217 : vector<1x8x8xf32> to vector<8x8xf32>
    %cst_156 = arith.constant dense<0.000000e+00> : vector<8x128xf32>
    %219 = tpu.matmul %218, %216, %cst_156 {dimension_numbers = #tpu.dot_dimension_numbers<[1], [0], [0], [1], [0, 0, 1, 1], [], []>} : vector<8x8xf32>, vector<8x128xf32>, vector<8x128xf32> -> vector<8x128xf32>
    %220 = arith.addf %209, %219 : vector<8x128xf32>
    %c4_157 = arith.constant 4 : index
    %c0_158 = arith.constant 0 : index
    %c0_159 = arith.constant 0 : index
    %221 = vector.load %arg17[%c4_157, %c0_158, %c0_159] : memref<9x8x8xf32, #tpu.memory_space<vmem>>, vector<1x8x8xf32>
    %222 = vector.shape_cast %221 : vector<1x8x8xf32> to vector<8x8xf32>
    %cst_160 = arith.constant dense<0.000000e+00> : vector<8x128xf32>
    %223 = tpu.matmul %222, %216, %cst_160 {dimension_numbers = #tpu.dot_dimension_numbers<[1], [0], [0], [1], [0, 0, 1, 1], [], []>} : vector<8x8xf32>, vector<8x128xf32>, vector<8x128xf32> -> vector<8x128xf32>
    %224 = arith.addf %213, %223 : vector<8x128xf32>
    %c5 = arith.constant 5 : index
    %c0_161 = arith.constant 0 : index
    %c0_162 = arith.constant 0 : index
    %225 = vector.load %arg15[%c5, %c0_161, %c0_162] : memref<9x128x128xf32, #tpu.memory_space<vmem>>, vector<1x128x128xf32>
    %226 = vector.shape_cast %225 : vector<1x128x128xf32> to vector<128x128xf32>
    %cst_163 = arith.constant dense<0.000000e+00> : vector<8x128xf32>
    %227 = tpu.matmul %161, %226, %cst_163 {dimension_numbers = #tpu.dot_dimension_numbers<[1], [0], [0], [1], [0, 0, 1, 1], [], []>} : vector<8x128xf32>, vector<128x128xf32>, vector<8x128xf32> -> vector<8x128xf32>
    %c5_164 = arith.constant 5 : index
    %c0_165 = arith.constant 0 : index
    %c0_166 = arith.constant 0 : index
    %228 = vector.load %arg16[%c5_164, %c0_165, %c0_166] : memref<9x8x8xf32, #tpu.memory_space<vmem>>, vector<1x8x8xf32>
    %229 = vector.shape_cast %228 : vector<1x8x8xf32> to vector<8x8xf32>
    %cst_167 = arith.constant dense<0.000000e+00> : vector<8x128xf32>
    %230 = tpu.matmul %229, %227, %cst_167 {dimension_numbers = #tpu.dot_dimension_numbers<[1], [0], [0], [1], [0, 0, 1, 1], [], []>} : vector<8x8xf32>, vector<8x128xf32>, vector<8x128xf32> -> vector<8x128xf32>
    %231 = arith.addf %220, %230 : vector<8x128xf32>
    %c5_168 = arith.constant 5 : index
    %c0_169 = arith.constant 0 : index
    %c0_170 = arith.constant 0 : index
    %232 = vector.load %arg17[%c5_168, %c0_169, %c0_170] : memref<9x8x8xf32, #tpu.memory_space<vmem>>, vector<1x8x8xf32>
    %233 = vector.shape_cast %232 : vector<1x8x8xf32> to vector<8x8xf32>
    %cst_171 = arith.constant dense<0.000000e+00> : vector<8x128xf32>
    %234 = tpu.matmul %233, %227, %cst_171 {dimension_numbers = #tpu.dot_dimension_numbers<[1], [0], [0], [1], [0, 0, 1, 1], [], []>} : vector<8x8xf32>, vector<8x128xf32>, vector<8x128xf32> -> vector<8x128xf32>
    %235 = arith.addf %224, %234 : vector<8x128xf32>
    %c6 = arith.constant 6 : index
    %c0_172 = arith.constant 0 : index
    %c0_173 = arith.constant 0 : index
    %236 = vector.load %arg15[%c6, %c0_172, %c0_173] : memref<9x128x128xf32, #tpu.memory_space<vmem>>, vector<1x128x128xf32>
    %237 = vector.shape_cast %236 : vector<1x128x128xf32> to vector<128x128xf32>
    %cst_174 = arith.constant dense<0.000000e+00> : vector<8x128xf32>
    %238 = tpu.matmul %161, %237, %cst_174 {dimension_numbers = #tpu.dot_dimension_numbers<[1], [0], [0], [1], [0, 0, 1, 1], [], []>} : vector<8x128xf32>, vector<128x128xf32>, vector<8x128xf32> -> vector<8x128xf32>
    %c6_175 = arith.constant 6 : index
    %c0_176 = arith.constant 0 : index
    %c0_177 = arith.constant 0 : index
    %239 = vector.load %arg16[%c6_175, %c0_176, %c0_177] : memref<9x8x8xf32, #tpu.memory_space<vmem>>, vector<1x8x8xf32>
    %240 = vector.shape_cast %239 : vector<1x8x8xf32> to vector<8x8xf32>
    %cst_178 = arith.constant dense<0.000000e+00> : vector<8x128xf32>
    %241 = tpu.matmul %240, %238, %cst_178 {dimension_numbers = #tpu.dot_dimension_numbers<[1], [0], [0], [1], [0, 0, 1, 1], [], []>} : vector<8x8xf32>, vector<8x128xf32>, vector<8x128xf32> -> vector<8x128xf32>
    %242 = arith.addf %231, %241 : vector<8x128xf32>
    %c6_179 = arith.constant 6 : index
    %c0_180 = arith.constant 0 : index
    %c0_181 = arith.constant 0 : index
    %243 = vector.load %arg17[%c6_179, %c0_180, %c0_181] : memref<9x8x8xf32, #tpu.memory_space<vmem>>, vector<1x8x8xf32>
    %244 = vector.shape_cast %243 : vector<1x8x8xf32> to vector<8x8xf32>
    %cst_182 = arith.constant dense<0.000000e+00> : vector<8x128xf32>
    %245 = tpu.matmul %244, %238, %cst_182 {dimension_numbers = #tpu.dot_dimension_numbers<[1], [0], [0], [1], [0, 0, 1, 1], [], []>} : vector<8x8xf32>, vector<8x128xf32>, vector<8x128xf32> -> vector<8x128xf32>
    %246 = arith.addf %235, %245 : vector<8x128xf32>
    %c7 = arith.constant 7 : index
    %c0_183 = arith.constant 0 : index
    %c0_184 = arith.constant 0 : index
    %247 = vector.load %arg15[%c7, %c0_183, %c0_184] : memref<9x128x128xf32, #tpu.memory_space<vmem>>, vector<1x128x128xf32>
    %248 = vector.shape_cast %247 : vector<1x128x128xf32> to vector<128x128xf32>
    %cst_185 = arith.constant dense<0.000000e+00> : vector<8x128xf32>
    %249 = tpu.matmul %161, %248, %cst_185 {dimension_numbers = #tpu.dot_dimension_numbers<[1], [0], [0], [1], [0, 0, 1, 1], [], []>} : vector<8x128xf32>, vector<128x128xf32>, vector<8x128xf32> -> vector<8x128xf32>
    %c7_186 = arith.constant 7 : index
    %c0_187 = arith.constant 0 : index
    %c0_188 = arith.constant 0 : index
    %250 = vector.load %arg16[%c7_186, %c0_187, %c0_188] : memref<9x8x8xf32, #tpu.memory_space<vmem>>, vector<1x8x8xf32>
    %251 = vector.shape_cast %250 : vector<1x8x8xf32> to vector<8x8xf32>
    %cst_189 = arith.constant dense<0.000000e+00> : vector<8x128xf32>
    %252 = tpu.matmul %251, %249, %cst_189 {dimension_numbers = #tpu.dot_dimension_numbers<[1], [0], [0], [1], [0, 0, 1, 1], [], []>} : vector<8x8xf32>, vector<8x128xf32>, vector<8x128xf32> -> vector<8x128xf32>
    %253 = arith.addf %242, %252 : vector<8x128xf32>
    %c7_190 = arith.constant 7 : index
    %c0_191 = arith.constant 0 : index
    %c0_192 = arith.constant 0 : index
    %254 = vector.load %arg17[%c7_190, %c0_191, %c0_192] : memref<9x8x8xf32, #tpu.memory_space<vmem>>, vector<1x8x8xf32>
    %255 = vector.shape_cast %254 : vector<1x8x8xf32> to vector<8x8xf32>
    %cst_193 = arith.constant dense<0.000000e+00> : vector<8x128xf32>
    %256 = tpu.matmul %255, %249, %cst_193 {dimension_numbers = #tpu.dot_dimension_numbers<[1], [0], [0], [1], [0, 0, 1, 1], [], []>} : vector<8x8xf32>, vector<8x128xf32>, vector<8x128xf32> -> vector<8x128xf32>
    %257 = arith.addf %246, %256 : vector<8x128xf32>
    %c8 = arith.constant 8 : index
    %c0_194 = arith.constant 0 : index
    %c0_195 = arith.constant 0 : index
    %258 = vector.load %arg15[%c8, %c0_194, %c0_195] : memref<9x128x128xf32, #tpu.memory_space<vmem>>, vector<1x128x128xf32>
    %259 = vector.shape_cast %258 : vector<1x128x128xf32> to vector<128x128xf32>
    %cst_196 = arith.constant dense<0.000000e+00> : vector<8x128xf32>
    %260 = tpu.matmul %161, %259, %cst_196 {dimension_numbers = #tpu.dot_dimension_numbers<[1], [0], [0], [1], [0, 0, 1, 1], [], []>} : vector<8x128xf32>, vector<128x128xf32>, vector<8x128xf32> -> vector<8x128xf32>
    %c8_197 = arith.constant 8 : index
    %c0_198 = arith.constant 0 : index
    %c0_199 = arith.constant 0 : index
    %261 = vector.load %arg16[%c8_197, %c0_198, %c0_199] : memref<9x8x8xf32, #tpu.memory_space<vmem>>, vector<1x8x8xf32>
    %262 = vector.shape_cast %261 : vector<1x8x8xf32> to vector<8x8xf32>
    %cst_200 = arith.constant dense<0.000000e+00> : vector<8x128xf32>
    %263 = tpu.matmul %262, %260, %cst_200 {dimension_numbers = #tpu.dot_dimension_numbers<[1], [0], [0], [1], [0, 0, 1, 1], [], []>} : vector<8x8xf32>, vector<8x128xf32>, vector<8x128xf32> -> vector<8x128xf32>
    %264 = arith.addf %253, %263 : vector<8x128xf32>
    %c8_201 = arith.constant 8 : index
    %c0_202 = arith.constant 0 : index
    %c0_203 = arith.constant 0 : index
    %265 = vector.load %arg17[%c8_201, %c0_202, %c0_203] : memref<9x8x8xf32, #tpu.memory_space<vmem>>, vector<1x8x8xf32>
    %266 = vector.shape_cast %265 : vector<1x8x8xf32> to vector<8x8xf32>
    %cst_204 = arith.constant dense<0.000000e+00> : vector<8x128xf32>
    %267 = tpu.matmul %266, %260, %cst_204 {dimension_numbers = #tpu.dot_dimension_numbers<[1], [0], [0], [1], [0, 0, 1, 1], [], []>} : vector<8x8xf32>, vector<8x128xf32>, vector<8x128xf32> -> vector<8x128xf32>
    %268 = arith.addf %257, %267 : vector<8x128xf32>
    %c0_205 = arith.constant 0 : index
    %c0_206 = arith.constant 0 : index
    %269 = vector.load %arg18[%c0_205, %c0_206] : memref<8x1xf32, #tpu.memory_space<vmem>>, vector<8x1xf32>
    %270 = vector.broadcast %269 : vector<8x1xf32> to vector<8x128xf32>
    %271 = arith.addf %264, %270 : vector<8x128xf32>
    %c0_207 = arith.constant 0 : index
    %c0_208 = arith.constant 0 : index
    %272 = vector.load %arg19[%c0_207, %c0_208] : memref<8x1xf32, #tpu.memory_space<vmem>>, vector<8x1xf32>
    %273 = vector.broadcast %272 : vector<8x1xf32> to vector<8x128xf32>
    %274 = arith.addf %268, %273 : vector<8x128xf32>
    %275 = arith.subf %161, %271 : vector<8x128xf32>
    %cst_209 = arith.constant 1.83787704 : f32
    %276 = vector.broadcast %cst_209 : f32 to vector<8x128xf32>
    %277 = arith.subf %276, %274 : vector<8x128xf32>
    %278 = arith.mulf %275, %275 : vector<8x128xf32>
    %279 = arith.addf %277, %278 : vector<8x128xf32>
    %cst_210 = arith.constant -5.000000e-01 : f32
    %280 = vector.broadcast %cst_210 : f32 to vector<8x128xf32>
    %281 = arith.mulf %280, %279 : vector<8x128xf32>
    %cst_211 = arith.constant -2.000000e+00 : f32
    %282 = vector.broadcast %cst_211 : f32 to vector<8x128xf32>
    %283 = arith.mulf %282, %274 : vector<8x128xf32>
    %284 = math.exp %283 : vector<8x128xf32>
    %285 = arith.mulf %281, %284 : vector<8x128xf32>
    %cst_212 = arith.constant 0.000000e+00 : f32
    %286 = vector.broadcast %cst_212 : f32 to vector<8x128xf32>
    %287 = arith.select %6, %285, %286 : vector<8x128xi1>, vector<8x128xf32>
    %288 = vector.shape_cast %287 : vector<8x128xf32> to vector<1x8x128xf32>
    %cst_213 = arith.constant dense<0.000000e+00> : vector<1xf32>
    %289 = vector.multi_reduction <add>, %288, %cst_213 [1, 2] : vector<1x8x128xf32> to vector<1xf32>
    %290 = vector.shape_cast %289 : vector<1xf32> to vector<1x1x1xf32>
    %291 = vector.extract %290[0, 0, 0] : f32 from vector<1x1x1xf32>
    %292 = vector.broadcast %291 : f32 to vector<1x1xf32>
    %c0_214 = arith.constant 0 : index
    %c0_215 = arith.constant 0 : index
    %293 = vector.load %arg20[%c0_214, %c0_215] : memref<8x128xf32, #tpu.memory_space<vmem>>, vector<8x128xf32>
    tpu.vector_store %arg20[%c0_214, %c0_215], %161 {strides = array<i32>} : memref<8x128xf32, #tpu.memory_space<vmem>>, vector<8x128xf32>,
    %294 = tpu.iota {dimensions = array<i32: 0>} : vector<8x128xi32>
    %c0_i32 = arith.constant 0 : i32
    %295 = vector.broadcast %c0_i32 : i32 to vector<8x128xi32>
    %296 = arith.cmpi eq, %294, %295 : vector<8x128xi32>
    %297 = arith.extui %296 : vector<8x128xi1> to vector<8x128xi32>
    %298 = arith.sitofp %297 : vector<8x128xi32> to vector<8x128xf32>
    %299 = vector.broadcast %167 : vector<1x1xf32> to vector<8x128xf32>
    %300 = arith.mulf %299, %298 : vector<8x128xf32>
    %c1_i32 = arith.constant 1 : i32
    %301 = vector.broadcast %c1_i32 : i32 to vector<8x128xi32>
    %302 = arith.cmpi eq, %294, %301 : vector<8x128xi32>
    %303 = arith.extui %302 : vector<8x128xi1> to vector<8x128xi32>
    %304 = arith.sitofp %303 : vector<8x128xi32> to vector<8x128xf32>
    %305 = vector.broadcast %292 : vector<1x1xf32> to vector<8x128xf32>
    %306 = arith.mulf %305, %304 : vector<8x128xf32>
    %307 = arith.addf %300, %306 : vector<8x128xf32>
    %c0_216 = arith.constant 0 : index
    %c0_217 = arith.constant 0 : index
    %308 = vector.load %arg21[%c0_216, %c0_217] : memref<8x128xf32, #tpu.memory_space<vmem>>, vector<8x128xf32>
    tpu.vector_store %arg21[%c0_216, %c0_217], %307 {strides = array<i32>} : memref<8x128xf32, #tpu.memory_space<vmem>>, vector<8x128xf32>,
    return
  }
  func.func @transform_0(%arg0: i32) -> (i32, i32) {
    %c0_i32 = arith.constant 0 : i32
    %c0_i32_0 = arith.constant 0 : i32
    return %c0_i32, %arg0 : i32, i32
  }
  func.func @transform_1(%arg0: i32) -> (i32, i32) {
    %c0_i32 = arith.constant 0 : i32
    %c0_i32_0 = arith.constant 0 : i32
    return %c0_i32, %arg0 : i32, i32
  }
  func.func @transform_2(%arg0: i32) -> (i32, i32, i32) {
    %c0_i32 = arith.constant 0 : i32
    %c0_i32_0 = arith.constant 0 : i32
    %c0_i32_1 = arith.constant 0 : i32
    %c0_i32_2 = arith.constant 0 : i32
    return %c0_i32, %c0_i32_0, %c0_i32_1 : i32, i32, i32
  }
  func.func @transform_3(%arg0: i32) -> (i32, i32, i32) {
    %c0_i32 = arith.constant 0 : i32
    %c0_i32_0 = arith.constant 0 : i32
    %c0_i32_1 = arith.constant 0 : i32
    %c0_i32_2 = arith.constant 0 : i32
    return %c0_i32, %c0_i32_0, %c0_i32_1 : i32, i32, i32
  }
  func.func @transform_4(%arg0: i32) -> (i32, i32, i32) {
    %c0_i32 = arith.constant 0 : i32
    %c0_i32_0 = arith.constant 0 : i32
    %c0_i32_1 = arith.constant 0 : i32
    %c0_i32_2 = arith.constant 0 : i32
    return %c0_i32, %c0_i32_0, %c0_i32_1 : i32, i32, i32
  }
  func.func @transform_5(%arg0: i32) -> (i32, i32, i32) {
    %c0_i32 = arith.constant 0 : i32
    %c0_i32_0 = arith.constant 0 : i32
    %c0_i32_1 = arith.constant 0 : i32
    %c0_i32_2 = arith.constant 0 : i32
    return %c0_i32, %c0_i32_0, %c0_i32_1 : i32, i32, i32
  }
  func.func @transform_6(%arg0: i32) -> (i32, i32, i32) {
    %c0_i32 = arith.constant 0 : i32
    %c0_i32_0 = arith.constant 0 : i32
    %c0_i32_1 = arith.constant 0 : i32
    %c0_i32_2 = arith.constant 0 : i32
    return %c0_i32, %c0_i32_0, %c0_i32_1 : i32, i32, i32
  }
  func.func @transform_7(%arg0: i32) -> (i32, i32, i32) {
    %c0_i32 = arith.constant 0 : i32
    %c0_i32_0 = arith.constant 0 : i32
    %c0_i32_1 = arith.constant 0 : i32
    %c0_i32_2 = arith.constant 0 : i32
    return %c0_i32, %c0_i32_0, %c0_i32_1 : i32, i32, i32
  }
  func.func @transform_8(%arg0: i32) -> (i32, i32, i32) {
    %c0_i32 = arith.constant 0 : i32
    %c0_i32_0 = arith.constant 0 : i32
    %c0_i32_1 = arith.constant 0 : i32
    %c0_i32_2 = arith.constant 0 : i32
    return %c0_i32, %c0_i32_0, %c0_i32_1 : i32, i32, i32
  }
  func.func @transform_9(%arg0: i32) -> (i32, i32, i32) {
    %c0_i32 = arith.constant 0 : i32
    %c0_i32_0 = arith.constant 0 : i32
    %c0_i32_1 = arith.constant 0 : i32
    %c0_i32_2 = arith.constant 0 : i32
    return %c0_i32, %c0_i32_0, %c0_i32_1 : i32, i32, i32
  }
  func.func @transform_10(%arg0: i32) -> (i32, i32, i32) {
    %c0_i32 = arith.constant 0 : i32
    %c0_i32_0 = arith.constant 0 : i32
    %c0_i32_1 = arith.constant 0 : i32
    %c0_i32_2 = arith.constant 0 : i32
    return %c0_i32, %c0_i32_0, %c0_i32_1 : i32, i32, i32
  }
  func.func @transform_11(%arg0: i32) -> (i32, i32, i32) {
    %c0_i32 = arith.constant 0 : i32
    %c0_i32_0 = arith.constant 0 : i32
    %c0_i32_1 = arith.constant 0 : i32
    %c0_i32_2 = arith.constant 0 : i32
    return %c0_i32, %c0_i32_0, %c0_i32_1 : i32, i32, i32
  }
  func.func @transform_12(%arg0: i32) -> (i32, i32, i32) {
    %c0_i32 = arith.constant 0 : i32
    %c0_i32_0 = arith.constant 0 : i32
    %c0_i32_1 = arith.constant 0 : i32
    %c0_i32_2 = arith.constant 0 : i32
    return %c0_i32, %c0_i32_0, %c0_i32_1 : i32, i32, i32
  }
  func.func @transform_13(%arg0: i32) -> (i32, i32) {
    %c0_i32 = arith.constant 0 : i32
    %c0_i32_0 = arith.constant 0 : i32
    %c0_i32_1 = arith.constant 0 : i32
    return %c0_i32, %c0_i32_0 : i32, i32
  }
  func.func @transform_14(%arg0: i32) -> (i32, i32, i32) {
    %c0_i32 = arith.constant 0 : i32
    %c0_i32_0 = arith.constant 0 : i32
    %c0_i32_1 = arith.constant 0 : i32
    %c0_i32_2 = arith.constant 0 : i32
    return %c0_i32, %c0_i32_0, %c0_i32_1 : i32, i32, i32
  }
  func.func @transform_15(%arg0: i32) -> (i32, i32, i32) {
    %c0_i32 = arith.constant 0 : i32
    %c0_i32_0 = arith.constant 0 : i32
    %c0_i32_1 = arith.constant 0 : i32
    %c0_i32_2 = arith.constant 0 : i32
    return %c0_i32, %c0_i32_0, %c0_i32_1 : i32, i32, i32
  }
  func.func @transform_16(%arg0: i32) -> (i32, i32, i32) {
    %c0_i32 = arith.constant 0 : i32
    %c0_i32_0 = arith.constant 0 : i32
    %c0_i32_1 = arith.constant 0 : i32
    %c0_i32_2 = arith.constant 0 : i32
    return %c0_i32, %c0_i32_0, %c0_i32_1 : i32, i32, i32
  }
  func.func @transform_17(%arg0: i32) -> (i32, i32) {
    %c0_i32 = arith.constant 0 : i32
    %c0_i32_0 = arith.constant 0 : i32
    %c0_i32_1 = arith.constant 0 : i32
    return %c0_i32, %c0_i32_0 : i32, i32
  }
  func.func @transform_18(%arg0: i32) -> (i32, i32) {
    %c0_i32 = arith.constant 0 : i32
    %c0_i32_0 = arith.constant 0 : i32
    %c0_i32_1 = arith.constant 0 : i32
    return %c0_i32, %c0_i32_0 : i32, i32
  }
  func.func @transform_19(%arg0: i32) -> (i32, i32) {
    %c0_i32 = arith.constant 0 : i32
    %c0_i32_0 = arith.constant 0 : i32
    return %c0_i32, %arg0 : i32, i32
  }
  func.func @transform_20(%arg0: i32) -> (i32, i32) {
    %c0_i32 = arith.constant 0 : i32
    %c0_i32_0 = arith.constant 0 : i32
    return %arg0, %c0_i32 : i32, i32
  }
}

</mosaic_0001>

<llo_original>
// kernel: block_forward.1
$region0: #{block_forward.1}
  #allocation0 [shape = 'u32[]', space=smem, size = 0x4, offset = 0x4, fixed_abs, tag = 'smem constant byte address 0x4 - core index']
  #allocation1 [shape = 'u32[144,128]{1,0:T(1,128)}', space=vmem, size = 0x12000, scoped, tag = 'internal scratch']
  %s0 = inlined_call_operand.vmem [shape: f32[8,256], index: 0, kind: input, shape index: {}]
  %s1 = inlined_call_operand.vmem [shape: f32[4,256], index: 1, kind: input, shape index: {}]
  %s2 = inlined_call_operand.vmem [shape: f32[2,8,8], index: 2, kind: input, shape index: {}]
  %s3 = inlined_call_operand.vmem [shape: f32[2,8,1], index: 3, kind: input, shape index: {}]
  %s4 = inlined_call_operand.vmem [shape: f32[2,32,8], index: 4, kind: input, shape index: {}]
  %s5 = inlined_call_operand.vmem [shape: f32[2,32,4], index: 5, kind: input, shape index: {}]
  %s6 = inlined_call_operand.vmem [shape: f32[2,32,1], index: 6, kind: input, shape index: {}]
  %s7 = inlined_call_operand.vmem [shape: f32[2,32,32], index: 7, kind: input, shape index: {}]
  %s8 = inlined_call_operand.vmem [shape: f32[2,32,1], index: 8, kind: input, shape index: {}]
  %s9 = inlined_call_operand.vmem [shape: f32[2,8,32], index: 9, kind: input, shape index: {}]
  %s10 = inlined_call_operand.vmem [shape: f32[2,8,1], index: 10, kind: input, shape index: {}]
  %s11 = inlined_call_operand.vmem [shape: f32[2,8,32], index: 11, kind: input, shape index: {}]
  %s12 = inlined_call_operand.vmem [shape: f32[2,8,1], index: 12, kind: input, shape index: {}]
  %s13 = inlined_call_operand.vmem [shape: f32[128,128], index: 13, kind: input, shape index: {}]
  %s14 = inlined_call_operand.vmem [shape: f32[9,128,128], index: 14, kind: input, shape index: {}]
  %s15 = inlined_call_operand.vmem [shape: f32[9,8,8], index: 15, kind: input, shape index: {}]
  %s16 = inlined_call_operand.vmem [shape: f32[9,8,8], index: 16, kind: input, shape index: {}]
  %s17 = inlined_call_operand.vmem [shape: f32[8,1], index: 17, kind: input, shape index: {}]
  %s18 = inlined_call_operand.vmem [shape: f32[8,1], index: 18, kind: input, shape index: {}]
  %s19 = inlined_call_operand.vmem [shape: f32[8,256], index: 19, kind: output, shape index: {0}]
  %s20 = inlined_call_operand.vmem [shape: f32[16,128], index: 20, kind: output, shape index: {1}]
  %21 = xla_tuple %s19, %s20
  %s22 = sld [smem:[#allocation0]]
  $region117: #{block_forward.1} parent=0
    _
  %s24 = ssub.s32 1, %s22
  %s25 = scalar_select 0, %s24, %s22
  loop: start=0, step=1, limit=4
  $region2: #{block_forward.1} parent=0 // loop_pre_header
    _
  $region3: #{block_forward.1} parent=0 // loop_header
    %s27 = sphi 0, %s31
    %p28 = scmp.ge.s32.totalorder %s27, 4
    %s37 = sphi 0, %s39
    %s40 = sphi 0, %s37
    %s41 = sphi 0, %s40
    %s57 = sphi 0, %s41
    %s63 = sphi 0, %s65
    %s66 = sphi 0, %s63
    %s67 = sphi 0, %s66
    %s83 = sphi 0, %s67
    %s87 = sphi 0, %s87
    %s89 = sphi 0, %s87
    %s90 = sphi 0, %s89
    %s104 = sphi 0, %s90
    %s108 = sphi 0, %s108
    %s110 = sphi 0, %s108
    %s111 = sphi 0, %s110
    %s125 = sphi 0, %s111
    %s129 = sphi 0, %s129
    %s131 = sphi 0, %s129
    %s132 = sphi 0, %s131
    %s146 = sphi 0, %s132
    %s150 = sphi 0, %s150
    %s152 = sphi 0, %s150
    %s153 = sphi 0, %s152
    %s167 = sphi 0, %s153
    %s171 = sphi 0, %s171
    %s173 = sphi 0, %s171
    %s174 = sphi 0, %s173
    %s188 = sphi 0, %s174
    %s192 = sphi 0, %s192
    %s194 = sphi 0, %s192
    %s195 = sphi 0, %s194
    %s209 = sphi 0, %s195
    %s213 = sphi 0, %s213
    %s215 = sphi 0, %s213
    %s216 = sphi 0, %s215
    %s230 = sphi 0, %s216
    %s234 = sphi 0, %s234
    %s236 = sphi 0, %s234
    %s237 = sphi 0, %s236
    %s251 = sphi 0, %s237
    %s255 = sphi 0, %s255
    %s257 = sphi 0, %s255
    %s258 = sphi 0, %s257
    %s272 = sphi 0, %s258
    %s276 = sphi 0, %s276
    %s278 = sphi 0, %s276
    %s279 = sphi 0, %s278
    %s293 = sphi 0, %s279
    %s297 = sphi 0, %s297
    %s299 = sphi 0, %s297
    %s300 = sphi 0, %s299
    %s314 = sphi 0, %s300
    %s318 = sphi 0, %s318
    %s320 = sphi 0, %s318
    %s321 = sphi 0, %s320
    %s335 = sphi 0, %s321
    %s339 = sphi 0, %s339
    %s341 = sphi 0, %s339
    %s342 = sphi 0, %s341
    %s356 = sphi 0, %s342
    %s360 = sphi 0, %s360
    %s362 = sphi 0, %s360
    %s363 = sphi 0, %s362
    %s377 = sphi 0, %s363
    %s381 = sphi 0, %s381
    %s383 = sphi 0, %s381
    %s384 = sphi 0, %s383
    %s398 = sphi 0, %s384
    %s402 = sphi 0, %s402
    %s404 = sphi 0, %s402
    %s405 = sphi 0, %s404
    %s419 = sphi 0, %s405
    %s423 = sphi 0, %s423
    %s425 = sphi 0, %s423
    %s426 = sphi 0, %s425
    %s440 = sphi 0, %s426
    %s446 = sphi 0, %s448
    %s449 = sphi 0, %s446
    %s450 = sphi 0, %s449
    %s466 = sphi 0, %s450
    %s472 = sphi 0, %s474
    %s475 = sphi 0, %s472
    %s476 = sphi 0, %s475
    %s492 = sphi 0, %s476
  $region4: #{block_forward.1} parent=0 // loop_header_branch
    %30 = sbr.rel (%p28) target = $region8
  $region5: #{block_forward.1} parent=0 // loop_body
    %s32 = ssub.s32 %s27, 1
    %s33 = ssub.s32 %s27, 2
    %s34 = sadd.s32 %s27, 1
    %s35 = ssub.s32 %s27, %s34
    %p36 = scmp.eq.s32.totalorder %s35, 0
    %s38 = sadd.s32 %s37, 1
    %s39 = scalar_select %p36, %s37, %s38
    %p42 = pneg %p36
    %p43 = scmp.eq.s32.totalorder %s27, 1
    %p44 = por %p42, %p43
    %p45 = scmp.ne.s32.totalorder %s37, %s40
    %p46 = scmp.eq.s32.totalorder %s27, 0
    %p47 = por %p45, %p46
    %p48 = scmp.ne.s32.totalorder %s37, %s40
    %p49 = scmp.eq.s32.totalorder %s32, 1
    %p50 = por %p48, %p49
    %p51 = scmp.ne.s32.totalorder %s40, %s41
    %p52 = scmp.eq.s32.totalorder %s32, 0
    %p53 = por %p51, %p52
    %p54 = scmp.ne.s32.totalorder %s40, %s41
    %p55 = scmp.eq.s32.totalorder %s33, 1
    %p56 = por %p54, %p55
    %p58 = scmp.ne.s32.totalorder %s41, %s57
    %p59 = scmp.eq.s32.totalorder %s33, 0
    %p60 = por %p58, %p59
    %s61 = ssub.s32 %s27, %s34
    %p62 = scmp.eq.s32.totalorder %s61, 0
    %s64 = sadd.s32 %s63, 1
    %s65 = scalar_select %p62, %s63, %s64
    %p68 = pneg %p62
    %p69 = scmp.eq.s32.totalorder %s27, 1
    %p70 = por %p68, %p69
    %p71 = scmp.ne.s32.totalorder %s63, %s66
    %p72 = scmp.eq.s32.totalorder %s27, 0
    %p73 = por %p71, %p72
    %p74 = scmp.ne.s32.totalorder %s63, %s66
    %p75 = scmp.eq.s32.totalorder %s32, 1
    %p76 = por %p74, %p75
    %p77 = scmp.ne.s32.totalorder %s66, %s67
    %p78 = scmp.eq.s32.totalorder %s32, 0
    %p79 = por %p77, %p78
    %p80 = scmp.ne.s32.totalorder %s66, %s67
    %p81 = scmp.eq.s32.totalorder %s33, 1
    %p82 = por %p80, %p81
    %p84 = scmp.ne.s32.totalorder %s67, %s83
    %p85 = scmp.eq.s32.totalorder %s33, 0
    %p86 = por %p84, %p85
    %s88 = sadd.s32 %s87, 1
    %p91 = scmp.eq.s32.totalorder %s27, 1
    %p92 = scmp.ne.s32.totalorder %s87, %s89
    %p93 = scmp.eq.s32.totalorder %s27, 0
    %p94 = por %p92, %p93
    %p95 = scmp.ne.s32.totalorder %s87, %s89
    %p96 = scmp.eq.s32.totalorder %s32, 1
    %p97 = por %p95, %p96
    %p98 = scmp.ne.s32.totalorder %s89, %s90
    %p99 = scmp.eq.s32.totalorder %s32, 0
    %p100 = por %p98, %p99
    %p101 = scmp.ne.s32.totalorder %s89, %s90
    %p102 = scmp.eq.s32.totalorder %s33, 1
    %p103 = por %p101, %p102
    %p105 = scmp.ne.s32.totalorder %s90, %s104
    %p106 = scmp.eq.s32.totalorder %s33, 0
    %p107 = por %p105, %p106
    %s109 = sadd.s32 %s108, 1
    %p112 = scmp.eq.s32.totalorder %s27, 1
    %p113 = scmp.ne.s32.totalorder %s108, %s110
    %p114 = scmp.eq.s32.totalorder %s27, 0
    %p115 = por %p113, %p114
    %p116 = scmp.ne.s32.totalorder %s108, %s110
    %p117 = scmp.eq.s32.totalorder %s32, 1
    %p118 = por %p116, %p117
    %p119 = scmp.ne.s32.totalorder %s110, %s111
    %p120 = scmp.eq.s32.totalorder %s32, 0
    %p121 = por %p119, %p120
    %p122 = scmp.ne.s32.totalorder %s110, %s111
    %p123 = scmp.eq.s32.totalorder %s33, 1
    %p124 = por %p122, %p123
    %p126 = scmp.ne.s32.totalorder %s111, %s125
    %p127 = scmp.eq.s32.totalorder %s33, 0
    %p128 = por %p126, %p127
    %s130 = sadd.s32 %s129, 1
    %p133 = scmp.eq.s32.totalorder %s27, 1
    %p134 = scmp.ne.s32.totalorder %s129, %s131
    %p135 = scmp.eq.s32.totalorder %s27, 0
    %p136 = por %p134, %p135
    %p137 = scmp.ne.s32.totalorder %s129, %s131
    %p138 = scmp.eq.s32.totalorder %s32, 1
    %p139 = por %p137, %p138
    %p140 = scmp.ne.s32.totalorder %s131, %s132
    %p141 = scmp.eq.s32.totalorder %s32, 0
    %p142 = por %p140, %p141
    %p143 = scmp.ne.s32.totalorder %s131, %s132
    %p144 = scmp.eq.s32.totalorder %s33, 1
    %p145 = por %p143, %p144
    %p147 = scmp.ne.s32.totalorder %s132, %s146
    %p148 = scmp.eq.s32.totalorder %s33, 0
    %p149 = por %p147, %p148
    %s151 = sadd.s32 %s150, 1
    %p154 = scmp.eq.s32.totalorder %s27, 1
    %p155 = scmp.ne.s32.totalorder %s150, %s152
    %p156 = scmp.eq.s32.totalorder %s27, 0
    %p157 = por %p155, %p156
    %p158 = scmp.ne.s32.totalorder %s150, %s152
    %p159 = scmp.eq.s32.totalorder %s32, 1
    %p160 = por %p158, %p159
    %p161 = scmp.ne.s32.totalorder %s152, %s153
    %p162 = scmp.eq.s32.totalorder %s32, 0
    %p163 = por %p161, %p162
    %p164 = scmp.ne.s32.totalorder %s152, %s153
    %p165 = scmp.eq.s32.totalorder %s33, 1
    %p166 = por %p164, %p165
    %p168 = scmp.ne.s32.totalorder %s153, %s167
    %p169 = scmp.eq.s32.totalorder %s33, 0
    %p170 = por %p168, %p169
    %s172 = sadd.s32 %s171, 1
    %p175 = scmp.eq.s32.totalorder %s27, 1
    %p176 = scmp.ne.s32.totalorder %s171, %s173
    %p177 = scmp.eq.s32.totalorder %s27, 0
    %p178 = por %p176, %p177
    %p179 = scmp.ne.s32.totalorder %s171, %s173
    %p180 = scmp.eq.s32.totalorder %s32, 1
    %p181 = por %p179, %p180
    %p182 = scmp.ne.s32.totalorder %s173, %s174
    %p183 = scmp.eq.s32.totalorder %s32, 0
    %p184 = por %p182, %p183
    %p185 = scmp.ne.s32.totalorder %s173, %s174
    %p186 = scmp.eq.s32.totalorder %s33, 1
    %p187 = por %p185, %p186
    %p189 = scmp.ne.s32.totalorder %s174, %s188
    %p190 = scmp.eq.s32.totalorder %s33, 0
    %p191 = por %p189, %p190
    %s193 = sadd.s32 %s192, 1
    %p196 = scmp.eq.s32.totalorder %s27, 1
    %p197 = scmp.ne.s32.totalorder %s192, %s194
    %p198 = scmp.eq.s32.totalorder %s27, 0
    %p199 = por %p197, %p198
    %p200 = scmp.ne.s32.totalorder %s192, %s194
    %p201 = scmp.eq.s32.totalorder %s32, 1
    %p202 = por %p200, %p201
    %p203 = scmp.ne.s32.totalorder %s194, %s195
    %p204 = scmp.eq.s32.totalorder %s32, 0
    %p205 = por %p203, %p204
    %p206 = scmp.ne.s32.totalorder %s194, %s195
    %p207 = scmp.eq.s32.totalorder %s33, 1
    %p208 = por %p206, %p207
    %p210 = scmp.ne.s32.totalorder %s195, %s209
    %p211 = scmp.eq.s32.totalorder %s33, 0
    %p212 = por %p210, %p211
    %s214 = sadd.s32 %s213, 1
    %p217 = scmp.eq.s32.totalorder %s27, 1
    %p218 = scmp.ne.s32.totalorder %s213, %s215
    %p219 = scmp.eq.s32.totalorder %s27, 0
    %p220 = por %p218, %p219
    %p221 = scmp.ne.s32.totalorder %s213, %s215
    %p222 = scmp.eq.s32.totalorder %s32, 1
    %p223 = por %p221, %p222
    %p224 = scmp.ne.s32.totalorder %s215, %s216
    %p225 = scmp.eq.s32.totalorder %s32, 0
    %p226 = por %p224, %p225
    %p227 = scmp.ne.s32.totalorder %s215, %s216
    %p228 = scmp.eq.s32.totalorder %s33, 1
    %p229 = por %p227, %p228
    %p231 = scmp.ne.s32.totalorder %s216, %s230
    %p232 = scmp.eq.s32.totalorder %s33, 0
    %p233 = por %p231, %p232
    %s235 = sadd.s32 %s234, 1
    %p238 = scmp.eq.s32.totalorder %s27, 1
    %p239 = scmp.ne.s32.totalorder %s234, %s236
    %p240 = scmp.eq.s32.totalorder %s27, 0
    %p241 = por %p239, %p240
    %p242 = scmp.ne.s32.totalorder %s234, %s236
    %p243 = scmp.eq.s32.totalorder %s32, 1
    %p244 = por %p242, %p243
    %p245 = scmp.ne.s32.totalorder %s236, %s237
    %p246 = scmp.eq.s32.totalorder %s32, 0
    %p247 = por %p245, %p246
    %p248 = scmp.ne.s32.totalorder %s236, %s237
    %p249 = scmp.eq.s32.totalorder %s33, 1
    %p250 = por %p248, %p249
    %p252 = scmp.ne.s32.totalorder %s237, %s251
    %p253 = scmp.eq.s32.totalorder %s33, 0
    %p254 = por %p252, %p253
    %s256 = sadd.s32 %s255, 1
    %p259 = scmp.eq.s32.totalorder %s27, 1
    %p260 = scmp.ne.s32.totalorder %s255, %s257
    %p261 = scmp.eq.s32.totalorder %s27, 0
    %p262 = por %p260, %p261
    %p263 = scmp.ne.s32.totalorder %s255, %s257
    %p264 = scmp.eq.s32.totalorder %s32, 1
    %p265 = por %p263, %p264
    %p266 = scmp.ne.s32.totalorder %s257, %s258
    %p267 = scmp.eq.s32.totalorder %s32, 0
    %p268 = por %p266, %p267
    %p269 = scmp.ne.s32.totalorder %s257, %s258
    %p270 = scmp.eq.s32.totalorder %s33, 1
    %p271 = por %p269, %p270
    %p273 = scmp.ne.s32.totalorder %s258, %s272
    %p274 = scmp.eq.s32.totalorder %s33, 0
    %p275 = por %p273, %p274
    %s277 = sadd.s32 %s276, 1
    %p280 = scmp.eq.s32.totalorder %s27, 1
    %p281 = scmp.ne.s32.totalorder %s276, %s278
    %p282 = scmp.eq.s32.totalorder %s27, 0
    %p283 = por %p281, %p282
    %p284 = scmp.ne.s32.totalorder %s276, %s278
    %p285 = scmp.eq.s32.totalorder %s32, 1
    %p286 = por %p284, %p285
    %p287 = scmp.ne.s32.totalorder %s278, %s279
    %p288 = scmp.eq.s32.totalorder %s32, 0
    %p289 = por %p287, %p288
    %p290 = scmp.ne.s32.totalorder %s278, %s279
    %p291 = scmp.eq.s32.totalorder %s33, 1
    %p292 = por %p290, %p291
    %p294 = scmp.ne.s32.totalorder %s279, %s293
    %p295 = scmp.eq.s32.totalorder %s33, 0
    %p296 = por %p294, %p295
    %s298 = sadd.s32 %s297, 1
    %p301 = scmp.eq.s32.totalorder %s27, 1
    %p302 = scmp.ne.s32.totalorder %s297, %s299
    %p303 = scmp.eq.s32.totalorder %s27, 0
    %p304 = por %p302, %p303
    %p305 = scmp.ne.s32.totalorder %s297, %s299
    %p306 = scmp.eq.s32.totalorder %s32, 1
    %p307 = por %p305, %p306
    %p308 = scmp.ne.s32.totalorder %s299, %s300
    %p309 = scmp.eq.s32.totalorder %s32, 0
    %p310 = por %p308, %p309
    %p311 = scmp.ne.s32.totalorder %s299, %s300
    %p312 = scmp.eq.s32.totalorder %s33, 1
    %p313 = por %p311, %p312
    %p315 = scmp.ne.s32.totalorder %s300, %s314
    %p316 = scmp.eq.s32.totalorder %s33, 0
    %p317 = por %p315, %p316
    %s319 = sadd.s32 %s318, 1
    %p322 = scmp.eq.s32.totalorder %s27, 1
    %p323 = scmp.ne.s32.totalorder %s318, %s320
    %p324 = scmp.eq.s32.totalorder %s27, 0
    %p325 = por %p323, %p324
    %p326 = scmp.ne.s32.totalorder %s318, %s320
    %p327 = scmp.eq.s32.totalorder %s32, 1
    %p328 = por %p326, %p327
    %p329 = scmp.ne.s32.totalorder %s320, %s321
    %p330 = scmp.eq.s32.totalorder %s32, 0
    %p331 = por %p329, %p330
    %p332 = scmp.ne.s32.totalorder %s320, %s321
    %p333 = scmp.eq.s32.totalorder %s33, 1
    %p334 = por %p332, %p333
    %p336 = scmp.ne.s32.totalorder %s321, %s335
    %p337 = scmp.eq.s32.totalorder %s33, 0
    %p338 = por %p336, %p337
    %s340 = sadd.s32 %s339, 1
    %p343 = scmp.eq.s32.totalorder %s27, 1
    %p344 = scmp.ne.s32.totalorder %s339, %s341
    %p345 = scmp.eq.s32.totalorder %s27, 0
    %p346 = por %p344, %p345
    %p347 = scmp.ne.s32.totalorder %s339, %s341
    %p348 = scmp.eq.s32.totalorder %s32, 1
    %p349 = por %p347, %p348
    %p350 = scmp.ne.s32.totalorder %s341, %s342
    %p351 = scmp.eq.s32.totalorder %s32, 0
    %p352 = por %p350, %p351
    %p353 = scmp.ne.s32.totalorder %s341, %s342
    %p354 = scmp.eq.s32.totalorder %s33, 1
    %p355 = por %p353, %p354
    %p357 = scmp.ne.s32.totalorder %s342, %s356
    %p358 = scmp.eq.s32.totalorder %s33, 0
    %p359 = por %p357, %p358
    %s361 = sadd.s32 %s360, 1
    %p364 = scmp.eq.s32.totalorder %s27, 1
    %p365 = scmp.ne.s32.totalorder %s360, %s362
    %p366 = scmp.eq.s32.totalorder %s27, 0
    %p367 = por %p365, %p366
    %p368 = scmp.ne.s32.totalorder %s360, %s362
    %p369 = scmp.eq.s32.totalorder %s32, 1
    %p370 = por %p368, %p369
    %p371 = scmp.ne.s32.totalorder %s362, %s363
    %p372 = scmp.eq.s32.totalorder %s32, 0
    %p373 = por %p371, %p372
    %p374 = scmp.ne.s32.totalorder %s362, %s363
    %p375 = scmp.eq.s32.totalorder %s33, 1
    %p376 = por %p374, %p375
    %p378 = scmp.ne.s32.totalorder %s363, %s377
    %p379 = scmp.eq.s32.totalorder %s33, 0
    %p380 = por %p378, %p379
    %s382 = sadd.s32 %s381, 1
    %p385 = scmp.eq.s32.totalorder %s27, 1
    %p386 = scmp.ne.s32.totalorder %s381, %s383
    %p387 = scmp.eq.s32.totalorder %s27, 0
    %p388 = por %p386, %p387
    %p389 = scmp.ne.s32.totalorder %s381, %s383
    %p390 = scmp.eq.s32.totalorder %s32, 1
    %p391 = por %p389, %p390
    %p392 = scmp.ne.s32.totalorder %s383, %s384
    %p393 = scmp.eq.s32.totalorder %s32, 0
    %p394 = por %p392, %p393
    %p395 = scmp.ne.s32.totalorder %s383, %s384
    %p396 = scmp.eq.s32.totalorder %s33, 1
    %p397 = por %p395, %p396
    %p399 = scmp.ne.s32.totalorder %s384, %s398
    %p400 = scmp.eq.s32.totalorder %s33, 0
    %p401 = por %p399, %p400
    %s403 = sadd.s32 %s402, 1
    %p406 = scmp.eq.s32.totalorder %s27, 1
    %p407 = scmp.ne.s32.totalorder %s402, %s404
    %p408 = scmp.eq.s32.totalorder %s27, 0
    %p409 = por %p407, %p408
    %p410 = scmp.ne.s32.totalorder %s402, %s404
    %p411 = scmp.eq.s32.totalorder %s32, 1
    %p412 = por %p410, %p411
    %p413 = scmp.ne.s32.totalorder %s404, %s405
    %p414 = scmp.eq.s32.totalorder %s32, 0
    %p415 = por %p413, %p414
    %p416 = scmp.ne.s32.totalorder %s404, %s405
    %p417 = scmp.eq.s32.totalorder %s33, 1
    %p418 = por %p416, %p417
    %p420 = scmp.ne.s32.totalorder %s405, %s419
    %p421 = scmp.eq.s32.totalorder %s33, 0
    %p422 = por %p420, %p421
    %s424 = sadd.s32 %s423, 1
    %p427 = scmp.eq.s32.totalorder %s27, 1
    %p428 = scmp.ne.s32.totalorder %s423, %s425
    %p429 = scmp.eq.s32.totalorder %s27, 0
    %p430 = por %p428, %p429
    %p431 = scmp.ne.s32.totalorder %s423, %s425
    %p432 = scmp.eq.s32.totalorder %s32, 1
    %p433 = por %p431, %p432
    %p434 = scmp.ne.s32.totalorder %s425, %s426
    %p435 = scmp.eq.s32.totalorder %s32, 0
    %p436 = por %p434, %p435
    %p437 = scmp.ne.s32.totalorder %s425, %s426
    %p438 = scmp.eq.s32.totalorder %s33, 1
    %p439 = por %p437, %p438
    %p441 = scmp.ne.s32.totalorder %s426, %s440
    %p442 = scmp.eq.s32.totalorder %s33, 0
    %p443 = por %p441, %p442
    %s444 = ssub.s32 %s27, %s34
    %p445 = scmp.eq.s32.totalorder %s444, 0
    %s447 = sadd.s32 %s446, 1
    %s448 = scalar_select %p445, %s446, %s447
    %p451 = pneg %p445
    %p452 = scmp.eq.s32.totalorder %s27, 1
    %p453 = por %p451, %p452
    %p454 = scmp.ne.s32.totalorder %s446, %s449
    %p455 = scmp.eq.s32.totalorder %s27, 0
    %p456 = por %p454, %p455
    %p457 = scmp.ne.s32.totalorder %s446, %s449
    %p458 = scmp.eq.s32.totalorder %s32, 1
    %p459 = por %p457, %p458
    %p460 = scmp.ne.s32.totalorder %s449, %s450
    %p461 = scmp.eq.s32.totalorder %s32, 0
    %p462 = por %p460, %p461
    %p463 = scmp.ne.s32.totalorder %s449, %s450
    %p464 = scmp.eq.s32.totalorder %s33, 1
    %p465 = por %p463, %p464
    %p467 = scmp.ne.s32.totalorder %s450, %s466
    %p468 = scmp.eq.s32.totalorder %s33, 0
    %p469 = por %p467, %p468
    %s470 = ssub.s32 %s27, %s34
    %p471 = scmp.eq.s32.totalorder %s470, 0
    %s473 = sadd.s32 %s472, 1
    %s474 = scalar_select %p471, %s472, %s473
    %p477 = pneg %p471
    %p478 = scmp.eq.s32.totalorder %s27, 1
    %p479 = por %p477, %p478
    %p480 = scmp.ne.s32.totalorder %s472, %s475
    %p481 = scmp.eq.s32.totalorder %s27, 0
    %p482 = por %p480, %p481
    %p483 = scmp.ne.s32.totalorder %s472, %s475
    %p484 = scmp.eq.s32.totalorder %s32, 1
    %p485 = por %p483, %p484
    %p486 = scmp.ne.s32.totalorder %s475, %s476
    %p487 = scmp.eq.s32.totalorder %s32, 0
    %p488 = por %p486, %p487
    %p489 = scmp.ne.s32.totalorder %s475, %s476
    %p490 = scmp.eq.s32.totalorder %s33, 1
    %p491 = por %p489, %p490
    %p493 = scmp.ne.s32.totalorder %s476, %s492
    %p494 = scmp.eq.s32.totalorder %s33, 0
    %p495 = por %p493, %p494
    %p496 = scmp.le.s32.totalorder 1, %s27
    %p497 = scmp.lt.s32.totalorder %s27, 3
    %p498 = pnand %p496, %p497
    %p499 = pneg %p498
    // Predicated region
    $region9: #{block_forward.1} parent=5 // pred_check
      _
    $region10: #{block_forward.1} parent=5 // pred_check_branch
      %501 = sbr.rel (%p498) target = $region12
    $region11: #{block_forward.1} parent=5 // pred_region
      %s502 = ssub.s32 %s27, 1
      // Predicated region
      $region13: #{block_forward.1} parent=11 // pred_check
        %p503 = pneg %p100
      $region14: #{block_forward.1} parent=11 // pred_check_branch
        %505 = sbr.rel (%p503) target = $region16
      $region15: #{block_forward.1} parent=11 // pred_region
        _
      $region16: #{block_forward.1} parent=11 // pred_fallthru
        _
      // Predicated region
      $region17: #{block_forward.1} parent=11 // pred_check
        %p506 = pneg %p121
      $region18: #{block_forward.1} parent=11 // pred_check_branch
        %508 = sbr.rel (%p506) target = $region20
      $region19: #{block_forward.1} parent=11 // pred_region
        _
      $region20: #{block_forward.1} parent=11 // pred_fallthru
        _
      // Predicated region
      $region21: #{block_forward.1} parent=11 // pred_check
        %p509 = pneg %p142
      $region22: #{block_forward.1} parent=11 // pred_check_branch
        %511 = sbr.rel (%p509) target = $region24
      $region23: #{block_forward.1} parent=11 // pred_region
        _
      $region24: #{block_forward.1} parent=11 // pred_fallthru
        _
      // Predicated region
      $region25: #{block_forward.1} parent=11 // pred_check
        %p512 = pneg %p163
      $region26: #{block_forward.1} parent=11 // pred_check_branch
        %514 = sbr.rel (%p512) target = $region28
      $region27: #{block_forward.1} parent=11 // pred_region
        _
      $region28: #{block_forward.1} parent=11 // pred_fallthru
        _
      // Predicated region
      $region29: #{block_forward.1} parent=11 // pred_check
        %p515 = pneg %p184
      $region30: #{block_forward.1} parent=11 // pred_check_branch
        %517 = sbr.rel (%p515) target = $region32
      $region31: #{block_forward.1} parent=11 // pred_region
        _
      $region32: #{block_forward.1} parent=11 // pred_fallthru
        _
      // Predicated region
      $region33: #{block_forward.1} parent=11 // pred_check
        %p518 = pneg %p205
      $region34: #{block_forward.1} parent=11 // pred_check_branch
        %520 = sbr.rel (%p518) target = $region36
      $region35: #{block_forward.1} parent=11 // pred_region
        _
      $region36: #{block_forward.1} parent=11 // pred_fallthru
        _
      // Predicated region
      $region37: #{block_forward.1} parent=11 // pred_check
        %p521 = pneg %p226
      $region38: #{block_forward.1} parent=11 // pred_check_branch
        %523 = sbr.rel (%p521) target = $region40
      $region39: #{block_forward.1} parent=11 // pred_region
        _
      $region40: #{block_forward.1} parent=11 // pred_fallthru
        _
      // Predicated region
      $region41: #{block_forward.1} parent=11 // pred_check
        %p524 = pneg %p247
      $region42: #{block_forward.1} parent=11 // pred_check_branch
        %526 = sbr.rel (%p524) target = $region44
      $region43: #{block_forward.1} parent=11 // pred_region
        _
      $region44: #{block_forward.1} parent=11 // pred_fallthru
        _
      // Predicated region
      $region45: #{block_forward.1} parent=11 // pred_check
        %p527 = pneg %p268
      $region46: #{block_forward.1} parent=11 // pred_check_branch
        %529 = sbr.rel (%p527) target = $region48
      $region47: #{block_forward.1} parent=11 // pred_region
        _
      $region48: #{block_forward.1} parent=11 // pred_fallthru
        _
      // Predicated region
      $region49: #{block_forward.1} parent=11 // pred_check
        %p530 = pneg %p289
      $region50: #{block_forward.1} parent=11 // pred_check_branch
        %532 = sbr.rel (%p530) target = $region52
      $region51: #{block_forward.1} parent=11 // pred_region
        _
      $region52: #{block_forward.1} parent=11 // pred_fallthru
        _
      // Predicated region
      $region53: #{block_forward.1} parent=11 // pred_check
        %p533 = pneg %p310
      $region54: #{block_forward.1} parent=11 // pred_check_branch
        %535 = sbr.rel (%p533) target = $region56
      $region55: #{block_forward.1} parent=11 // pred_region
        _
      $region56: #{block_forward.1} parent=11 // pred_fallthru
        _
      // Predicated region
      $region57: #{block_forward.1} parent=11 // pred_check
        %p536 = pneg %p331
      $region58: #{block_forward.1} parent=11 // pred_check_branch
        %538 = sbr.rel (%p536) target = $region60
      $region59: #{block_forward.1} parent=11 // pred_region
        _
      $region60: #{block_forward.1} parent=11 // pred_fallthru
        _
      // Predicated region
      $region61: #{block_forward.1} parent=11 // pred_check
        %p539 = pneg %p352
      $region62: #{block_forward.1} parent=11 // pred_check_branch
        %541 = sbr.rel (%p539) target = $region64
      $region63: #{block_forward.1} parent=11 // pred_region
        _
      $region64: #{block_forward.1} parent=11 // pred_fallthru
        _
      // Predicated region
      $region65: #{block_forward.1} parent=11 // pred_check
        %p542 = pneg %p373
      $region66: #{block_forward.1} parent=11 // pred_check_branch
        %544 = sbr.rel (%p542) target = $region68
      $region67: #{block_forward.1} parent=11 // pred_region
        _
      $region68: #{block_forward.1} parent=11 // pred_fallthru
        _
      // Predicated region
      $region69: #{block_forward.1} parent=11 // pred_check
        %p545 = pneg %p394
      $region70: #{block_forward.1} parent=11 // pred_check_branch
        %547 = sbr.rel (%p545) target = $region72
      $region71: #{block_forward.1} parent=11 // pred_region
        _
      $region72: #{block_forward.1} parent=11 // pred_fallthru
        _
      // Predicated region
      $region73: #{block_forward.1} parent=11 // pred_check
        %p548 = pneg %p415
      $region74: #{block_forward.1} parent=11 // pred_check_branch
        %550 = sbr.rel (%p548) target = $region76
      $region75: #{block_forward.1} parent=11 // pred_region
        _
      $region76: #{block_forward.1} parent=11 // pred_fallthru
        _
      // Predicated region
      $region77: #{block_forward.1} parent=11 // pred_check
        %p551 = pneg %p436
      $region78: #{block_forward.1} parent=11 // pred_check_branch
        %553 = sbr.rel (%p551) target = $region80
      $region79: #{block_forward.1} parent=11 // pred_region
        _
      $region80: #{block_forward.1} parent=11 // pred_fallthru
        _
    $region12: #{block_forward.1} parent=5 // pred_fallthru
      _
    %p554 = scmp.lt.s32.totalorder %s27, 2
    // Predicated region
    $region81: #{block_forward.1} parent=5 // pred_check
      %p555 = pneg %p554
    $region82: #{block_forward.1} parent=5 // pred_check_branch
      %557 = sbr.rel (%p555) target = $region84
    $region83: #{block_forward.1} parent=5 // pred_region
      // Predicated region
      $region85: #{block_forward.1} parent=83 // pred_check
        %p558 = pneg %p47
      $region86: #{block_forward.1} parent=83 // pred_check_branch
        %560 = sbr.rel (%p558) target = $region88
      $region87: #{block_forward.1} parent=83 // pred_region
        %p561 = scmp.lt.s32.totalorder %s27, 1
        %s562 = scalar_select %p561, %s27, 1
        %s563 = smul.addr %s562, 8
        %s564 = scalar_lea.vmem %s0, %s563
      $region88: #{block_forward.1} parent=83 // pred_fallthru
        _
      // Predicated region
      $region89: #{block_forward.1} parent=83 // pred_check
        %p565 = pneg %p73
      $region90: #{block_forward.1} parent=83 // pred_check_branch
        %567 = sbr.rel (%p565) target = $region92
      $region91: #{block_forward.1} parent=83 // pred_region
        %p568 = scmp.lt.s32.totalorder %s27, 1
        %s569 = scalar_select %p568, %s27, 1
        %s570 = smul.addr %s569, 4
        %s571 = scalar_lea.vmem %s1, %s570
      $region92: #{block_forward.1} parent=83 // pred_fallthru
        _
    $region84: #{block_forward.1} parent=5 // pred_fallthru
      _
    %p572 = scmp.le.s32.totalorder 1, %s27
    %p573 = scmp.lt.s32.totalorder %s27, 3
    %p574 = pnand %p572, %p573
    %p575 = pneg %p574
    // Predicated region
    $region93: #{block_forward.1} parent=5 // pred_check
      _
    $region94: #{block_forward.1} parent=5 // pred_check_branch
      %577 = sbr.rel (%p574) target = $region96
    $region95: #{block_forward.1} parent=5 // pred_region
      %s578 = ssub.s32 %s27, 1
      %p579 = scmp.lt.s32.totalorder %s32, 1
      %s580 = scalar_select %p579, %s32, 1
      %s581 = smul.addr %s580, 8
      %s582 = scalar_lea.vmem %s0, %s581
      %p583 = pneg %p53
      %p584 = pneg %p50
      %p585 = scmp.lt.s32.totalorder %s32, 1
      %s586 = scalar_select %p585, %s32, 1
      %s587 = smul.addr %s586, 4
      %s588 = scalar_lea.vmem %s1, %s587
      %p589 = pneg %p79
      %p590 = pneg %p76
      %p591 = pneg %p100
      %p592 = pneg %p97
      %p593 = pneg %p121
      %p594 = pneg %p118
      %p595 = pneg %p142
      %p596 = pneg %p139
      %p597 = pneg %p163
      %p598 = pneg %p160
      %p599 = pneg %p184
      %p600 = pneg %p181
      %p601 = pneg %p205
      %p602 = pneg %p202
      %p603 = pneg %p226
      %p604 = pneg %p223
      %p605 = pneg %p247
      %p606 = pneg %p244
      %p607 = pneg %p268
      %p608 = pneg %p265
      %p609 = pneg %p289
      %p610 = pneg %p286
      %p611 = pneg %p310
      %p612 = pneg %p307
      %p613 = pneg %p331
      %p614 = pneg %p328
      %p615 = pneg %p352
      %p616 = pneg %p349
      %p617 = pneg %p373
      %p618 = pneg %p370
      %p619 = pneg %p394
      %p620 = pneg %p391
      %p621 = pneg %p415
      %p622 = pneg %p412
      %p623 = pneg %p436
      %p624 = pneg %p433
      %p625 = pneg %p462
      %p626 = pneg %p459
      %p627 = scmp.lt.s32.totalorder %s32, 1
      %s628 = scalar_select %p627, %s32, 1
      %s629 = smul.addr %s628, 8
      %s630 = scalar_lea.vmem %s19, %s629
      %p631 = pneg %p488
      %p632 = pneg %p485
      %p633 = scmp.lt.s32.totalorder %s32, 1
      %s634 = scalar_select %p633, %s32, 1
      %s635 = smul.addr %s634, 8
      %s636 = scalar_lea.vmem %s20, %s635
      %p637 = scmp.lt.s32.totalorder %s32, 1
      %s638 = scalar_select %p637, %s32, 1
      %s639 = smul.addr %s638, 8
      %s640 = scalar_lea.vmem %s0, %s639
      %p641 = scmp.lt.s32.totalorder %s32, 1
      %s642 = scalar_select %p641, %s32, 1
      %s643 = smul.addr %s642, 4
      %s644 = scalar_lea.vmem %s1, %s643
      %p645 = scmp.lt.s32.totalorder %s32, 1
      %s646 = scalar_select %p645, %s32, 1
      %s647 = smul.addr %s646, 8
      %s648 = scalar_lea.vmem %s19, %s647
      %p649 = scmp.lt.s32.totalorder %s32, 1
      %s650 = scalar_select %p649, %s32, 1
      %s651 = smul.addr %s650, 8
      %s652 = scalar_lea.vmem %s20, %s651
      %v654 = vld [vmem:[%s640] sm:$0xff]
      %v655 = vld [vmem:[%s644] sm:$0xf]
      %v656 = vld [vmem:[%s13] sm:$0xff]
      %v657 = vld [vmem:[%s13 + $0x8] sm:$0xff]
      %v658 = vld [vmem:[%s13 + $0x10] sm:$0xff]
      %v659 = vld [vmem:[%s13 + $0x18] sm:$0xff]
      %v660 = vld [vmem:[%s13 + $0x20] sm:$0xff]
      %v661 = vld [vmem:[%s13 + $0x28] sm:$0xff]
      %v662 = vld [vmem:[%s13 + $0x30] sm:$0xff]
      %v663 = vld [vmem:[%s13 + $0x38] sm:$0xff]
      %v664 = vld [vmem:[%s13 + $0x40] sm:$0xff]
      %v665 = vld [vmem:[%s13 + $0x48] sm:$0xff]
      %v666 = vld [vmem:[%s13 + $0x50] sm:$0xff]
      %v667 = vld [vmem:[%s13 + $0x58] sm:$0xff]
      %v668 = vld [vmem:[%s13 + $0x60] sm:$0xff]
      %v669 = vld [vmem:[%s13 + $0x68] sm:$0xff]
      %v670 = vld [vmem:[%s13 + $0x70] sm:$0xff]
      %v671 = vld [vmem:[%s13 + $0x78] sm:$0xff]
      %v672 = vpack.c.bf16 %v657, %v656
      %v673 = vpack.c.bf16 %v659, %v658
      %v674 = vpack.c.bf16 %v661, %v660
      %v675 = vpack.c.bf16 %v663, %v662
      %v676 = vpack.c.bf16 %v665, %v664
      %v677 = vpack.c.bf16 %v667, %v666
      %v678 = vpack.c.bf16 %v669, %v668
      %v679 = vpack.c.bf16 %v671, %v670
      %v680 = vlaneseq
      %v681 = vshrl.u32 %v680, 7
      %vm682 = vcmp.ge.s32.totalorder %v681, 4
      %v683 = vld [vmem:[%s2] sm:$0xff]
      %v684 = vld [vmem:[%s3] sm:$0xff]
      %686 = vset.pattern.permute.xlu0 0
      %687 = vperm.xlu0 %686, %v684
      %v688 = vpop.permute.xlu0 %687
      %vm690 = vcmask 64512
      %v692 = vsel %vm690, %v683, 0
      %694 = vmatprep.subr.mxu0 0.0
      %695 = vmatpush1.msra.mxu0 0.0
      %696 = vmatprep.subr.mxu0 0.0
      %697 = vmatpush1.msra.mxu0 0.0
      %698 = vmatprep.subr.mxu0 0.0
      %699 = vmatpush1.msra.mxu0 0.0
      %700 = vmatprep.subr.mxu0 0.0
      %701 = vmatpush1.msra.mxu0 0.0
      %702 = vmatprep.subr.mxu0 0.0
      %703 = vmatpush1.msra.mxu0 0.0
      %704 = vmatprep.subr.mxu0 0.0
      %705 = vmatpush1.msra.mxu0 0.0
      %706 = vmatprep.subr.mxu0 0.0
      %707 = vmatpush1.msra.mxu0 0.0
      %708 = vmatprep.subr.mxu0 0.0
      %709 = vmatpush1.msra.mxu0 0.0
      %710 = vmatprep.subr.mxu0 0.0
      %711 = vmatpush1.msra.mxu0 0.0
      %712 = vmatprep.subr.mxu0 0.0
      %713 = vmatpush1.msra.mxu0 0.0
      %714 = vmatprep.subr.mxu0 0.0
      %715 = vmatpush1.msra.mxu0 0.0
      %716 = vmatprep.subr.mxu0 0.0
      %717 = vmatpush1.msra.mxu0 0.0
      %718 = vmatprep.subr.mxu0 0.0
      %719 = vmatpush1.msra.mxu0 0.0
      %720 = vmatprep.subr.mxu0 0.0
      %721 = vmatpush1.msra.mxu0 0.0
      %722 = vmatprep.subr.mxu0 0.0
      %723 = vmatpush1.msra.mxu0 0.0
      %724 = vmatprep.subr.mxu0 0.0
      %725 = vmatpush1.msra.mxu0 %v654
      %726 = vmatprep.subr.mxu0 0.0
      %727 = vmatpush2.msra.mxu0 0.0
      %728 = vmatprep.subr.mxu0 0.0
      %729 = vmatpush2.msra.mxu0 0.0
      %730 = vmatprep.subr.mxu0 0.0
      %731 = vmatpush2.msra.mxu0 0.0
      %732 = vmatprep.subr.mxu0 0.0
      %733 = vmatpush2.msra.mxu0 0.0
      %734 = vmatprep.subr.mxu0 0.0
      %735 = vmatpush2.msra.mxu0 0.0
      %736 = vmatprep.subr.mxu0 0.0
      %737 = vmatpush2.msra.mxu0 0.0
      %738 = vmatprep.subr.mxu0 0.0
      %739 = vmatpush2.msra.mxu0 0.0
      %740 = vmatprep.subr.mxu0 0.0
      %741 = vmatpush2.msra.mxu0 0.0
      %742 = vmatprep.subr.mxu0 0.0
      %743 = vmatpush2.msra.mxu0 0.0
      %744 = vmatprep.subr.mxu0 0.0
      %745 = vmatpush2.msra.mxu0 0.0
      %746 = vmatprep.subr.mxu0 0.0
      %747 = vmatpush2.msra.mxu0 0.0
      %748 = vmatprep.subr.mxu0 0.0
      %749 = vmatpush2.msra.mxu0 0.0
      %750 = vmatprep.subr.mxu0 0.0
      %751 = vmatpush2.msra.mxu0 0.0
      %752 = vmatprep.subr.mxu0 0.0
      %753 = vmatpush2.msra.mxu0 0.0
      %754 = vmatprep.subr.mxu0 0.0
      %755 = vmatpush2.msra.mxu0 0.0
      %756 = vmatprep.subr.mxu0 0.0
      %757 = vmatpush2.msra.mxu0 0.0
      %758 = vmatprep.mubr.f32.mxu0 0.0
      %759 = vmatmul.mubr.f32.gmra.mxu0 %v692
      %v760 = vpop.f32.mrf.mxu0
      %v761 = vadd.f32 %v688, %v760
      %v762 = vpop.f32.mrf.mxu0
      %763 = vdwg.mxu0
      %v764 = vld [vmem:[%s4] sm:$0xff]
      %v765 = vld [vmem:[%s4 + $0x8] sm:$0xff]
      %v766 = vld [vmem:[%s4 + $0x10] sm:$0xff]
      %v767 = vld [vmem:[%s4 + $0x18] sm:$0xff]
      %v768 = vpack.c.bf16 %v765, %v764
      %v769 = vpack.c.bf16 %v767, %v766
      %v770 = vpack.c.bf16 %v761, %v761
      %v771 = vld [vmem:[%s5] sm:$0xff]
      %v772 = vld [vmem:[%s5 + $0x8] sm:$0xff]
      %v773 = vld [vmem:[%s5 + $0x10] sm:$0xff]
      %v774 = vld [vmem:[%s5 + $0x18] sm:$0xff]
      %v775 = vpack.c.bf16 %v772, %v771
      %v776 = vpack.c.bf16 %v774, %v773
      %v777 = vpack.c.bf16 %v655, %v655
      %vm778 = vcmask 31744
      %v780 = vsel %vm778, %v775, 0
      %v783 = vsel %vm778, %v776, 0
      %vm785 = vcmask 1041408
      %v787 = vsel %vm785, %v777, 0
      %789 = vmatprep.subr.bf16.mxu0 0
      %790 = vmatpush1.bf16.msra.mxu0 0
      %791 = vmatprep.subr.bf16.mxu0 0
      %792 = vmatpush1.bf16.msra.mxu0 0
      %793 = vmatprep.subr.bf16.mxu0 0
      %794 = vmatpush1.bf16.msra.mxu0 0
      %795 = vmatprep.subr.bf16.mxu0 0
      %796 = vmatpush1.bf16.msra.mxu0 0
      %797 = vmatprep.subr.bf16.mxu0 0
      %798 = vmatpush1.bf16.msra.mxu0 0
      %799 = vmatprep.subr.bf16.mxu0 0
      %800 = vmatpush1.bf16.msra.mxu0 0
      %801 = vmatprep.subr.bf16.mxu0 0
      %802 = vmatpush1.bf16.msra.mxu0 0
      %803 = vmatprep.subr.bf16.mxu0 0
      %804 = vmatpush1.bf16.msra.mxu0 %v787
      %805 = vmatprep.subr.bf16.mxu0 0
      %806 = vmatpush2.bf16.msra.mxu0 0
      %807 = vmatprep.subr.bf16.mxu0 0
      %808 = vmatpush2.bf16.msra.mxu0 0
      %809 = vmatprep.subr.bf16.mxu0 0
      %810 = vmatpush2.bf16.msra.mxu0 0
      %811 = vmatprep.subr.bf16.mxu0 0
      %812 = vmatpush2.bf16.msra.mxu0 0
      %813 = vmatprep.subr.bf16.mxu0 0
      %814 = vmatpush2.bf16.msra.mxu0 0
      %815 = vmatprep.subr.bf16.mxu0 0
      %816 = vmatpush2.bf16.msra.mxu0 0
      %817 = vmatprep.subr.bf16.mxu0 0
      %818 = vmatpush2.bf16.msra.mxu0 0
      %819 = vmatprep.subr.bf16.mxu0 0
      %820 = vmatpush2.bf16.msra.mxu0 0
      %821 = vmatprep.mubr.bf16.mxu0 0
      %822 = vmatmul.mubr.bf16.gmra.mxu0 %v780
      %v823 = vpop.f32.mrf.mxu0
      %v824 = vadd.f32 0.0, %v823
      %v825 = vpop.f32.mrf.mxu0
      %v826 = vpop.f32.mrf.mxu0
      %v827 = vadd.f32 0.0, %v826
      %v828 = vpop.f32.mrf.mxu0
      %829 = vmatprep.mubr.bf16.mxu0 0
      %830 = vmatmul.mubr.bf16.gmra.mxu0 %v783
      %v831 = vpop.f32.mrf.mxu0
      %v832 = vadd.f32 0.0, %v831
      %v833 = vpop.f32.mrf.mxu0
      %v834 = vpop.f32.mrf.mxu0
      %v835 = vadd.f32 0.0, %v834
      %v836 = vpop.f32.mrf.mxu0
      %837 = vdwg.mxu0
      %v839 = vsel %vm690, %v768, 0
      %v842 = vsel %vm690, %v769, 0
      %vm844 = vcmask 1043456
      %v846 = vsel %vm844, %v770, 0
      %848 = vmatprep.subr.bf16.mxu0 0
      %849 = vmatpush1.bf16.msra.mxu0 0
      %850 = vmatprep.subr.bf16.mxu0 0
      %851 = vmatpush1.bf16.msra.mxu0 0
      %852 = vmatprep.subr.bf16.mxu0 0
      %853 = vmatpush1.bf16.msra.mxu0 0
      %854 = vmatprep.subr.bf16.mxu0 0
      %855 = vmatpush1.bf16.msra.mxu0 0
      %856 = vmatprep.subr.bf16.mxu0 0
      %857 = vmatpush1.bf16.msra.mxu0 0
      %858 = vmatprep.subr.bf16.mxu0 0
      %859 = vmatpush1.bf16.msra.mxu0 0
      %860 = vmatprep.subr.bf16.mxu0 0
      %861 = vmatpush1.bf16.msra.mxu0 0
      %862 = vmatprep.subr.bf16.mxu0 0
      %863 = vmatpush1.bf16.msra.mxu0 %v846
      %864 = vmatprep.subr.bf16.mxu0 0
      %865 = vmatpush2.bf16.msra.mxu0 0
      %866 = vmatprep.subr.bf16.mxu0 0
      %867 = vmatpush2.bf16.msra.mxu0 0
      %868 = vmatprep.subr.bf16.mxu0 0
      %869 = vmatpush2.bf16.msra.mxu0 0
      %870 = vmatprep.subr.bf16.mxu0 0
      %871 = vmatpush2.bf16.msra.mxu0 0
      %872 = vmatprep.subr.bf16.mxu0 0
      %873 = vmatpush2.bf16.msra.mxu0 0
      %874 = vmatprep.subr.bf16.mxu0 0
      %875 = vmatpush2.bf16.msra.mxu0 0
      %876 = vmatprep.subr.bf16.mxu0 0
      %877 = vmatpush2.bf16.msra.mxu0 0
      %878 = vmatprep.subr.bf16.mxu0 0
      %879 = vmatpush2.bf16.msra.mxu0 0
      %880 = vmatprep.mubr.bf16.mxu0 0
      %881 = vmatmul.mubr.bf16.gmra.mxu0 %v839
      %v882 = vpop.f32.mrf.mxu0
      %v883 = vadd.f32 %v824, %v882
      %v884 = vpop.f32.mrf.mxu0
      %v885 = vpop.f32.mrf.mxu0
      %v886 = vadd.f32 %v827, %v885
      %v887 = vpop.f32.mrf.mxu0
      %888 = vmatprep.mubr.bf16.mxu0 0
      %889 = vmatmul.mubr.bf16.gmra.mxu0 %v842
      %v890 = vpop.f32.mrf.mxu0
      %v891 = vadd.f32 %v832, %v890
      %v892 = vpop.f32.mrf.mxu0
      %v893 = vpop.f32.mrf.mxu0
      %v894 = vadd.f32 %v835, %v893
      %v895 = vpop.f32.mrf.mxu0
      %896 = vdwg.mxu0
      %v897 = vld [vmem:[%s6] sm:$0xff]
      %v898 = vld [vmem:[%s6 + $0x8] sm:$0xff]
      %v899 = vld [vmem:[%s6 + $0x10] sm:$0xff]
      %v900 = vld [vmem:[%s6 + $0x18] sm:$0xff]
      %902 = vset.pattern.permute.xlu0 0
      %903 = vperm.xlu0 %902, %v897
      %v904 = vpop.permute.xlu0 %903
      %907 = vset.pattern.permute.xlu0 0
      %908 = vperm.xlu0 %907, %v898
      %v909 = vpop.permute.xlu0 %908
      %912 = vset.pattern.permute.xlu0 0
      %913 = vperm.xlu0 %912, %v899
      %v914 = vpop.permute.xlu0 %913
      %917 = vset.pattern.permute.xlu0 0
      %918 = vperm.xlu0 %917, %v900
      %v919 = vpop.permute.xlu0 %918
      %v921 = vadd.f32 %v883, %v904
      %v922 = vadd.f32 %v886, %v909
      %v923 = vadd.f32 %v891, %v914
      %v924 = vadd.f32 %v894, %v919
      %v925 = vpack.c.bf16 %v922, %v921
      %v926 = vpack.c.bf16 %v924, %v923
      %927 = vmatprep.subr.bf16.mxu0 0
      %928 = vmatpush1.bf16.msra.mxu0 %v679
      %929 = vmatprep.subr.bf16.mxu0 0
      %930 = vmatpush1.bf16.msra.mxu0 %v678
      %931 = vmatprep.subr.bf16.mxu0 0
      %932 = vmatpush1.bf16.msra.mxu0 %v677
      %933 = vmatprep.subr.bf16.mxu0 0
      %934 = vmatpush1.bf16.msra.mxu0 %v676
      %935 = vmatprep.subr.bf16.mxu0 0
      %936 = vmatpush1.bf16.msra.mxu0 %v675
      %937 = vmatprep.subr.bf16.mxu0 0
      %938 = vmatpush1.bf16.msra.mxu0 %v674
      %939 = vmatprep.subr.bf16.mxu0 0
      %940 = vmatpush1.bf16.msra.mxu0 %v673
      %941 = vmatprep.subr.bf16.mxu0 0
      %942 = vmatpush1.bf16.msra.mxu0 %v672
      %943 = vmatprep.subr.bf16.mxu0 0
      %944 = vmatpush2.bf16.msra.mxu0 0
      %945 = vmatprep.subr.bf16.mxu0 0
      %946 = vmatpush2.bf16.msra.mxu0 0
      %947 = vmatprep.subr.bf16.mxu0 0
      %948 = vmatpush2.bf16.msra.mxu0 0
      %949 = vmatprep.subr.bf16.mxu0 0
      %950 = vmatpush2.bf16.msra.mxu0 0
      %951 = vmatprep.subr.bf16.mxu0 0
      %952 = vmatpush2.bf16.msra.mxu0 0
      %953 = vmatprep.subr.bf16.mxu0 0
      %954 = vmatpush2.bf16.msra.mxu0 0
      %955 = vmatprep.subr.bf16.mxu0 0
      %956 = vmatpush2.bf16.msra.mxu0 0
      %957 = vmatprep.subr.bf16.mxu0 0
      %958 = vmatpush2.bf16.msra.mxu0 0
      %959 = vmatprep.mubr.bf16.mxu0 0
      %960 = vmatmul.mubr.bf16.gmra.mxu0 %v925
      %v961 = vpop.f32.mrf.mxu0
      %v962 = vadd.f32 0.0, %v961
      %v963 = vpop.f32.mrf.mxu0
      %v964 = vpop.f32.mrf.mxu0
      %v965 = vadd.f32 0.0, %v964
      %v966 = vpop.f32.mrf.mxu0
      %967 = vmatprep.mubr.bf16.mxu0 0
      %968 = vmatmul.mubr.bf16.gmra.mxu0 %v926
      %v969 = vpop.f32.mrf.mxu0
      %v970 = vadd.f32 0.0, %v969
      %v971 = vpop.f32.mrf.mxu0
      %v972 = vpop.f32.mrf.mxu0
      %v973 = vadd.f32 0.0, %v972
      %v974 = vpop.f32.mrf.mxu0
      %975 = vdwg.mxu0
      %v976 = vmax.f32 %v962, 0.0
      %v977 = vmax.f32 %v965, 0.0
      %v978 = vmax.f32 %v970, 0.0
      %v979 = vmax.f32 %v973, 0.0
      %v980 = vld [vmem:[%s7] sm:$0xff]
      %v981 = vld [vmem:[%s7 + $0x8] sm:$0xff]
      %v982 = vld [vmem:[%s7 + $0x10] sm:$0xff]
      %v983 = vld [vmem:[%s7 + $0x18] sm:$0xff]
      %v984 = vpack.c.bf16 %v981, %v980
      %v985 = vpack.c.bf16 %v983, %v982
      %v986 = vpack.c.bf16 %v977, %v976
      %v987 = vpack.c.bf16 %v979, %v978
      %v988 = vld [vmem:[%s8] sm:$0xff]
      %v989 = vld [vmem:[%s8 + $0x8] sm:$0xff]
      %v990 = vld [vmem:[%s8 + $0x10] sm:$0xff]
      %v991 = vld [vmem:[%s8 + $0x18] sm:$0xff]
      %993 = vset.pattern.permute.xlu0 0
      %994 = vperm.xlu0 %993, %v988
      %v995 = vpop.permute.xlu0 %994
      %998 = vset.pattern.permute.xlu0 0
      %999 = vperm.xlu0 %998, %v989
      %v1000 = vpop.permute.xlu0 %999
      %1003 = vset.pattern.permute.xlu0 0
      %1004 = vperm.xlu0 %1003, %v990
      %v1005 = vpop.permute.xlu0 %1004
      %1008 = vset.pattern.permute.xlu0 0
      %1009 = vperm.xlu0 %1008, %v991
      %v1010 = vpop.permute.xlu0 %1009
      %vm1012 = vcmask 261120
      %v1014 = vsel %vm1012, %v984, 0
      %v1017 = vsel %vm1012, %v985, 0
      %1019 = vmatprep.subr.bf16.mxu0 0
      %1020 = vmatpush1.bf16.msra.mxu0 0
      %1021 = vmatprep.subr.bf16.mxu0 0
      %1022 = vmatpush1.bf16.msra.mxu0 0
      %1023 = vmatprep.subr.bf16.mxu0 0
      %1024 = vmatpush1.bf16.msra.mxu0 0
      %1025 = vmatprep.subr.bf16.mxu0 0
      %1026 = vmatpush1.bf16.msra.mxu0 0
      %1027 = vmatprep.subr.bf16.mxu0 0
      %1028 = vmatpush1.bf16.msra.mxu0 0
      %1029 = vmatprep.subr.bf16.mxu0 0
      %1030 = vmatpush1.bf16.msra.mxu0 0
      %1031 = vmatprep.subr.bf16.mxu0 0
      %1032 = vmatpush1.bf16.msra.mxu0 %v987
      %1033 = vmatprep.subr.bf16.mxu0 0
      %1034 = vmatpush1.bf16.msra.mxu0 %v986
      %1035 = vmatprep.subr.bf16.mxu0 0
      %1036 = vmatpush2.bf16.msra.mxu0 0
      %1037 = vmatprep.subr.bf16.mxu0 0
      %1038 = vmatpush2.bf16.msra.mxu0 0
      %1039 = vmatprep.subr.bf16.mxu0 0
      %1040 = vmatpush2.bf16.msra.mxu0 0
      %1041 = vmatprep.subr.bf16.mxu0 0
      %1042 = vmatpush2.bf16.msra.mxu0 0
      %1043 = vmatprep.subr.bf16.mxu0 0
      %1044 = vmatpush2.bf16.msra.mxu0 0
      %1045 = vmatprep.subr.bf16.mxu0 0
      %1046 = vmatpush2.bf16.msra.mxu0 0
      %1047 = vmatprep.subr.bf16.mxu0 0
      %1048 = vmatpush2.bf16.msra.mxu0 0
      %1049 = vmatprep.subr.bf16.mxu0 0
      %1050 = vmatpush2.bf16.msra.mxu0 0
      %1051 = vmatprep.mubr.bf16.mxu0 0
      %1052 = vmatmul.mubr.bf16.gmra.mxu0 %v1014
      %v1053 = vpop.f32.mrf.mxu0
      %v1054 = vadd.f32 %v995, %v1053
      %v1055 = vpop.f32.mrf.mxu0
      %v1056 = vpop.f32.mrf.mxu0
      %v1057 = vadd.f32 %v1000, %v1056
      %v1058 = vpop.f32.mrf.mxu0
      %1059 = vmatprep.mubr.bf16.mxu0 0
      %1060 = vmatmul.mubr.bf16.gmra.mxu0 %v1017
      %v1061 = vpop.f32.mrf.mxu0
      %v1062 = vadd.f32 %v1005, %v1061
      %v1063 = vpop.f32.mrf.mxu0
      %v1064 = vpop.f32.mrf.mxu0
      %v1065 = vadd.f32 %v1010, %v1064
      %v1066 = vpop.f32.mrf.mxu0
      %1067 = vdwg.mxu0
      %v1068 = vpack.c.bf16 %v1057, %v1054
      %v1069 = vpack.c.bf16 %v1065, %v1062
      %1070 = vmatprep.subr.bf16.mxu0 0
      %1071 = vmatpush1.bf16.msra.mxu0 %v679
      %1072 = vmatprep.subr.bf16.mxu0 0
      %1073 = vmatpush1.bf16.msra.mxu0 %v678
      %1074 = vmatprep.subr.bf16.mxu0 0
      %1075 = vmatpush1.bf16.msra.mxu0 %v677
      %1076 = vmatprep.subr.bf16.mxu0 0
      %1077 = vmatpush1.bf16.msra.mxu0 %v676
      %1078 = vmatprep.subr.bf16.mxu0 0
      %1079 = vmatpush1.bf16.msra.mxu0 %v675
      %1080 = vmatprep.subr.bf16.mxu0 0
      %1081 = vmatpush1.bf16.msra.mxu0 %v674
      %1082 = vmatprep.subr.bf16.mxu0 0
      %1083 = vmatpush1.bf16.msra.mxu0 %v673
      %1084 = vmatprep.subr.bf16.mxu0 0
      %1085 = vmatpush1.bf16.msra.mxu0 %v672
      %1086 = vmatprep.subr.bf16.mxu0 0
      %1087 = vmatpush2.bf16.msra.mxu0 0
      %1088 = vmatprep.subr.bf16.mxu0 0
      %1089 = vmatpush2.bf16.msra.mxu0 0
      %1090 = vmatprep.subr.bf16.mxu0 0
      %1091 = vmatpush2.bf16.msra.mxu0 0
      %1092 = vmatprep.subr.bf16.mxu0 0
      %1093 = vmatpush2.bf16.msra.mxu0 0
      %1094 = vmatprep.subr.bf16.mxu0 0
      %1095 = vmatpush2.bf16.msra.mxu0 0
      %1096 = vmatprep.subr.bf16.mxu0 0
      %1097 = vmatpush2.bf16.msra.mxu0 0
      %1098 = vmatprep.subr.bf16.mxu0 0
      %1099 = vmatpush2.bf16.msra.mxu0 0
      %1100 = vmatprep.subr.bf16.mxu0 0
      %1101 = vmatpush2.bf16.msra.mxu0 0
      %1102 = vmatprep.mubr.bf16.mxu0 0
      %1103 = vmatmul.mubr.bf16.gmra.mxu0 %v1068
      %v1104 = vpop.f32.mrf.mxu0
      %v1105 = vadd.f32 0.0, %v1104
      %v1106 = vpop.f32.mrf.mxu0
      %v1107 = vpop.f32.mrf.mxu0
      %v1108 = vadd.f32 0.0, %v1107
      %v1109 = vpop.f32.mrf.mxu0
      %1110 = vmatprep.mubr.bf16.mxu0 0
      %1111 = vmatmul.mubr.bf16.gmra.mxu0 %v1069
      %v1112 = vpop.f32.mrf.mxu0
      %v1113 = vadd.f32 0.0, %v1112
      %v1114 = vpop.f32.mrf.mxu0
      %v1115 = vpop.f32.mrf.mxu0
      %v1116 = vadd.f32 0.0, %v1115
      %v1117 = vpop.f32.mrf.mxu0
      %1118 = vdwg.mxu0
      %v1119 = vmax.f32 %v1105, 0.0
      %v1120 = vmax.f32 %v1108, 0.0
      %v1121 = vmax.f32 %v1113, 0.0
      %v1122 = vmax.f32 %v1116, 0.0
      %v1123 = vld [vmem:[%s9] sm:$0xff]
      %v1124 = vpack.c.bf16 %v1123, %v1123
      %v1125 = vpack.c.bf16 %v1120, %v1119
      %v1126 = vpack.c.bf16 %v1122, %v1121
      %v1127 = vld [vmem:[%s10] sm:$0xff]
      %1129 = vset.pattern.permute.xlu0 0
      %1130 = vperm.xlu0 %1129, %v1127
      %v1131 = vpop.permute.xlu0 %1130
      %v1134 = vsel %vm1012, %v1124, 0
      %1136 = vmatprep.subr.bf16.mxu0 0
      %1137 = vmatpush1.bf16.msra.mxu0 0
      %1138 = vmatprep.subr.bf16.mxu0 0
      %1139 = vmatpush1.bf16.msra.mxu0 0
      %1140 = vmatprep.subr.bf16.mxu0 0
      %1141 = vmatpush1.bf16.msra.mxu0 0
      %1142 = vmatprep.subr.bf16.mxu0 0
      %1143 = vmatpush1.bf16.msra.mxu0 0
      %1144 = vmatprep.subr.bf16.mxu0 0
      %1145 = vmatpush1.bf16.msra.mxu0 0
      %1146 = vmatprep.subr.bf16.mxu0 0
      %1147 = vmatpush1.bf16.msra.mxu0 0
      %1148 = vmatprep.subr.bf16.mxu0 0
      %1149 = vmatpush1.bf16.msra.mxu0 %v1126
      %1150 = vmatprep.subr.bf16.mxu0 0
      %1151 = vmatpush1.bf16.msra.mxu0 %v1125
      %1152 = vmatprep.subr.bf16.mxu0 0
      %1153 = vmatpush2.bf16.msra.mxu0 0
      %1154 = vmatprep.subr.bf16.mxu0 0
      %1155 = vmatpush2.bf16.msra.mxu0 0
      %1156 = vmatprep.subr.bf16.mxu0 0
      %1157 = vmatpush2.bf16.msra.mxu0 0
      %1158 = vmatprep.subr.bf16.mxu0 0
      %1159 = vmatpush2.bf16.msra.mxu0 0
      %1160 = vmatprep.subr.bf16.mxu0 0
      %1161 = vmatpush2.bf16.msra.mxu0 0
      %1162 = vmatprep.subr.bf16.mxu0 0
      %1163 = vmatpush2.bf16.msra.mxu0 0
      %1164 = vmatprep.subr.bf16.mxu0 0
      %1165 = vmatpush2.bf16.msra.mxu0 0
      %1166 = vmatprep.subr.bf16.mxu0 0
      %1167 = vmatpush2.bf16.msra.mxu0 0
      %1168 = vmatprep.mubr.bf16.mxu0 0
      %1169 = vmatmul.mubr.bf16.gmra.mxu0 %v1134
      %v1170 = vpop.f32.mrf.mxu0
      %v1171 = vadd.f32 %v1131, %v1170
      %v1172 = vpop.f32.mrf.mxu0
      %v1173 = vpop.f32.mrf.mxu0
      %v1174 = vpop.f32.mrf.mxu0
      %1175 = vdwg.mxu0
      %v1176 = vld [vmem:[%s11] sm:$0xff]
      %v1177 = vpack.c.bf16 %v1176, %v1176
      %v1178 = vld [vmem:[%s12] sm:$0xff]
      %1180 = vset.pattern.permute.xlu0 0
      %1181 = vperm.xlu0 %1180, %v1178
      %v1182 = vpop.permute.xlu0 %1181
      %v1185 = vsel %vm1012, %v1177, 0
      %1187 = vmatprep.subr.bf16.mxu0 0
      %1188 = vmatpush1.bf16.msra.mxu0 0
      %1189 = vmatprep.subr.bf16.mxu0 0
      %1190 = vmatpush1.bf16.msra.mxu0 0
      %1191 = vmatprep.subr.bf16.mxu0 0
      %1192 = vmatpush1.bf16.msra.mxu0 0
      %1193 = vmatprep.subr.bf16.mxu0 0
      %1194 = vmatpush1.bf16.msra.mxu0 0
      %1195 = vmatprep.subr.bf16.mxu0 0
      %1196 = vmatpush1.bf16.msra.mxu0 0
      %1197 = vmatprep.subr.bf16.mxu0 0
      %1198 = vmatpush1.bf16.msra.mxu0 0
      %1199 = vmatprep.subr.bf16.mxu0 0
      %1200 = vmatpush1.bf16.msra.mxu0 %v1126
      %1201 = vmatprep.subr.bf16.mxu0 0
      %1202 = vmatpush1.bf16.msra.mxu0 %v1125
      %1203 = vmatprep.subr.bf16.mxu0 0
      %1204 = vmatpush2.bf16.msra.mxu0 0
      %1205 = vmatprep.subr.bf16.mxu0 0
      %1206 = vmatpush2.bf16.msra.mxu0 0
      %1207 = vmatprep.subr.bf16.mxu0 0
      %1208 = vmatpush2.bf16.msra.mxu0 0
      %1209 = vmatprep.subr.bf16.mxu0 0
      %1210 = vmatpush2.bf16.msra.mxu0 0
      %1211 = vmatprep.subr.bf16.mxu0 0
      %1212 = vmatpush2.bf16.msra.mxu0 0
      %1213 = vmatprep.subr.bf16.mxu0 0
      %1214 = vmatpush2.bf16.msra.mxu0 0
      %1215 = vmatprep.subr.bf16.mxu0 0
      %1216 = vmatpush2.bf16.msra.mxu0 0
      %1217 = vmatprep.subr.bf16.mxu0 0
      %1218 = vmatpush2.bf16.msra.mxu0 0
      %1219 = vmatprep.mubr.bf16.mxu0 0
      %1220 = vmatmul.mubr.bf16.gmra.mxu0 %v1185
      %v1221 = vpop.f32.mrf.mxu0
      %v1222 = vadd.f32 %v1182, %v1221
      %v1223 = vpop.f32.mrf.mxu0
      %v1224 = vpop.f32.mrf.mxu0
      %v1225 = vpop.f32.mrf.mxu0
      %1226 = vdwg.mxu0
      %v1227 = vadd.f32 %v1222, 2.0
      %v1228 = vmin.f32 %v1227, 0.0
      %v1229 = vand.u32 2147483647, %v1227
      %v1230 = vsub.f32 0.0, %v1229
      %v1231 = vmul.f32 %v1230, 1.442695
      %v1232 = vpow.pop %v1231
      %v1233 = vadd.f32 %v1232, 1.0
      %v1234 = vlog2.pop %v1233
      %v1235 = vmul.f32 %v1234, 0.6931472
      %v1236 = vsub.f32 %v1228, %v1235
      %v1237 = vsel %vm682, %v1236, 0.0
      %v1238 = vmul.f32 %v1237, 1.442695
      %v1239 = vpow.pop %v1238
      %v1240 = vadd.f32 %v761, %v1171
      %v1241 = vmul.f32 %v1240, %v1239
      %1242 = vadd.xlane.f32.xlu0 %v1237
      %v1243 = vpop.xlane.xlu0 %1242
      %v1244 = vrot.slane %v1243, 4
      %v1245 = vadd.f32 %v1243, %v1244
      %v1246 = vrot.slane %v1245, 2
      %v1247 = vadd.f32 %v1245, %v1246
      %v1248 = vrot.slane %v1247, 1
      %v1249 = vadd.f32 %v1247, %v1248
      %s1250 = vtos %v1249
      %v1251 = vstv %s1250
      %v1252 = vadd.f32 %v1251, 0.0
      %s1253 = scalar_lea.vmem %s2, 8
      %v1254 = vld [vmem:[%s1253] sm:$0xff]
      %s1255 = scalar_lea.vmem %s3, 8
      %v1256 = vld [vmem:[%s1255] sm:$0xff]
      %1258 = vset.pattern.permute.xlu0 0
      %1259 = vperm.xlu0 %1258, %v1256
      %v1260 = vpop.permute.xlu0 %1259
      %v1263 = vsel %vm690, %v1254, 0
      %1265 = vmatprep.subr.mxu0 0.0
      %1266 = vmatpush1.msra.mxu0 0.0
      %1267 = vmatprep.subr.mxu0 0.0
      %1268 = vmatpush1.msra.mxu0 0.0
      %1269 = vmatprep.subr.mxu0 0.0
      %1270 = vmatpush1.msra.mxu0 0.0
      %1271 = vmatprep.subr.mxu0 0.0
      %1272 = vmatpush1.msra.mxu0 0.0
      %1273 = vmatprep.subr.mxu0 0.0
      %1274 = vmatpush1.msra.mxu0 0.0
      %1275 = vmatprep.subr.mxu0 0.0
      %1276 = vmatpush1.msra.mxu0 0.0
      %1277 = vmatprep.subr.mxu0 0.0
      %1278 = vmatpush1.msra.mxu0 0.0
      %1279 = vmatprep.subr.mxu0 0.0
      %1280 = vmatpush1.msra.mxu0 0.0
      %1281 = vmatprep.subr.mxu0 0.0
      %1282 = vmatpush1.msra.mxu0 0.0
      %1283 = vmatprep.subr.mxu0 0.0
      %1284 = vmatpush1.msra.mxu0 0.0
      %1285 = vmatprep.subr.mxu0 0.0
      %1286 = vmatpush1.msra.mxu0 0.0
      %1287 = vmatprep.subr.mxu0 0.0
      %1288 = vmatpush1.msra.mxu0 0.0
      %1289 = vmatprep.subr.mxu0 0.0
      %1290 = vmatpush1.msra.mxu0 0.0
      %1291 = vmatprep.subr.mxu0 0.0
      %1292 = vmatpush1.msra.mxu0 0.0
      %1293 = vmatprep.subr.mxu0 0.0
      %1294 = vmatpush1.msra.mxu0 0.0
      %1295 = vmatprep.subr.mxu0 0.0
      %1296 = vmatpush1.msra.mxu0 %v1241
      %1297 = vmatprep.subr.mxu0 0.0
      %1298 = vmatpush2.msra.mxu0 0.0
      %1299 = vmatprep.subr.mxu0 0.0
      %1300 = vmatpush2.msra.mxu0 0.0
      %1301 = vmatprep.subr.mxu0 0.0
      %1302 = vmatpush2.msra.mxu0 0.0
      %1303 = vmatprep.subr.mxu0 0.0
      %1304 = vmatpush2.msra.mxu0 0.0
      %1305 = vmatprep.subr.mxu0 0.0
      %1306 = vmatpush2.msra.mxu0 0.0
      %1307 = vmatprep.subr.mxu0 0.0
      %1308 = vmatpush2.msra.mxu0 0.0
      %1309 = vmatprep.subr.mxu0 0.0
      %1310 = vmatpush2.msra.mxu0 0.0
      %1311 = vmatprep.subr.mxu0 0.0
      %1312 = vmatpush2.msra.mxu0 0.0
      %1313 = vmatprep.subr.mxu0 0.0
      %1314 = vmatpush2.msra.mxu0 0.0
      %1315 = vmatprep.subr.mxu0 0.0
      %1316 = vmatpush2.msra.mxu0 0.0
      %1317 = vmatprep.subr.mxu0 0.0
      %1318 = vmatpush2.msra.mxu0 0.0
      %1319 = vmatprep.subr.mxu0 0.0
      %1320 = vmatpush2.msra.mxu0 0.0
      %1321 = vmatprep.subr.mxu0 0.0
      %1322 = vmatpush2.msra.mxu0 0.0
      %1323 = vmatprep.subr.mxu0 0.0
      %1324 = vmatpush2.msra.mxu0 0.0
      %1325 = vmatprep.subr.mxu0 0.0
      %1326 = vmatpush2.msra.mxu0 0.0
      %1327 = vmatprep.subr.mxu0 0.0
      %1328 = vmatpush2.msra.mxu0 0.0
      %1329 = vmatprep.mubr.f32.mxu0 0.0
      %1330 = vmatmul.mubr.f32.gmra.mxu0 %v1263
      %v1331 = vpop.f32.mrf.mxu0
      %v1332 = vadd.f32 %v1260, %v1331
      %v1333 = vpop.f32.mrf.mxu0
      %1334 = vdwg.mxu0
      %s1335 = scalar_lea.vmem %s4, 32
      %v1336 = vld [vmem:[%s1335] sm:$0xff]
      %v1337 = vld [vmem:[%s1335 + $0x8] sm:$0xff]
      %v1338 = vld [vmem:[%s1335 + $0x10] sm:$0xff]
      %v1339 = vld [vmem:[%s1335 + $0x18] sm:$0xff]
      %v1340 = vpack.c.bf16 %v1337, %v1336
      %v1341 = vpack.c.bf16 %v1339, %v1338
      %v1342 = vpack.c.bf16 %v1332, %v1332
      %s1343 = scalar_lea.vmem %s5, 32
      %v1344 = vld [vmem:[%s1343] sm:$0xff]
      %v1345 = vld [vmem:[%s1343 + $0x8] sm:$0xff]
      %v1346 = vld [vmem:[%s1343 + $0x10] sm:$0xff]
      %v1347 = vld [vmem:[%s1343 + $0x18] sm:$0xff]
      %v1348 = vpack.c.bf16 %v1345, %v1344
      %v1349 = vpack.c.bf16 %v1347, %v1346
      %v1351 = vsel %vm778, %v1348, 0
      %v1354 = vsel %vm778, %v1349, 0
      %1356 = vmatprep.subr.bf16.mxu0 0
      %1357 = vmatpush1.bf16.msra.mxu0 0
      %1358 = vmatprep.subr.bf16.mxu0 0
      %1359 = vmatpush1.bf16.msra.mxu0 0
      %1360 = vmatprep.subr.bf16.mxu0 0
      %1361 = vmatpush1.bf16.msra.mxu0 0
      %1362 = vmatprep.subr.bf16.mxu0 0
      %1363 = vmatpush1.bf16.msra.mxu0 0
      %1364 = vmatprep.subr.bf16.mxu0 0
      %1365 = vmatpush1.bf16.msra.mxu0 0
      %1366 = vmatprep.subr.bf16.mxu0 0
      %1367 = vmatpush1.bf16.msra.mxu0 0
      %1368 = vmatprep.subr.bf16.mxu0 0
      %1369 = vmatpush1.bf16.msra.mxu0 0
      %1370 = vmatprep.subr.bf16.mxu0 0
      %1371 = vmatpush1.bf16.msra.mxu0 %v787
      %1372 = vmatprep.subr.bf16.mxu0 0
      %1373 = vmatpush2.bf16.msra.mxu0 0
      %1374 = vmatprep.subr.bf16.mxu0 0
      %1375 = vmatpush2.bf16.msra.mxu0 0
      %1376 = vmatprep.subr.bf16.mxu0 0
      %1377 = vmatpush2.bf16.msra.mxu0 0
      %1378 = vmatprep.subr.bf16.mxu0 0
      %1379 = vmatpush2.bf16.msra.mxu0 0
      %1380 = vmatprep.subr.bf16.mxu0 0
      %1381 = vmatpush2.bf16.msra.mxu0 0
      %1382 = vmatprep.subr.bf16.mxu0 0
      %1383 = vmatpush2.bf16.msra.mxu0 0
      %1384 = vmatprep.subr.bf16.mxu0 0
      %1385 = vmatpush2.bf16.msra.mxu0 0
      %1386 = vmatprep.subr.bf16.mxu0 0
      %1387 = vmatpush2.bf16.msra.mxu0 0
      %1388 = vmatprep.mubr.bf16.mxu0 0
      %1389 = vmatmul.mubr.bf16.gmra.mxu0 %v1351
      %v1390 = vpop.f32.mrf.mxu0
      %v1391 = vadd.f32 0.0, %v1390
      %v1392 = vpop.f32.mrf.mxu0
      %v1393 = vpop.f32.mrf.mxu0
      %v1394 = vadd.f32 0.0, %v1393
      %v1395 = vpop.f32.mrf.mxu0
      %1396 = vmatprep.mubr.bf16.mxu0 0
      %1397 = vmatmul.mubr.bf16.gmra.mxu0 %v1354
      %v1398 = vpop.f32.mrf.mxu0
      %v1399 = vadd.f32 0.0, %v1398
      %v1400 = vpop.f32.mrf.mxu0
      %v1401 = vpop.f32.mrf.mxu0
      %v1402 = vadd.f32 0.0, %v1401
      %v1403 = vpop.f32.mrf.mxu0
      %1404 = vdwg.mxu0
      %v1406 = vsel %vm690, %v1340, 0
      %v1409 = vsel %vm690, %v1341, 0
      %v1412 = vsel %vm844, %v1342, 0
      %1414 = vmatprep.subr.bf16.mxu0 0
      %1415 = vmatpush1.bf16.msra.mxu0 0
      %1416 = vmatprep.subr.bf16.mxu0 0
      %1417 = vmatpush1.bf16.msra.mxu0 0
      %1418 = vmatprep.subr.bf16.mxu0 0
      %1419 = vmatpush1.bf16.msra.mxu0 0
      %1420 = vmatprep.subr.bf16.mxu0 0
      %1421 = vmatpush1.bf16.msra.mxu0 0
      %1422 = vmatprep.subr.bf16.mxu0 0
      %1423 = vmatpush1.bf16.msra.mxu0 0
      %1424 = vmatprep.subr.bf16.mxu0 0
      %1425 = vmatpush1.bf16.msra.mxu0 0
      %1426 = vmatprep.subr.bf16.mxu0 0
      %1427 = vmatpush1.bf16.msra.mxu0 0
      %1428 = vmatprep.subr.bf16.mxu0 0
      %1429 = vmatpush1.bf16.msra.mxu0 %v1412
      %1430 = vmatprep.subr.bf16.mxu0 0
      %1431 = vmatpush2.bf16.msra.mxu0 0
      %1432 = vmatprep.subr.bf16.mxu0 0
      %1433 = vmatpush2.bf16.msra.mxu0 0
      %1434 = vmatprep.subr.bf16.mxu0 0
      %1435 = vmatpush2.bf16.msra.mxu0 0
      %1436 = vmatprep.subr.bf16.mxu0 0
      %1437 = vmatpush2.bf16.msra.mxu0 0
      %1438 = vmatprep.subr.bf16.mxu0 0
      %1439 = vmatpush2.bf16.msra.mxu0 0
      %1440 = vmatprep.subr.bf16.mxu0 0
      %1441 = vmatpush2.bf16.msra.mxu0 0
      %1442 = vmatprep.subr.bf16.mxu0 0
      %1443 = vmatpush2.bf16.msra.mxu0 0
      %1444 = vmatprep.subr.bf16.mxu0 0
      %1445 = vmatpush2.bf16.msra.mxu0 0
      %1446 = vmatprep.mubr.bf16.mxu0 0
      %1447 = vmatmul.mubr.bf16.gmra.mxu0 %v1406
      %v1448 = vpop.f32.mrf.mxu0
      %v1449 = vadd.f32 %v1391, %v1448
      %v1450 = vpop.f32.mrf.mxu0
      %v1451 = vpop.f32.mrf.mxu0
      %v1452 = vadd.f32 %v1394, %v1451
      %v1453 = vpop.f32.mrf.mxu0
      %1454 = vmatprep.mubr.bf16.mxu0 0
      %1455 = vmatmul.mubr.bf16.gmra.mxu0 %v1409
      %v1456 = vpop.f32.mrf.mxu0
      %v1457 = vadd.f32 %v1399, %v1456
      %v1458 = vpop.f32.mrf.mxu0
      %v1459 = vpop.f32.mrf.mxu0
      %v1460 = vadd.f32 %v1402, %v1459
      %v1461 = vpop.f32.mrf.mxu0
      %1462 = vdwg.mxu0
      %s1463 = scalar_lea.vmem %s6, 32
      %v1464 = vld [vmem:[%s1463] sm:$0xff]
      %v1465 = vld [vmem:[%s1463 + $0x8] sm:$0xff]
      %v1466 = vld [vmem:[%s1463 + $0x10] sm:$0xff]
      %v1467 = vld [vmem:[%s1463 + $0x18] sm:$0xff]
      %1469 = vset.pattern.permute.xlu0 0
      %1470 = vperm.xlu0 %1469, %v1464
      %v1471 = vpop.permute.xlu0 %1470
      %1474 = vset.pattern.permute.xlu0 0
      %1475 = vperm.xlu0 %1474, %v1465
      %v1476 = vpop.permute.xlu0 %1475
      %1479 = vset.pattern.permute.xlu0 0
      %1480 = vperm.xlu0 %1479, %v1466
      %v1481 = vpop.permute.xlu0 %1480
      %1484 = vset.pattern.permute.xlu0 0
      %1485 = vperm.xlu0 %1484, %v1467
      %v1486 = vpop.permute.xlu0 %1485
      %v1488 = vadd.f32 %v1449, %v1471
      %v1489 = vadd.f32 %v1452, %v1476
      %v1490 = vadd.f32 %v1457, %v1481
      %v1491 = vadd.f32 %v1460, %v1486
      %v1492 = vpack.c.bf16 %v1489, %v1488
      %v1493 = vpack.c.bf16 %v1491, %v1490
      %1494 = vmatprep.subr.bf16.mxu0 0
      %1495 = vmatpush1.bf16.msra.mxu0 %v679
      %1496 = vmatprep.subr.bf16.mxu0 0
      %1497 = vmatpush1.bf16.msra.mxu0 %v678
      %1498 = vmatprep.subr.bf16.mxu0 0
      %1499 = vmatpush1.bf16.msra.mxu0 %v677
      %1500 = vmatprep.subr.bf16.mxu0 0
      %1501 = vmatpush1.bf16.msra.mxu0 %v676
      %1502 = vmatprep.subr.bf16.mxu0 0
      %1503 = vmatpush1.bf16.msra.mxu0 %v675
      %1504 = vmatprep.subr.bf16.mxu0 0
      %1505 = vmatpush1.bf16.msra.mxu0 %v674
      %1506 = vmatprep.subr.bf16.mxu0 0
      %1507 = vmatpush1.bf16.msra.mxu0 %v673
      %1508 = vmatprep.subr.bf16.mxu0 0
      %1509 = vmatpush1.bf16.msra.mxu0 %v672
      %1510 = vmatprep.subr.bf16.mxu0 0
      %1511 = vmatpush2.bf16.msra.mxu0 0
      %1512 = vmatprep.subr.bf16.mxu0 0
      %1513 = vmatpush2.bf16.msra.mxu0 0
      %1514 = vmatprep.subr.bf16.mxu0 0
      %1515 = vmatpush2.bf16.msra.mxu0 0
      %1516 = vmatprep.subr.bf16.mxu0 0
      %1517 = vmatpush2.bf16.msra.mxu0 0
      %1518 = vmatprep.subr.bf16.mxu0 0
      %1519 = vmatpush2.bf16.msra.mxu0 0
      %1520 = vmatprep.subr.bf16.mxu0 0
      %1521 = vmatpush2.bf16.msra.mxu0 0
      %1522 = vmatprep.subr.bf16.mxu0 0
      %1523 = vmatpush2.bf16.msra.mxu0 0
      %1524 = vmatprep.subr.bf16.mxu0 0
      %1525 = vmatpush2.bf16.msra.mxu0 0
      %1526 = vmatprep.mubr.bf16.mxu0 0
      %1527 = vmatmul.mubr.bf16.gmra.mxu0 %v1492
      %v1528 = vpop.f32.mrf.mxu0
      %v1529 = vadd.f32 0.0, %v1528
      %v1530 = vpop.f32.mrf.mxu0
      %v1531 = vpop.f32.mrf.mxu0
      %v1532 = vadd.f32 0.0, %v1531
      %v1533 = vpop.f32.mrf.mxu0
      %1534 = vmatprep.mubr.bf16.mxu0 0
      %1535 = vmatmul.mubr.bf16.gmra.mxu0 %v1493
      %v1536 = vpop.f32.mrf.mxu0
      %v1537 = vadd.f32 0.0, %v1536
      %v1538 = vpop.f32.mrf.mxu0
      %v1539 = vpop.f32.mrf.mxu0
      %v1540 = vadd.f32 0.0, %v1539
      %v1541 = vpop.f32.mrf.mxu0
      %1542 = vdwg.mxu0
      %v1543 = vmax.f32 %v1529, 0.0
      %v1544 = vmax.f32 %v1532, 0.0
      %v1545 = vmax.f32 %v1537, 0.0
      %v1546 = vmax.f32 %v1540, 0.0
      %s1547 = scalar_lea.vmem %s7, 32
      %v1548 = vld [vmem:[%s1547] sm:$0xff]
      %v1549 = vld [vmem:[%s1547 + $0x8] sm:$0xff]
      %v1550 = vld [vmem:[%s1547 + $0x10] sm:$0xff]
      %v1551 = vld [vmem:[%s1547 + $0x18] sm:$0xff]
      %v1552 = vpack.c.bf16 %v1549, %v1548
      %v1553 = vpack.c.bf16 %v1551, %v1550
      %v1554 = vpack.c.bf16 %v1544, %v1543
      %v1555 = vpack.c.bf16 %v1546, %v1545
      %s1556 = scalar_lea.vmem %s8, 32
      %v1557 = vld [vmem:[%s1556] sm:$0xff]
      %v1558 = vld [vmem:[%s1556 + $0x8] sm:$0xff]
      %v1559 = vld [vmem:[%s1556 + $0x10] sm:$0xff]
      %v1560 = vld [vmem:[%s1556 + $0x18] sm:$0xff]
      %1562 = vset.pattern.permute.xlu0 0
      %1563 = vperm.xlu0 %1562, %v1557
      %v1564 = vpop.permute.xlu0 %1563
      %1567 = vset.pattern.permute.xlu0 0
      %1568 = vperm.xlu0 %1567, %v1558
      %v1569 = vpop.permute.xlu0 %1568
      %1572 = vset.pattern.permute.xlu0 0
      %1573 = vperm.xlu0 %1572, %v1559
      %v1574 = vpop.permute.xlu0 %1573
      %1577 = vset.pattern.permute.xlu0 0
      %1578 = vperm.xlu0 %1577, %v1560
      %v1579 = vpop.permute.xlu0 %1578
      %v1582 = vsel %vm1012, %v1552, 0
      %v1585 = vsel %vm1012, %v1553, 0
      %1587 = vmatprep.subr.bf16.mxu0 0
      %1588 = vmatpush1.bf16.msra.mxu0 0
      %1589 = vmatprep.subr.bf16.mxu0 0
      %1590 = vmatpush1.bf16.msra.mxu0 0
      %1591 = vmatprep.subr.bf16.mxu0 0
      %1592 = vmatpush1.bf16.msra.mxu0 0
      %1593 = vmatprep.subr.bf16.mxu0 0
      %1594 = vmatpush1.bf16.msra.mxu0 0
      %1595 = vmatprep.subr.bf16.mxu0 0
      %1596 = vmatpush1.bf16.msra.mxu0 0
      %1597 = vmatprep.subr.bf16.mxu0 0
      %1598 = vmatpush1.bf16.msra.mxu0 0
      %1599 = vmatprep.subr.bf16.mxu0 0
      %1600 = vmatpush1.bf16.msra.mxu0 %v1555
      %1601 = vmatprep.subr.bf16.mxu0 0
      %1602 = vmatpush1.bf16.msra.mxu0 %v1554
      %1603 = vmatprep.subr.bf16.mxu0 0
      %1604 = vmatpush2.bf16.msra.mxu0 0
      %1605 = vmatprep.subr.bf16.mxu0 0
      %1606 = vmatpush2.bf16.msra.mxu0 0
      %1607 = vmatprep.subr.bf16.mxu0 0
      %1608 = vmatpush2.bf16.msra.mxu0 0
      %1609 = vmatprep.subr.bf16.mxu0 0
      %1610 = vmatpush2.bf16.msra.mxu0 0
      %1611 = vmatprep.subr.bf16.mxu0 0
      %1612 = vmatpush2.bf16.msra.mxu0 0
      %1613 = vmatprep.subr.bf16.mxu0 0
      %1614 = vmatpush2.bf16.msra.mxu0 0
      %1615 = vmatprep.subr.bf16.mxu0 0
      %1616 = vmatpush2.bf16.msra.mxu0 0
      %1617 = vmatprep.subr.bf16.mxu0 0
      %1618 = vmatpush2.bf16.msra.mxu0 0
      %1619 = vmatprep.mubr.bf16.mxu0 0
      %1620 = vmatmul.mubr.bf16.gmra.mxu0 %v1582
      %v1621 = vpop.f32.mrf.mxu0
      %v1622 = vadd.f32 %v1564, %v1621
      %v1623 = vpop.f32.mrf.mxu0
      %v1624 = vpop.f32.mrf.mxu0
      %v1625 = vadd.f32 %v1569, %v1624
      %v1626 = vpop.f32.mrf.mxu0
      %1627 = vmatprep.mubr.bf16.mxu0 0
      %1628 = vmatmul.mubr.bf16.gmra.mxu0 %v1585
      %v1629 = vpop.f32.mrf.mxu0
      %v1630 = vadd.f32 %v1574, %v1629
      %v1631 = vpop.f32.mrf.mxu0
      %v1632 = vpop.f32.mrf.mxu0
      %v1633 = vadd.f32 %v1579, %v1632
      %v1634 = vpop.f32.mrf.mxu0
      %1635 = vdwg.mxu0
      %v1636 = vpack.c.bf16 %v1625, %v1622
      %v1637 = vpack.c.bf16 %v1633, %v1630
      %1638 = vmatprep.subr.bf16.mxu0 0
      %1639 = vmatpush1.bf16.msra.mxu0 %v679
      %1640 = vmatprep.subr.bf16.mxu0 0
      %1641 = vmatpush1.bf16.msra.mxu0 %v678
      %1642 = vmatprep.subr.bf16.mxu0 0
      %1643 = vmatpush1.bf16.msra.mxu0 %v677
      %1644 = vmatprep.subr.bf16.mxu0 0
      %1645 = vmatpush1.bf16.msra.mxu0 %v676
      %1646 = vmatprep.subr.bf16.mxu0 0
      %1647 = vmatpush1.bf16.msra.mxu0 %v675
      %1648 = vmatprep.subr.bf16.mxu0 0
      %1649 = vmatpush1.bf16.msra.mxu0 %v674
      %1650 = vmatprep.subr.bf16.mxu0 0
      %1651 = vmatpush1.bf16.msra.mxu0 %v673
      %1652 = vmatprep.subr.bf16.mxu0 0
      %1653 = vmatpush1.bf16.msra.mxu0 %v672
      %1654 = vmatprep.subr.bf16.mxu0 0
      %1655 = vmatpush2.bf16.msra.mxu0 0
      %1656 = vmatprep.subr.bf16.mxu0 0
      %1657 = vmatpush2.bf16.msra.mxu0 0
      %1658 = vmatprep.subr.bf16.mxu0 0
      %1659 = vmatpush2.bf16.msra.mxu0 0
      %1660 = vmatprep.subr.bf16.mxu0 0
      %1661 = vmatpush2.bf16.msra.mxu0 0
      %1662 = vmatprep.subr.bf16.mxu0 0
      %1663 = vmatpush2.bf16.msra.mxu0 0
      %1664 = vmatprep.subr.bf16.mxu0 0
      %1665 = vmatpush2.bf16.msra.mxu0 0
      %1666 = vmatprep.subr.bf16.mxu0 0
      %1667 = vmatpush2.bf16.msra.mxu0 0
      %1668 = vmatprep.subr.bf16.mxu0 0
      %1669 = vmatpush2.bf16.msra.mxu0 0
      %1670 = vmatprep.mubr.bf16.mxu0 0
      %1671 = vmatmul.mubr.bf16.gmra.mxu0 %v1636
      %v1672 = vpop.f32.mrf.mxu0
      %v1673 = vadd.f32 0.0, %v1672
      %v1674 = vpop.f32.mrf.mxu0
      %v1675 = vpop.f32.mrf.mxu0
      %v1676 = vadd.f32 0.0, %v1675
      %v1677 = vpop.f32.mrf.mxu0
      %1678 = vmatprep.mubr.bf16.mxu0 0
      %1679 = vmatmul.mubr.bf16.gmra.mxu0 %v1637
      %v1680 = vpop.f32.mrf.mxu0
      %v1681 = vadd.f32 0.0, %v1680
      %v1682 = vpop.f32.mrf.mxu0
      %v1683 = vpop.f32.mrf.mxu0
      %v1684 = vadd.f32 0.0, %v1683
      %v1685 = vpop.f32.mrf.mxu0
      %1686 = vdwg.mxu0
      %v1687 = vmax.f32 %v1673, 0.0
      %v1688 = vmax.f32 %v1676, 0.0
      %v1689 = vmax.f32 %v1681, 0.0
      %v1690 = vmax.f32 %v1684, 0.0
      %s1691 = scalar_lea.vmem %s9, 8
      %v1692 = vld [vmem:[%s1691] sm:$0xff]
      %v1693 = vpack.c.bf16 %v1692, %v1692
      %v1694 = vpack.c.bf16 %v1688, %v1687
      %v1695 = vpack.c.bf16 %v1690, %v1689
      %s1696 = scalar_lea.vmem %s10, 8
      %v1697 = vld [vmem:[%s1696] sm:$0xff]
      %1699 = vset.pattern.permute.xlu0 0
      %1700 = vperm.xlu0 %1699, %v1697
      %v1701 = vpop.permute.xlu0 %1700
      %v1704 = vsel %vm1012, %v1693, 0
      %1706 = vmatprep.subr.bf16.mxu0 0
      %1707 = vmatpush1.bf16.msra.mxu0 0
      %1708 = vmatprep.subr.bf16.mxu0 0
      %1709 = vmatpush1.bf16.msra.mxu0 0
      %1710 = vmatprep.subr.bf16.mxu0 0
      %1711 = vmatpush1.bf16.msra.mxu0 0
      %1712 = vmatprep.subr.bf16.mxu0 0
      %1713 = vmatpush1.bf16.msra.mxu0 0
      %1714 = vmatprep.subr.bf16.mxu0 0
      %1715 = vmatpush1.bf16.msra.mxu0 0
      %1716 = vmatprep.subr.bf16.mxu0 0
      %1717 = vmatpush1.bf16.msra.mxu0 0
      %1718 = vmatprep.subr.bf16.mxu0 0
      %1719 = vmatpush1.bf16.msra.mxu0 %v1695
      %1720 = vmatprep.subr.bf16.mxu0 0
      %1721 = vmatpush1.bf16.msra.mxu0 %v1694
      %1722 = vmatprep.subr.bf16.mxu0 0
      %1723 = vmatpush2.bf16.msra.mxu0 0
      %1724 = vmatprep.subr.bf16.mxu0 0
      %1725 = vmatpush2.bf16.msra.mxu0 0
      %1726 = vmatprep.subr.bf16.mxu0 0
      %1727 = vmatpush2.bf16.msra.mxu0 0
      %1728 = vmatprep.subr.bf16.mxu0 0
      %1729 = vmatpush2.bf16.msra.mxu0 0
      %1730 = vmatprep.subr.bf16.mxu0 0
      %1731 = vmatpush2.bf16.msra.mxu0 0
      %1732 = vmatprep.subr.bf16.mxu0 0
      %1733 = vmatpush2.bf16.msra.mxu0 0
      %1734 = vmatprep.subr.bf16.mxu0 0
      %1735 = vmatpush2.bf16.msra.mxu0 0
      %1736 = vmatprep.subr.bf16.mxu0 0
      %1737 = vmatpush2.bf16.msra.mxu0 0
      %1738 = vmatprep.mubr.bf16.mxu0 0
      %1739 = vmatmul.mubr.bf16.gmra.mxu0 %v1704
      %v1740 = vpop.f32.mrf.mxu0
      %v1741 = vadd.f32 %v1701, %v1740
      %v1742 = vpop.f32.mrf.mxu0
      %v1743 = vpop.f32.mrf.mxu0
      %v1744 = vpop.f32.mrf.mxu0
      %1745 = vdwg.mxu0
      %s1746 = scalar_lea.vmem %s11, 8
      %v1747 = vld [vmem:[%s1746] sm:$0xff]
      %v1748 = vpack.c.bf16 %v1747, %v1747
      %s1749 = scalar_lea.vmem %s12, 8
      %v1750 = vld [vmem:[%s1749] sm:$0xff]
      %1752 = vset.pattern.permute.xlu0 0
      %1753 = vperm.xlu0 %1752, %v1750
      %v1754 = vpop.permute.xlu0 %1753
      %v1757 = vsel %vm1012, %v1748, 0
      %1759 = vmatprep.subr.bf16.mxu0 0
      %1760 = vmatpush1.bf16.msra.mxu0 0
      %1761 = vmatprep.subr.bf16.mxu0 0
      %1762 = vmatpush1.bf16.msra.mxu0 0
      %1763 = vmatprep.subr.bf16.mxu0 0
      %1764 = vmatpush1.bf16.msra.mxu0 0
      %1765 = vmatprep.subr.bf16.mxu0 0
      %1766 = vmatpush1.bf16.msra.mxu0 0
      %1767 = vmatprep.subr.bf16.mxu0 0
      %1768 = vmatpush1.bf16.msra.mxu0 0
      %1769 = vmatprep.subr.bf16.mxu0 0
      %1770 = vmatpush1.bf16.msra.mxu0 0
      %1771 = vmatprep.subr.bf16.mxu0 0
      %1772 = vmatpush1.bf16.msra.mxu0 %v1695
      %1773 = vmatprep.subr.bf16.mxu0 0
      %1774 = vmatpush1.bf16.msra.mxu0 %v1694
      %1775 = vmatprep.subr.bf16.mxu0 0
      %1776 = vmatpush2.bf16.msra.mxu0 0
      %1777 = vmatprep.subr.bf16.mxu0 0
      %1778 = vmatpush2.bf16.msra.mxu0 0
      %1779 = vmatprep.subr.bf16.mxu0 0
      %1780 = vmatpush2.bf16.msra.mxu0 0
      %1781 = vmatprep.subr.bf16.mxu0 0
      %1782 = vmatpush2.bf16.msra.mxu0 0
      %1783 = vmatprep.subr.bf16.mxu0 0
      %1784 = vmatpush2.bf16.msra.mxu0 0
      %1785 = vmatprep.subr.bf16.mxu0 0
      %1786 = vmatpush2.bf16.msra.mxu0 0
      %1787 = vmatprep.subr.bf16.mxu0 0
      %1788 = vmatpush2.bf16.msra.mxu0 0
      %1789 = vmatprep.subr.bf16.mxu0 0
      %1790 = vmatpush2.bf16.msra.mxu0 0
      %1791 = vmatprep.mubr.bf16.mxu0 0
      %1792 = vmatmul.mubr.bf16.gmra.mxu0 %v1757
      %v1793 = vpop.f32.mrf.mxu0
      %v1794 = vadd.f32 %v1754, %v1793
      %v1795 = vpop.f32.mrf.mxu0
      %v1796 = vpop.f32.mrf.mxu0
      %v1797 = vpop.f32.mrf.mxu0
      %1798 = vdwg.mxu0
      %v1799 = vadd.f32 %v1794, 2.0
      %v1800 = vmin.f32 %v1799, 0.0
      %v1801 = vand.u32 2147483647, %v1799
      %v1802 = vsub.f32 0.0, %v1801
      %v1803 = vmul.f32 %v1802, 1.442695
      %v1804 = vpow.pop %v1803
      %v1805 = vadd.f32 %v1804, 1.0
      %v1806 = vlog2.pop %v1805
      %v1807 = vmul.f32 %v1806, 0.6931472
      %v1808 = vsub.f32 %v1800, %v1807
      %v1809 = vsel %vm682, %v1808, 0.0
      %v1810 = vmul.f32 %v1809, 1.442695
      %v1811 = vpow.pop %v1810
      %v1812 = vadd.f32 %v1332, %v1741
      %v1813 = vmul.f32 %v1812, %v1811
      %1814 = vadd.xlane.f32.xlu0 %v1809
      %v1815 = vpop.xlane.xlu0 %1814
      %v1816 = vrot.slane %v1815, 4
      %v1817 = vadd.f32 %v1815, %v1816
      %v1818 = vrot.slane %v1817, 2
      %v1819 = vadd.f32 %v1817, %v1818
      %v1820 = vrot.slane %v1819, 1
      %v1821 = vadd.f32 %v1819, %v1820
      %s1822 = vtos %v1821
      %v1823 = vstv %s1822
      %v1824 = vadd.f32 %v1252, %v1823
      %v1825 = vld [vmem:[%s14] sm:$0xff]
      %v1826 = vld [vmem:[%s14 + $0x8] sm:$0xff]
      %v1827 = vld [vmem:[%s14 + $0x10] sm:$0xff]
      %v1828 = vld [vmem:[%s14 + $0x18] sm:$0xff]
      %v1829 = vld [vmem:[%s14 + $0x20] sm:$0xff]
      %v1830 = vld [vmem:[%s14 + $0x28] sm:$0xff]
      %v1831 = vld [vmem:[%s14 + $0x30] sm:$0xff]
      %v1832 = vld [vmem:[%s14 + $0x38] sm:$0xff]
      %v1833 = vld [vmem:[%s14 + $0x40] sm:$0xff]
      %v1834 = vld [vmem:[%s14 + $0x48] sm:$0xff]
      %v1835 = vld [vmem:[%s14 + $0x50] sm:$0xff]
      %v1836 = vld [vmem:[%s14 + $0x58] sm:$0xff]
      %v1837 = vld [vmem:[%s14 + $0x60] sm:$0xff]
      %v1838 = vld [vmem:[%s14 + $0x68] sm:$0xff]
      %v1839 = vld [vmem:[%s14 + $0x70] sm:$0xff]
      %v1840 = vld [vmem:[%s14 + $0x78] sm:$0xff]
      %1841 = vmatprep.subr.mxu0 0.0
      %1842 = vmatpush1.msra.mxu0 %v1840
      %1843 = vmatprep.subr.mxu0 0.0
      %1844 = vmatpush1.msra.mxu0 %v1839
      %1845 = vmatprep.subr.mxu0 0.0
      %1846 = vmatpush1.msra.mxu0 %v1838
      %1847 = vmatprep.subr.mxu0 0.0
      %1848 = vmatpush1.msra.mxu0 %v1837
      %1849 = vmatprep.subr.mxu0 0.0
      %1850 = vmatpush1.msra.mxu0 %v1836
      %1851 = vmatprep.subr.mxu0 0.0
      %1852 = vmatpush1.msra.mxu0 %v1835
      %1853 = vmatprep.subr.mxu0 0.0
      %1854 = vmatpush1.msra.mxu0 %v1834
      %1855 = vmatprep.subr.mxu0 0.0
      %1856 = vmatpush1.msra.mxu0 %v1833
      %1857 = vmatprep.subr.mxu0 0.0
      %1858 = vmatpush1.msra.mxu0 %v1832
      %1859 = vmatprep.subr.mxu0 0.0
      %1860 = vmatpush1.msra.mxu0 %v1831
      %1861 = vmatprep.subr.mxu0 0.0
      %1862 = vmatpush1.msra.mxu0 %v1830
      %1863 = vmatprep.subr.mxu0 0.0
      %1864 = vmatpush1.msra.mxu0 %v1829
      %1865 = vmatprep.subr.mxu0 0.0
      %1866 = vmatpush1.msra.mxu0 %v1828
      %1867 = vmatprep.subr.mxu0 0.0
      %1868 = vmatpush1.msra.mxu0 %v1827
      %1869 = vmatprep.subr.mxu0 0.0
      %1870 = vmatpush1.msra.mxu0 %v1826
      %1871 = vmatprep.subr.mxu0 0.0
      %1872 = vmatpush1.msra.mxu0 %v1825
      %1873 = vmatprep.subr.mxu0 0.0
      %1874 = vmatpush2.msra.mxu0 0.0
      %1875 = vmatprep.subr.mxu0 0.0
      %1876 = vmatpush2.msra.mxu0 0.0
      %1877 = vmatprep.subr.mxu0 0.0
      %1878 = vmatpush2.msra.mxu0 0.0
      %1879 = vmatprep.subr.mxu0 0.0
      %1880 = vmatpush2.msra.mxu0 0.0
      %1881 = vmatprep.subr.mxu0 0.0
      %1882 = vmatpush2.msra.mxu0 0.0
      %1883 = vmatprep.subr.mxu0 0.0
      %1884 = vmatpush2.msra.mxu0 0.0
      %1885 = vmatprep.subr.mxu0 0.0
      %1886 = vmatpush2.msra.mxu0 0.0
      %1887 = vmatprep.subr.mxu0 0.0
      %1888 = vmatpush2.msra.mxu0 0.0
      %1889 = vmatprep.subr.mxu0 0.0
      %1890 = vmatpush2.msra.mxu0 0.0
      %1891 = vmatprep.subr.mxu0 0.0
      %1892 = vmatpush2.msra.mxu0 0.0
      %1893 = vmatprep.subr.mxu0 0.0
      %1894 = vmatpush2.msra.mxu0 0.0
      %1895 = vmatprep.subr.mxu0 0.0
      %1896 = vmatpush2.msra.mxu0 0.0
      %1897 = vmatprep.subr.mxu0 0.0
      %1898 = vmatpush2.msra.mxu0 0.0
      %1899 = vmatprep.subr.mxu0 0.0
      %1900 = vmatpush2.msra.mxu0 0.0
      %1901 = vmatprep.subr.mxu0 0.0
      %1902 = vmatpush2.msra.mxu0 0.0
      %1903 = vmatprep.subr.mxu0 0.0
      %1904 = vmatpush2.msra.mxu0 0.0
      %1905 = vmatprep.mubr.f32.mxu0 0.0
      %1906 = vmatmul.mubr.f32.gmra.mxu0 %v1813
      %v1907 = vpop.f32.mrf.mxu0
      %v1908 = vadd.f32 0.0, %v1907
      %v1909 = vpop.f32.mrf.mxu0
      %1910 = vdwg.mxu0
      %v1911 = vld [vmem:[%s15] sm:$0xff]
      %v1912 = vld [vmem:[%s16] sm:$0xff]
      %s1913 = scalar_lea.vmem %s14, 128
      %v1914 = vld [vmem:[%s1913] sm:$0xff]
      %v1915 = vld [vmem:[%s1913 + $0x8] sm:$0xff]
      %v1916 = vld [vmem:[%s1913 + $0x10] sm:$0xff]
      %v1917 = vld [vmem:[%s1913 + $0x18] sm:$0xff]
      %v1918 = vld [vmem:[%s1913 + $0x20] sm:$0xff]
      %v1919 = vld [vmem:[%s1913 + $0x28] sm:$0xff]
      %v1920 = vld [vmem:[%s1913 + $0x30] sm:$0xff]
      %v1921 = vld [vmem:[%s1913 + $0x38] sm:$0xff]
      %v1922 = vld [vmem:[%s1913 + $0x40] sm:$0xff]
      %v1923 = vld [vmem:[%s1913 + $0x48] sm:$0xff]
      %v1924 = vld [vmem:[%s1913 + $0x50] sm:$0xff]
      %v1925 = vld [vmem:[%s1913 + $0x58] sm:$0xff]
      %v1926 = vld [vmem:[%s1913 + $0x60] sm:$0xff]
      %v1927 = vld [vmem:[%s1913 + $0x68] sm:$0xff]
      %v1928 = vld [vmem:[%s1913 + $0x70] sm:$0xff]
      %v1929 = vld [vmem:[%s1913 + $0x78] sm:$0xff]
      %1930 = vmatprep.subr.mxu0 0.0
      %1931 = vmatpush1.msra.mxu0 %v1929
      %1932 = vmatprep.subr.mxu0 0.0
      %1933 = vmatpush1.msra.mxu0 %v1928
      %1934 = vmatprep.subr.mxu0 0.0
      %1935 = vmatpush1.msra.mxu0 %v1927
      %1936 = vmatprep.subr.mxu0 0.0
      %1937 = vmatpush1.msra.mxu0 %v1926
      %1938 = vmatprep.subr.mxu0 0.0
      %1939 = vmatpush1.msra.mxu0 %v1925
      %1940 = vmatprep.subr.mxu0 0.0
      %1941 = vmatpush1.msra.mxu0 %v1924
      %1942 = vmatprep.subr.mxu0 0.0
      %1943 = vmatpush1.msra.mxu0 %v1923
      %1944 = vmatprep.subr.mxu0 0.0
      %1945 = vmatpush1.msra.mxu0 %v1922
      %1946 = vmatprep.subr.mxu0 0.0
      %1947 = vmatpush1.msra.mxu0 %v1921
      %1948 = vmatprep.subr.mxu0 0.0
      %1949 = vmatpush1.msra.mxu0 %v1920
      %1950 = vmatprep.subr.mxu0 0.0
      %1951 = vmatpush1.msra.mxu0 %v1919
      %1952 = vmatprep.subr.mxu0 0.0
      %1953 = vmatpush1.msra.mxu0 %v1918
      %1954 = vmatprep.subr.mxu0 0.0
      %1955 = vmatpush1.msra.mxu0 %v1917
      %1956 = vmatprep.subr.mxu0 0.0
      %1957 = vmatpush1.msra.mxu0 %v1916
      %1958 = vmatprep.subr.mxu0 0.0
      %1959 = vmatpush1.msra.mxu0 %v1915
      %1960 = vmatprep.subr.mxu0 0.0
      %1961 = vmatpush1.msra.mxu0 %v1914
      %1962 = vmatprep.subr.mxu0 0.0
      %1963 = vmatpush2.msra.mxu0 0.0
      %1964 = vmatprep.subr.mxu0 0.0
      %1965 = vmatpush2.msra.mxu0 0.0
      %1966 = vmatprep.subr.mxu0 0.0
      %1967 = vmatpush2.msra.mxu0 0.0
      %1968 = vmatprep.subr.mxu0 0.0
      %1969 = vmatpush2.msra.mxu0 0.0
      %1970 = vmatprep.subr.mxu0 0.0
      %1971 = vmatpush2.msra.mxu0 0.0
      %1972 = vmatprep.subr.mxu0 0.0
      %1973 = vmatpush2.msra.mxu0 0.0
      %1974 = vmatprep.subr.mxu0 0.0
      %1975 = vmatpush2.msra.mxu0 0.0
      %1976 = vmatprep.subr.mxu0 0.0
      %1977 = vmatpush2.msra.mxu0 0.0
      %1978 = vmatprep.subr.mxu0 0.0
      %1979 = vmatpush2.msra.mxu0 0.0
      %1980 = vmatprep.subr.mxu0 0.0
      %1981 = vmatpush2.msra.mxu0 0.0
      %1982 = vmatprep.subr.mxu0 0.0
      %1983 = vmatpush2.msra.mxu0 0.0
      %1984 = vmatprep.subr.mxu0 0.0
      %1985 = vmatpush2.msra.mxu0 0.0
      %1986 = vmatprep.subr.mxu0 0.0
      %1987 = vmatpush2.msra.mxu0 0.0
      %1988 = vmatprep.subr.mxu0 0.0
      %1989 = vmatpush2.msra.mxu0 0.0
      %1990 = vmatprep.subr.mxu0 0.0
      %1991 = vmatpush2.msra.mxu0 0.0
      %1992 = vmatprep.subr.mxu0 0.0
      %1993 = vmatpush2.msra.mxu0 0.0
      %1994 = vmatprep.mubr.f32.mxu0 0.0
      %1995 = vmatmul.mubr.f32.gmra.mxu0 %v1813
      %v1996 = vpop.f32.mrf.mxu0
      %v1997 = vadd.f32 0.0, %v1996
      %v1998 = vpop.f32.mrf.mxu0
      %1999 = vdwg.mxu0
      %s2000 = scalar_lea.vmem %s15, 8
      %v2001 = vld [vmem:[%s2000] sm:$0xff]
      %v2003 = vsel %vm690, %v2001, 0
      %2005 = vmatprep.subr.mxu0 0.0
      %2006 = vmatpush1.msra.mxu0 0.0
      %2007 = vmatprep.subr.mxu0 0.0
      %2008 = vmatpush1.msra.mxu0 0.0
      %2009 = vmatprep.subr.mxu0 0.0
      %2010 = vmatpush1.msra.mxu0 0.0
      %2011 = vmatprep.subr.mxu0 0.0
      %2012 = vmatpush1.msra.mxu0 0.0
      %2013 = vmatprep.subr.mxu0 0.0
      %2014 = vmatpush1.msra.mxu0 0.0
      %2015 = vmatprep.subr.mxu0 0.0
      %2016 = vmatpush1.msra.mxu0 0.0
      %2017 = vmatprep.subr.mxu0 0.0
      %2018 = vmatpush1.msra.mxu0 0.0
      %2019 = vmatprep.subr.mxu0 0.0
      %2020 = vmatpush1.msra.mxu0 0.0
      %2021 = vmatprep.subr.mxu0 0.0
      %2022 = vmatpush1.msra.mxu0 0.0
      %2023 = vmatprep.subr.mxu0 0.0
      %2024 = vmatpush1.msra.mxu0 0.0
      %2025 = vmatprep.subr.mxu0 0.0
      %2026 = vmatpush1.msra.mxu0 0.0
      %2027 = vmatprep.subr.mxu0 0.0
      %2028 = vmatpush1.msra.mxu0 0.0
      %2029 = vmatprep.subr.mxu0 0.0
      %2030 = vmatpush1.msra.mxu0 0.0
      %2031 = vmatprep.subr.mxu0 0.0
      %2032 = vmatpush1.msra.mxu0 0.0
      %2033 = vmatprep.subr.mxu0 0.0
      %2034 = vmatpush1.msra.mxu0 0.0
      %2035 = vmatprep.subr.mxu0 0.0
      %2036 = vmatpush1.msra.mxu0 %v1997
      %2037 = vmatprep.subr.mxu0 0.0
      %2038 = vmatpush2.msra.mxu0 0.0
      %2039 = vmatprep.subr.mxu0 0.0
      %2040 = vmatpush2.msra.mxu0 0.0
      %2041 = vmatprep.subr.mxu0 0.0
      %2042 = vmatpush2.msra.mxu0 0.0
      %2043 = vmatprep.subr.mxu0 0.0
      %2044 = vmatpush2.msra.mxu0 0.0
      %2045 = vmatprep.subr.mxu0 0.0
      %2046 = vmatpush2.msra.mxu0 0.0
      %2047 = vmatprep.subr.mxu0 0.0
      %2048 = vmatpush2.msra.mxu0 0.0
      %2049 = vmatprep.subr.mxu0 0.0
      %2050 = vmatpush2.msra.mxu0 0.0
      %2051 = vmatprep.subr.mxu0 0.0
      %2052 = vmatpush2.msra.mxu0 0.0
      %2053 = vmatprep.subr.mxu0 0.0
      %2054 = vmatpush2.msra.mxu0 0.0
      %2055 = vmatprep.subr.mxu0 0.0
      %2056 = vmatpush2.msra.mxu0 0.0
      %2057 = vmatprep.subr.mxu0 0.0
      %2058 = vmatpush2.msra.mxu0 0.0
      %2059 = vmatprep.subr.mxu0 0.0
      %2060 = vmatpush2.msra.mxu0 0.0
      %2061 = vmatprep.subr.mxu0 0.0
      %2062 = vmatpush2.msra.mxu0 0.0
      %2063 = vmatprep.subr.mxu0 0.0
      %2064 = vmatpush2.msra.mxu0 0.0
      %2065 = vmatprep.subr.mxu0 0.0
      %2066 = vmatpush2.msra.mxu0 0.0
      %2067 = vmatprep.subr.mxu0 0.0
      %2068 = vmatpush2.msra.mxu0 0.0
      %2069 = vmatprep.mubr.f32.mxu0 0.0
      %2070 = vmatmul.mubr.f32.gmra.mxu0 %v2003
      %v2071 = vpop.f32.mrf.mxu0
      %v2072 = vadd.f32 0.0, %v2071
      %v2073 = vpop.f32.mrf.mxu0
      %2074 = vdwg.mxu0
      %v2076 = vsel %vm690, %v1911, 0
      %2078 = vmatprep.subr.mxu0 0.0
      %2079 = vmatpush1.msra.mxu0 0.0
      %2080 = vmatprep.subr.mxu0 0.0
      %2081 = vmatpush1.msra.mxu0 0.0
      %2082 = vmatprep.subr.mxu0 0.0
      %2083 = vmatpush1.msra.mxu0 0.0
      %2084 = vmatprep.subr.mxu0 0.0
      %2085 = vmatpush1.msra.mxu0 0.0
      %2086 = vmatprep.subr.mxu0 0.0
      %2087 = vmatpush1.msra.mxu0 0.0
      %2088 = vmatprep.subr.mxu0 0.0
      %2089 = vmatpush1.msra.mxu0 0.0
      %2090 = vmatprep.subr.mxu0 0.0
      %2091 = vmatpush1.msra.mxu0 0.0
      %2092 = vmatprep.subr.mxu0 0.0
      %2093 = vmatpush1.msra.mxu0 0.0
      %2094 = vmatprep.subr.mxu0 0.0
      %2095 = vmatpush1.msra.mxu0 0.0
      %2096 = vmatprep.subr.mxu0 0.0
      %2097 = vmatpush1.msra.mxu0 0.0
      %2098 = vmatprep.subr.mxu0 0.0
      %2099 = vmatpush1.msra.mxu0 0.0
      %2100 = vmatprep.subr.mxu0 0.0
      %2101 = vmatpush1.msra.mxu0 0.0
      %2102 = vmatprep.subr.mxu0 0.0
      %2103 = vmatpush1.msra.mxu0 0.0
      %2104 = vmatprep.subr.mxu0 0.0
      %2105 = vmatpush1.msra.mxu0 0.0
      %2106 = vmatprep.subr.mxu0 0.0
      %2107 = vmatpush1.msra.mxu0 0.0
      %2108 = vmatprep.subr.mxu0 0.0
      %2109 = vmatpush1.msra.mxu0 %v1908
      %2110 = vmatprep.subr.mxu0 0.0
      %2111 = vmatpush2.msra.mxu0 0.0
      %2112 = vmatprep.subr.mxu0 0.0
      %2113 = vmatpush2.msra.mxu0 0.0
      %2114 = vmatprep.subr.mxu0 0.0
      %2115 = vmatpush2.msra.mxu0 0.0
      %2116 = vmatprep.subr.mxu0 0.0
      %2117 = vmatpush2.msra.mxu0 0.0
      %2118 = vmatprep.subr.mxu0 0.0
      %2119 = vmatpush2.msra.mxu0 0.0
      %2120 = vmatprep.subr.mxu0 0.0
      %2121 = vmatpush2.msra.mxu0 0.0
      %2122 = vmatprep.subr.mxu0 0.0
      %2123 = vmatpush2.msra.mxu0 0.0
      %2124 = vmatprep.subr.mxu0 0.0
      %2125 = vmatpush2.msra.mxu0 0.0
      %2126 = vmatprep.subr.mxu0 0.0
      %2127 = vmatpush2.msra.mxu0 0.0
      %2128 = vmatprep.subr.mxu0 0.0
      %2129 = vmatpush2.msra.mxu0 0.0
      %2130 = vmatprep.subr.mxu0 0.0
      %2131 = vmatpush2.msra.mxu0 0.0
      %2132 = vmatprep.subr.mxu0 0.0
      %2133 = vmatpush2.msra.mxu0 0.0
      %2134 = vmatprep.subr.mxu0 0.0
      %2135 = vmatpush2.msra.mxu0 0.0
      %2136 = vmatprep.subr.mxu0 0.0
      %2137 = vmatpush2.msra.mxu0 0.0
      %2138 = vmatprep.subr.mxu0 0.0
      %2139 = vmatpush2.msra.mxu0 0.0
      %2140 = vmatprep.subr.mxu0 0.0
      %2141 = vmatpush2.msra.mxu0 0.0
      %2142 = vmatprep.mubr.f32.mxu0 0.0
      %2143 = vmatmul.mubr.f32.gmra.mxu0 %v2076
      %v2144 = vpop.f32.mrf.mxu0
      %v2145 = vadd.f32 %v2072, %v2144
      %v2146 = vpop.f32.mrf.mxu0
      %2147 = vdwg.mxu0
      %s2148 = scalar_lea.vmem %s16, 8
      %v2149 = vld [vmem:[%s2148] sm:$0xff]
      %v2151 = vsel %vm690, %v2149, 0
      %2153 = vmatprep.subr.mxu0 0.0
      %2154 = vmatpush1.msra.mxu0 0.0
      %2155 = vmatprep.subr.mxu0 0.0
      %2156 = vmatpush1.msra.mxu0 0.0
      %2157 = vmatprep.subr.mxu0 0.0
      %2158 = vmatpush1.msra.mxu0 0.0
      %2159 = vmatprep.subr.mxu0 0.0
      %2160 = vmatpush1.msra.mxu0 0.0
      %2161 = vmatprep.subr.mxu0 0.0
      %2162 = vmatpush1.msra.mxu0 0.0
      %2163 = vmatprep.subr.mxu0 0.0
      %2164 = vmatpush1.msra.mxu0 0.0
      %2165 = vmatprep.subr.mxu0 0.0
      %2166 = vmatpush1.msra.mxu0 0.0
      %2167 = vmatprep.subr.mxu0 0.0
      %2168 = vmatpush1.msra.mxu0 0.0
      %2169 = vmatprep.subr.mxu0 0.0
      %2170 = vmatpush1.msra.mxu0 0.0
      %2171 = vmatprep.subr.mxu0 0.0
      %2172 = vmatpush1.msra.mxu0 0.0
      %2173 = vmatprep.subr.mxu0 0.0
      %2174 = vmatpush1.msra.mxu0 0.0
      %2175 = vmatprep.subr.mxu0 0.0
      %2176 = vmatpush1.msra.mxu0 0.0
      %2177 = vmatprep.subr.mxu0 0.0
      %2178 = vmatpush1.msra.mxu0 0.0
      %2179 = vmatprep.subr.mxu0 0.0
      %2180 = vmatpush1.msra.mxu0 0.0
      %2181 = vmatprep.subr.mxu0 0.0
      %2182 = vmatpush1.msra.mxu0 0.0
      %2183 = vmatprep.subr.mxu0 0.0
      %2184 = vmatpush1.msra.mxu0 %v1997
      %2185 = vmatprep.subr.mxu0 0.0
      %2186 = vmatpush2.msra.mxu0 0.0
      %2187 = vmatprep.subr.mxu0 0.0
      %2188 = vmatpush2.msra.mxu0 0.0
      %2189 = vmatprep.subr.mxu0 0.0
      %2190 = vmatpush2.msra.mxu0 0.0
      %2191 = vmatprep.subr.mxu0 0.0
      %2192 = vmatpush2.msra.mxu0 0.0
      %2193 = vmatprep.subr.mxu0 0.0
      %2194 = vmatpush2.msra.mxu0 0.0
      %2195 = vmatprep.subr.mxu0 0.0
      %2196 = vmatpush2.msra.mxu0 0.0
      %2197 = vmatprep.subr.mxu0 0.0
      %2198 = vmatpush2.msra.mxu0 0.0
      %2199 = vmatprep.subr.mxu0 0.0
      %2200 = vmatpush2.msra.mxu0 0.0
      %2201 = vmatprep.subr.mxu0 0.0
      %2202 = vmatpush2.msra.mxu0 0.0
      %2203 = vmatprep.subr.mxu0 0.0
      %2204 = vmatpush2.msra.mxu0 0.0
      %2205 = vmatprep.subr.mxu0 0.0
      %2206 = vmatpush2.msra.mxu0 0.0
      %2207 = vmatprep.subr.mxu0 0.0
      %2208 = vmatpush2.msra.mxu0 0.0
      %2209 = vmatprep.subr.mxu0 0.0
      %2210 = vmatpush2.msra.mxu0 0.0
      %2211 = vmatprep.subr.mxu0 0.0
      %2212 = vmatpush2.msra.mxu0 0.0
      %2213 = vmatprep.subr.mxu0 0.0
      %2214 = vmatpush2.msra.mxu0 0.0
      %2215 = vmatprep.subr.mxu0 0.0
      %2216 = vmatpush2.msra.mxu0 0.0
      %2217 = vmatprep.mubr.f32.mxu0 0.0
      %2218 = vmatmul.mubr.f32.gmra.mxu0 %v2151
      %v2219 = vpop.f32.mrf.mxu0
      %v2220 = vadd.f32 0.0, %v2219
      %v2221 = vpop.f32.mrf.mxu0
      %2222 = vdwg.mxu0
      %v2224 = vsel %vm690, %v1912, 0
      %2226 = vmatprep.subr.mxu0 0.0
      %2227 = vmatpush1.msra.mxu0 0.0
      %2228 = vmatprep.subr.mxu0 0.0
      %2229 = vmatpush1.msra.mxu0 0.0
      %2230 = vmatprep.subr.mxu0 0.0
      %2231 = vmatpush1.msra.mxu0 0.0
      %2232 = vmatprep.subr.mxu0 0.0
      %2233 = vmatpush1.msra.mxu0 0.0
      %2234 = vmatprep.subr.mxu0 0.0
      %2235 = vmatpush1.msra.mxu0 0.0
      %2236 = vmatprep.subr.mxu0 0.0
      %2237 = vmatpush1.msra.mxu0 0.0
      %2238 = vmatprep.subr.mxu0 0.0
      %2239 = vmatpush1.msra.mxu0 0.0
      %2240 = vmatprep.subr.mxu0 0.0
      %2241 = vmatpush1.msra.mxu0 0.0
      %2242 = vmatprep.subr.mxu0 0.0
      %2243 = vmatpush1.msra.mxu0 0.0
      %2244 = vmatprep.subr.mxu0 0.0
      %2245 = vmatpush1.msra.mxu0 0.0
      %2246 = vmatprep.subr.mxu0 0.0
      %2247 = vmatpush1.msra.mxu0 0.0
      %2248 = vmatprep.subr.mxu0 0.0
      %2249 = vmatpush1.msra.mxu0 0.0
      %2250 = vmatprep.subr.mxu0 0.0
      %2251 = vmatpush1.msra.mxu0 0.0
      %2252 = vmatprep.subr.mxu0 0.0
      %2253 = vmatpush1.msra.mxu0 0.0
      %2254 = vmatprep.subr.mxu0 0.0
      %2255 = vmatpush1.msra.mxu0 0.0
      %2256 = vmatprep.subr.mxu0 0.0
      %2257 = vmatpush1.msra.mxu0 %v1908
      %2258 = vmatprep.subr.mxu0 0.0
      %2259 = vmatpush2.msra.mxu0 0.0
      %2260 = vmatprep.subr.mxu0 0.0
      %2261 = vmatpush2.msra.mxu0 0.0
      %2262 = vmatprep.subr.mxu0 0.0
      %2263 = vmatpush2.msra.mxu0 0.0
      %2264 = vmatprep.subr.mxu0 0.0
      %2265 = vmatpush2.msra.mxu0 0.0
      %2266 = vmatprep.subr.mxu0 0.0
      %2267 = vmatpush2.msra.mxu0 0.0
      %2268 = vmatprep.subr.mxu0 0.0
      %2269 = vmatpush2.msra.mxu0 0.0
      %2270 = vmatprep.subr.mxu0 0.0
      %2271 = vmatpush2.msra.mxu0 0.0
      %2272 = vmatprep.subr.mxu0 0.0
      %2273 = vmatpush2.msra.mxu0 0.0
      %2274 = vmatprep.subr.mxu0 0.0
      %2275 = vmatpush2.msra.mxu0 0.0
      %2276 = vmatprep.subr.mxu0 0.0
      %2277 = vmatpush2.msra.mxu0 0.0
      %2278 = vmatprep.subr.mxu0 0.0
      %2279 = vmatpush2.msra.mxu0 0.0
      %2280 = vmatprep.subr.mxu0 0.0
      %2281 = vmatpush2.msra.mxu0 0.0
      %2282 = vmatprep.subr.mxu0 0.0
      %2283 = vmatpush2.msra.mxu0 0.0
      %2284 = vmatprep.subr.mxu0 0.0
      %2285 = vmatpush2.msra.mxu0 0.0
      %2286 = vmatprep.subr.mxu0 0.0
      %2287 = vmatpush2.msra.mxu0 0.0
      %2288 = vmatprep.subr.mxu0 0.0
      %2289 = vmatpush2.msra.mxu0 0.0
      %2290 = vmatprep.mubr.f32.mxu0 0.0
      %2291 = vmatmul.mubr.f32.gmra.mxu0 %v2224
      %v2292 = vpop.f32.mrf.mxu0
      %v2293 = vadd.f32 %v2220, %v2292
      %v2294 = vpop.f32.mrf.mxu0
      %2295 = vdwg.mxu0
      %s2296 = scalar_lea.vmem %s14, 256
      %v2297 = vld [vmem:[%s2296] sm:$0xff]
      %v2298 = vld [vmem:[%s2296 + $0x8] sm:$0xff]
      %v2299 = vld [vmem:[%s2296 + $0x10] sm:$0xff]
      %v2300 = vld [vmem:[%s2296 + $0x18] sm:$0xff]
      %v2301 = vld [vmem:[%s2296 + $0x20] sm:$0xff]
      %v2302 = vld [vmem:[%s2296 + $0x28] sm:$0xff]
      %v2303 = vld [vmem:[%s2296 + $0x30] sm:$0xff]
      %v2304 = vld [vmem:[%s2296 + $0x38] sm:$0xff]
      %v2305 = vld [vmem:[%s2296 + $0x40] sm:$0xff]
      %v2306 = vld [vmem:[%s2296 + $0x48] sm:$0xff]
      %v2307 = vld [vmem:[%s2296 + $0x50] sm:$0xff]
      %v2308 = vld [vmem:[%s2296 + $0x58] sm:$0xff]
      %v2309 = vld [vmem:[%s2296 + $0x60] sm:$0xff]
      %v2310 = vld [vmem:[%s2296 + $0x68] sm:$0xff]
      %v2311 = vld [vmem:[%s2296 + $0x70] sm:$0xff]
      %v2312 = vld [vmem:[%s2296 + $0x78] sm:$0xff]
      %2313 = vmatprep.subr.mxu0 0.0
      %2314 = vmatpush1.msra.mxu0 %v2312
      %2315 = vmatprep.subr.mxu0 0.0
      %2316 = vmatpush1.msra.mxu0 %v2311
      %2317 = vmatprep.subr.mxu0 0.0
      %2318 = vmatpush1.msra.mxu0 %v2310
      %2319 = vmatprep.subr.mxu0 0.0
      %2320 = vmatpush1.msra.mxu0 %v2309
      %2321 = vmatprep.subr.mxu0 0.0
      %2322 = vmatpush1.msra.mxu0 %v2308
      %2323 = vmatprep.subr.mxu0 0.0
      %2324 = vmatpush1.msra.mxu0 %v2307
      %2325 = vmatprep.subr.mxu0 0.0
      %2326 = vmatpush1.msra.mxu0 %v2306
      %2327 = vmatprep.subr.mxu0 0.0
      %2328 = vmatpush1.msra.mxu0 %v2305
      %2329 = vmatprep.subr.mxu0 0.0
      %2330 = vmatpush1.msra.mxu0 %v2304
      %2331 = vmatprep.subr.mxu0 0.0
      %2332 = vmatpush1.msra.mxu0 %v2303
      %2333 = vmatprep.subr.mxu0 0.0
      %2334 = vmatpush1.msra.mxu0 %v2302
      %2335 = vmatprep.subr.mxu0 0.0
      %2336 = vmatpush1.msra.mxu0 %v2301
      %2337 = vmatprep.subr.mxu0 0.0
      %2338 = vmatpush1.msra.mxu0 %v2300
      %2339 = vmatprep.subr.mxu0 0.0
      %2340 = vmatpush1.msra.mxu0 %v2299
      %2341 = vmatprep.subr.mxu0 0.0
      %2342 = vmatpush1.msra.mxu0 %v2298
      %2343 = vmatprep.subr.mxu0 0.0
      %2344 = vmatpush1.msra.mxu0 %v2297
      %2345 = vmatprep.subr.mxu0 0.0
      %2346 = vmatpush2.msra.mxu0 0.0
      %2347 = vmatprep.subr.mxu0 0.0
      %2348 = vmatpush2.msra.mxu0 0.0
      %2349 = vmatprep.subr.mxu0 0.0
      %2350 = vmatpush2.msra.mxu0 0.0
      %2351 = vmatprep.subr.mxu0 0.0
      %2352 = vmatpush2.msra.mxu0 0.0
      %2353 = vmatprep.subr.mxu0 0.0
      %2354 = vmatpush2.msra.mxu0 0.0
      %2355 = vmatprep.subr.mxu0 0.0
      %2356 = vmatpush2.msra.mxu0 0.0
      %2357 = vmatprep.subr.mxu0 0.0
      %2358 = vmatpush2.msra.mxu0 0.0
      %2359 = vmatprep.subr.mxu0 0.0
      %2360 = vmatpush2.msra.mxu0 0.0
      %2361 = vmatprep.subr.mxu0 0.0
      %2362 = vmatpush2.msra.mxu0 0.0
      %2363 = vmatprep.subr.mxu0 0.0
      %2364 = vmatpush2.msra.mxu0 0.0
      %2365 = vmatprep.subr.mxu0 0.0
      %2366 = vmatpush2.msra.mxu0 0.0
      %2367 = vmatprep.subr.mxu0 0.0
      %2368 = vmatpush2.msra.mxu0 0.0
      %2369 = vmatprep.subr.mxu0 0.0
      %2370 = vmatpush2.msra.mxu0 0.0
      %2371 = vmatprep.subr.mxu0 0.0
      %2372 = vmatpush2.msra.mxu0 0.0
      %2373 = vmatprep.subr.mxu0 0.0
      %2374 = vmatpush2.msra.mxu0 0.0
      %2375 = vmatprep.subr.mxu0 0.0
      %2376 = vmatpush2.msra.mxu0 0.0
      %2377 = vmatprep.mubr.f32.mxu0 0.0
      %2378 = vmatmul.mubr.f32.gmra.mxu0 %v1813
      %v2379 = vpop.f32.mrf.mxu0
      %v2380 = vadd.f32 0.0, %v2379
      %v2381 = vpop.f32.mrf.mxu0
      %2382 = vdwg.mxu0
      %s2383 = scalar_lea.vmem %s15, 16
      %v2384 = vld [vmem:[%s2383] sm:$0xff]
      %v2386 = vsel %vm690, %v2384, 0
      %2388 = vmatprep.subr.mxu0 0.0
      %2389 = vmatpush1.msra.mxu0 0.0
      %2390 = vmatprep.subr.mxu0 0.0
      %2391 = vmatpush1.msra.mxu0 0.0
      %2392 = vmatprep.subr.mxu0 0.0
      %2393 = vmatpush1.msra.mxu0 0.0
      %2394 = vmatprep.subr.mxu0 0.0
      %2395 = vmatpush1.msra.mxu0 0.0
      %2396 = vmatprep.subr.mxu0 0.0
      %2397 = vmatpush1.msra.mxu0 0.0
      %2398 = vmatprep.subr.mxu0 0.0
      %2399 = vmatpush1.msra.mxu0 0.0
      %2400 = vmatprep.subr.mxu0 0.0
      %2401 = vmatpush1.msra.mxu0 0.0
      %2402 = vmatprep.subr.mxu0 0.0
      %2403 = vmatpush1.msra.mxu0 0.0
      %2404 = vmatprep.subr.mxu0 0.0
      %2405 = vmatpush1.msra.mxu0 0.0
      %2406 = vmatprep.subr.mxu0 0.0
      %2407 = vmatpush1.msra.mxu0 0.0
      %2408 = vmatprep.subr.mxu0 0.0
      %2409 = vmatpush1.msra.mxu0 0.0
      %2410 = vmatprep.subr.mxu0 0.0
      %2411 = vmatpush1.msra.mxu0 0.0
      %2412 = vmatprep.subr.mxu0 0.0
      %2413 = vmatpush1.msra.mxu0 0.0
      %2414 = vmatprep.subr.mxu0 0.0
      %2415 = vmatpush1.msra.mxu0 0.0
      %2416 = vmatprep.subr.mxu0 0.0
      %2417 = vmatpush1.msra.mxu0 0.0
      %2418 = vmatprep.subr.mxu0 0.0
      %2419 = vmatpush1.msra.mxu0 %v2380
      %2420 = vmatprep.subr.mxu0 0.0
      %2421 = vmatpush2.msra.mxu0 0.0
      %2422 = vmatprep.subr.mxu0 0.0
      %2423 = vmatpush2.msra.mxu0 0.0
      %2424 = vmatprep.subr.mxu0 0.0
      %2425 = vmatpush2.msra.mxu0 0.0
      %2426 = vmatprep.subr.mxu0 0.0
      %2427 = vmatpush2.msra.mxu0 0.0
      %2428 = vmatprep.subr.mxu0 0.0
      %2429 = vmatpush2.msra.mxu0 0.0
      %2430 = vmatprep.subr.mxu0 0.0
      %2431 = vmatpush2.msra.mxu0 0.0
      %2432 = vmatprep.subr.mxu0 0.0
      %2433 = vmatpush2.msra.mxu0 0.0
      %2434 = vmatprep.subr.mxu0 0.0
      %2435 = vmatpush2.msra.mxu0 0.0
      %2436 = vmatprep.subr.mxu0 0.0
      %2437 = vmatpush2.msra.mxu0 0.0
      %2438 = vmatprep.subr.mxu0 0.0
      %2439 = vmatpush2.msra.mxu0 0.0
      %2440 = vmatprep.subr.mxu0 0.0
      %2441 = vmatpush2.msra.mxu0 0.0
      %2442 = vmatprep.subr.mxu0 0.0
      %2443 = vmatpush2.msra.mxu0 0.0
      %2444 = vmatprep.subr.mxu0 0.0
      %2445 = vmatpush2.msra.mxu0 0.0
      %2446 = vmatprep.subr.mxu0 0.0
      %2447 = vmatpush2.msra.mxu0 0.0
      %2448 = vmatprep.subr.mxu0 0.0
      %2449 = vmatpush2.msra.mxu0 0.0
      %2450 = vmatprep.subr.mxu0 0.0
      %2451 = vmatpush2.msra.mxu0 0.0
      %2452 = vmatprep.mubr.f32.mxu0 0.0
      %2453 = vmatmul.mubr.f32.gmra.mxu0 %v2386
      %v2454 = vpop.f32.mrf.mxu0
      %v2455 = vadd.f32 0.0, %v2454
      %v2456 = vpop.f32.mrf.mxu0
      %2457 = vdwg.mxu0
      %v2458 = vadd.f32 %v2145, %v2455
      %s2459 = scalar_lea.vmem %s16, 16
      %v2460 = vld [vmem:[%s2459] sm:$0xff]
      %v2462 = vsel %vm690, %v2460, 0
      %2464 = vmatprep.subr.mxu0 0.0
      %2465 = vmatpush1.msra.mxu0 0.0
      %2466 = vmatprep.subr.mxu0 0.0
      %2467 = vmatpush1.msra.mxu0 0.0
      %2468 = vmatprep.subr.mxu0 0.0
      %2469 = vmatpush1.msra.mxu0 0.0
      %2470 = vmatprep.subr.mxu0 0.0
      %2471 = vmatpush1.msra.mxu0 0.0
      %2472 = vmatprep.subr.mxu0 0.0
      %2473 = vmatpush1.msra.mxu0 0.0
      %2474 = vmatprep.subr.mxu0 0.0
      %2475 = vmatpush1.msra.mxu0 0.0
      %2476 = vmatprep.subr.mxu0 0.0
      %2477 = vmatpush1.msra.mxu0 0.0
      %2478 = vmatprep.subr.mxu0 0.0
      %2479 = vmatpush1.msra.mxu0 0.0
      %2480 = vmatprep.subr.mxu0 0.0
      %2481 = vmatpush1.msra.mxu0 0.0
      %2482 = vmatprep.subr.mxu0 0.0
      %2483 = vmatpush1.msra.mxu0 0.0
      %2484 = vmatprep.subr.mxu0 0.0
      %2485 = vmatpush1.msra.mxu0 0.0
      %2486 = vmatprep.subr.mxu0 0.0
      %2487 = vmatpush1.msra.mxu0 0.0
      %2488 = vmatprep.subr.mxu0 0.0
      %2489 = vmatpush1.msra.mxu0 0.0
      %2490 = vmatprep.subr.mxu0 0.0
      %2491 = vmatpush1.msra.mxu0 0.0
      %2492 = vmatprep.subr.mxu0 0.0
      %2493 = vmatpush1.msra.mxu0 0.0
      %2494 = vmatprep.subr.mxu0 0.0
      %2495 = vmatpush1.msra.mxu0 %v2380
      %2496 = vmatprep.subr.mxu0 0.0
      %2497 = vmatpush2.msra.mxu0 0.0
      %2498 = vmatprep.subr.mxu0 0.0
      %2499 = vmatpush2.msra.mxu0 0.0
      %2500 = vmatprep.subr.mxu0 0.0
      %2501 = vmatpush2.msra.mxu0 0.0
      %2502 = vmatprep.subr.mxu0 0.0
      %2503 = vmatpush2.msra.mxu0 0.0
      %2504 = vmatprep.subr.mxu0 0.0
      %2505 = vmatpush2.msra.mxu0 0.0
      %2506 = vmatprep.subr.mxu0 0.0
      %2507 = vmatpush2.msra.mxu0 0.0
      %2508 = vmatprep.subr.mxu0 0.0
      %2509 = vmatpush2.msra.mxu0 0.0
      %2510 = vmatprep.subr.mxu0 0.0
      %2511 = vmatpush2.msra.mxu0 0.0
      %2512 = vmatprep.subr.mxu0 0.0
      %2513 = vmatpush2.msra.mxu0 0.0
      %2514 = vmatprep.subr.mxu0 0.0
      %2515 = vmatpush2.msra.mxu0 0.0
      %2516 = vmatprep.subr.mxu0 0.0
      %2517 = vmatpush2.msra.mxu0 0.0
      %2518 = vmatprep.subr.mxu0 0.0
      %2519 = vmatpush2.msra.mxu0 0.0
      %2520 = vmatprep.subr.mxu0 0.0
      %2521 = vmatpush2.msra.mxu0 0.0
      %2522 = vmatprep.subr.mxu0 0.0
      %2523 = vmatpush2.msra.mxu0 0.0
      %2524 = vmatprep.subr.mxu0 0.0
      %2525 = vmatpush2.msra.mxu0 0.0
      %2526 = vmatprep.subr.mxu0 0.0
      %2527 = vmatpush2.msra.mxu0 0.0
      %2528 = vmatprep.mubr.f32.mxu0 0.0
      %2529 = vmatmul.mubr.f32.gmra.mxu0 %v2462
      %v2530 = vpop.f32.mrf.mxu0
      %v2531 = vadd.f32 0.0, %v2530
      %v2532 = vpop.f32.mrf.mxu0
      %2533 = vdwg.mxu0
      %v2534 = vadd.f32 %v2293, %v2531
      %s2535 = scalar_lea.vmem %s14, 384
      %v2536 = vld [vmem:[%s2535] sm:$0xff]
      %v2537 = vld [vmem:[%s2535 + $0x8] sm:$0xff]
      %v2538 = vld [vmem:[%s2535 + $0x10] sm:$0xff]
      %v2539 = vld [vmem:[%s2535 + $0x18] sm:$0xff]
      %v2540 = vld [vmem:[%s2535 + $0x20] sm:$0xff]
      %v2541 = vld [vmem:[%s2535 + $0x28] sm:$0xff]
      %v2542 = vld [vmem:[%s2535 + $0x30] sm:$0xff]
      %v2543 = vld [vmem:[%s2535 + $0x38] sm:$0xff]
      %v2544 = vld [vmem:[%s2535 + $0x40] sm:$0xff]
      %v2545 = vld [vmem:[%s2535 + $0x48] sm:$0xff]
      %v2546 = vld [vmem:[%s2535 + $0x50] sm:$0xff]
      %v2547 = vld [vmem:[%s2535 + $0x58] sm:$0xff]
      %v2548 = vld [vmem:[%s2535 + $0x60] sm:$0xff]
      %v2549 = vld [vmem:[%s2535 + $0x68] sm:$0xff]
      %v2550 = vld [vmem:[%s2535 + $0x70] sm:$0xff]
      %v2551 = vld [vmem:[%s2535 + $0x78] sm:$0xff]
      %2552 = vmatprep.subr.mxu0 0.0
      %2553 = vmatpush1.msra.mxu0 %v2551
      %2554 = vmatprep.subr.mxu0 0.0
      %2555 = vmatpush1.msra.mxu0 %v2550
      %2556 = vmatprep.subr.mxu0 0.0
      %2557 = vmatpush1.msra.mxu0 %v2549
      %2558 = vmatprep.subr.mxu0 0.0
      %2559 = vmatpush1.msra.mxu0 %v2548
      %2560 = vmatprep.subr.mxu0 0.0
      %2561 = vmatpush1.msra.mxu0 %v2547
      %2562 = vmatprep.subr.mxu0 0.0
      %2563 = vmatpush1.msra.mxu0 %v2546
      %2564 = vmatprep.subr.mxu0 0.0
      %2565 = vmatpush1.msra.mxu0 %v2545
      %2566 = vmatprep.subr.mxu0 0.0
      %2567 = vmatpush1.msra.mxu0 %v2544
      %2568 = vmatprep.subr.mxu0 0.0
      %2569 = vmatpush1.msra.mxu0 %v2543
      %2570 = vmatprep.subr.mxu0 0.0
      %2571 = vmatpush1.msra.mxu0 %v2542
      %2572 = vmatprep.subr.mxu0 0.0
      %2573 = vmatpush1.msra.mxu0 %v2541
      %2574 = vmatprep.subr.mxu0 0.0
      %2575 = vmatpush1.msra.mxu0 %v2540
      %2576 = vmatprep.subr.mxu0 0.0
      %2577 = vmatpush1.msra.mxu0 %v2539
      %2578 = vmatprep.subr.mxu0 0.0
      %2579 = vmatpush1.msra.mxu0 %v2538
      %2580 = vmatprep.subr.mxu0 0.0
      %2581 = vmatpush1.msra.mxu0 %v2537
      %2582 = vmatprep.subr.mxu0 0.0
      %2583 = vmatpush1.msra.mxu0 %v2536
      %2584 = vmatprep.subr.mxu0 0.0
      %2585 = vmatpush2.msra.mxu0 0.0
      %2586 = vmatprep.subr.mxu0 0.0
      %2587 = vmatpush2.msra.mxu0 0.0
      %2588 = vmatprep.subr.mxu0 0.0
      %2589 = vmatpush2.msra.mxu0 0.0
      %2590 = vmatprep.subr.mxu0 0.0
      %2591 = vmatpush2.msra.mxu0 0.0
      %2592 = vmatprep.subr.mxu0 0.0
      %2593 = vmatpush2.msra.mxu0 0.0
      %2594 = vmatprep.subr.mxu0 0.0
      %2595 = vmatpush2.msra.mxu0 0.0
      %2596 = vmatprep.subr.mxu0 0.0
      %2597 = vmatpush2.msra.mxu0 0.0
      %2598 = vmatprep.subr.mxu0 0.0
      %2599 = vmatpush2.msra.mxu0 0.0
      %2600 = vmatprep.subr.mxu0 0.0
      %2601 = vmatpush2.msra.mxu0 0.0
      %2602 = vmatprep.subr.mxu0 0.0
      %2603 = vmatpush2.msra.mxu0 0.0
      %2604 = vmatprep.subr.mxu0 0.0
      %2605 = vmatpush2.msra.mxu0 0.0
      %2606 = vmatprep.subr.mxu0 0.0
      %2607 = vmatpush2.msra.mxu0 0.0
      %2608 = vmatprep.subr.mxu0 0.0
      %2609 = vmatpush2.msra.mxu0 0.0
      %2610 = vmatprep.subr.mxu0 0.0
      %2611 = vmatpush2.msra.mxu0 0.0
      %2612 = vmatprep.subr.mxu0 0.0
      %2613 = vmatpush2.msra.mxu0 0.0
      %2614 = vmatprep.subr.mxu0 0.0
      %2615 = vmatpush2.msra.mxu0 0.0
      %2616 = vmatprep.mubr.f32.mxu0 0.0
      %2617 = vmatmul.mubr.f32.gmra.mxu0 %v1813
      %v2618 = vpop.f32.mrf.mxu0
      %v2619 = vadd.f32 0.0, %v2618
      %v2620 = vpop.f32.mrf.mxu0
      %2621 = vdwg.mxu0
      %s2622 = scalar_lea.vmem %s15, 24
      %v2623 = vld [vmem:[%s2622] sm:$0xff]
      %v2625 = vsel %vm690, %v2623, 0
      %2627 = vmatprep.subr.mxu0 0.0
      %2628 = vmatpush1.msra.mxu0 0.0
      %2629 = vmatprep.subr.mxu0 0.0
      %2630 = vmatpush1.msra.mxu0 0.0
      %2631 = vmatprep.subr.mxu0 0.0
      %2632 = vmatpush1.msra.mxu0 0.0
      %2633 = vmatprep.subr.mxu0 0.0
      %2634 = vmatpush1.msra.mxu0 0.0
      %2635 = vmatprep.subr.mxu0 0.0
      %2636 = vmatpush1.msra.mxu0 0.0
      %2637 = vmatprep.subr.mxu0 0.0
      %2638 = vmatpush1.msra.mxu0 0.0
      %2639 = vmatprep.subr.mxu0 0.0
      %2640 = vmatpush1.msra.mxu0 0.0
      %2641 = vmatprep.subr.mxu0 0.0
      %2642 = vmatpush1.msra.mxu0 0.0
      %2643 = vmatprep.subr.mxu0 0.0
      %2644 = vmatpush1.msra.mxu0 0.0
      %2645 = vmatprep.subr.mxu0 0.0
      %2646 = vmatpush1.msra.mxu0 0.0
      %2647 = vmatprep.subr.mxu0 0.0
      %2648 = vmatpush1.msra.mxu0 0.0
      %2649 = vmatprep.subr.mxu0 0.0
      %2650 = vmatpush1.msra.mxu0 0.0
      %2651 = vmatprep.subr.mxu0 0.0
      %2652 = vmatpush1.msra.mxu0 0.0
      %2653 = vmatprep.subr.mxu0 0.0
      %2654 = vmatpush1.msra.mxu0 0.0
      %2655 = vmatprep.subr.mxu0 0.0
      %2656 = vmatpush1.msra.mxu0 0.0
      %2657 = vmatprep.subr.mxu0 0.0
      %2658 = vmatpush1.msra.mxu0 %v2619
      %2659 = vmatprep.subr.mxu0 0.0
      %2660 = vmatpush2.msra.mxu0 0.0
      %2661 = vmatprep.subr.mxu0 0.0
      %2662 = vmatpush2.msra.mxu0 0.0
      %2663 = vmatprep.subr.mxu0 0.0
      %2664 = vmatpush2.msra.mxu0 0.0
      %2665 = vmatprep.subr.mxu0 0.0
      %2666 = vmatpush2.msra.mxu0 0.0
      %2667 = vmatprep.subr.mxu0 0.0
      %2668 = vmatpush2.msra.mxu0 0.0
      %2669 = vmatprep.subr.mxu0 0.0
      %2670 = vmatpush2.msra.mxu0 0.0
      %2671 = vmatprep.subr.mxu0 0.0
      %2672 = vmatpush2.msra.mxu0 0.0
      %2673 = vmatprep.subr.mxu0 0.0
      %2674 = vmatpush2.msra.mxu0 0.0
      %2675 = vmatprep.subr.mxu0 0.0
      %2676 = vmatpush2.msra.mxu0 0.0
      %2677 = vmatprep.subr.mxu0 0.0
      %2678 = vmatpush2.msra.mxu0 0.0
      %2679 = vmatprep.subr.mxu0 0.0
      %2680 = vmatpush2.msra.mxu0 0.0
      %2681 = vmatprep.subr.mxu0 0.0
      %2682 = vmatpush2.msra.mxu0 0.0
      %2683 = vmatprep.subr.mxu0 0.0
      %2684 = vmatpush2.msra.mxu0 0.0
      %2685 = vmatprep.subr.mxu0 0.0
      %2686 = vmatpush2.msra.mxu0 0.0
      %2687 = vmatprep.subr.mxu0 0.0
      %2688 = vmatpush2.msra.mxu0 0.0
      %2689 = vmatprep.subr.mxu0 0.0
      %2690 = vmatpush2.msra.mxu0 0.0
      %2691 = vmatprep.mubr.f32.mxu0 0.0
      %2692 = vmatmul.mubr.f32.gmra.mxu0 %v2625
      %v2693 = vpop.f32.mrf.mxu0
      %v2694 = vadd.f32 0.0, %v2693
      %v2695 = vpop.f32.mrf.mxu0
      %2696 = vdwg.mxu0
      %v2697 = vadd.f32 %v2458, %v2694
      %s2698 = scalar_lea.vmem %s16, 24
      %v2699 = vld [vmem:[%s2698] sm:$0xff]
      %v2701 = vsel %vm690, %v2699, 0
      %2703 = vmatprep.subr.mxu0 0.0
      %2704 = vmatpush1.msra.mxu0 0.0
      %2705 = vmatprep.subr.mxu0 0.0
      %2706 = vmatpush1.msra.mxu0 0.0
      %2707 = vmatprep.subr.mxu0 0.0
      %2708 = vmatpush1.msra.mxu0 0.0
      %2709 = vmatprep.subr.mxu0 0.0
      %2710 = vmatpush1.msra.mxu0 0.0
      %2711 = vmatprep.subr.mxu0 0.0
      %2712 = vmatpush1.msra.mxu0 0.0
      %2713 = vmatprep.subr.mxu0 0.0
      %2714 = vmatpush1.msra.mxu0 0.0
      %2715 = vmatprep.subr.mxu0 0.0
      %2716 = vmatpush1.msra.mxu0 0.0
      %2717 = vmatprep.subr.mxu0 0.0
      %2718 = vmatpush1.msra.mxu0 0.0
      %2719 = vmatprep.subr.mxu0 0.0
      %2720 = vmatpush1.msra.mxu0 0.0
      %2721 = vmatprep.subr.mxu0 0.0
      %2722 = vmatpush1.msra.mxu0 0.0
      %2723 = vmatprep.subr.mxu0 0.0
      %2724 = vmatpush1.msra.mxu0 0.0
      %2725 = vmatprep.subr.mxu0 0.0
      %2726 = vmatpush1.msra.mxu0 0.0
      %2727 = vmatprep.subr.mxu0 0.0
      %2728 = vmatpush1.msra.mxu0 0.0
      %2729 = vmatprep.subr.mxu0 0.0
      %2730 = vmatpush1.msra.mxu0 0.0
      %2731 = vmatprep.subr.mxu0 0.0
      %2732 = vmatpush1.msra.mxu0 0.0
      %2733 = vmatprep.subr.mxu0 0.0
      %2734 = vmatpush1.msra.mxu0 %v2619
      %2735 = vmatprep.subr.mxu0 0.0
      %2736 = vmatpush2.msra.mxu0 0.0
      %2737 = vmatprep.subr.mxu0 0.0
      %2738 = vmatpush2.msra.mxu0 0.0
      %2739 = vmatprep.subr.mxu0 0.0
      %2740 = vmatpush2.msra.mxu0 0.0
      %2741 = vmatprep.subr.mxu0 0.0
      %2742 = vmatpush2.msra.mxu0 0.0
      %2743 = vmatprep.subr.mxu0 0.0
      %2744 = vmatpush2.msra.mxu0 0.0
      %2745 = vmatprep.subr.mxu0 0.0
      %2746 = vmatpush2.msra.mxu0 0.0
      %2747 = vmatprep.subr.mxu0 0.0
      %2748 = vmatpush2.msra.mxu0 0.0
      %2749 = vmatprep.subr.mxu0 0.0
      %2750 = vmatpush2.msra.mxu0 0.0
      %2751 = vmatprep.subr.mxu0 0.0
      %2752 = vmatpush2.msra.mxu0 0.0
      %2753 = vmatprep.subr.mxu0 0.0
      %2754 = vmatpush2.msra.mxu0 0.0
      %2755 = vmatprep.subr.mxu0 0.0
      %2756 = vmatpush2.msra.mxu0 0.0
      %2757 = vmatprep.subr.mxu0 0.0
      %2758 = vmatpush2.msra.mxu0 0.0
      %2759 = vmatprep.subr.mxu0 0.0
      %2760 = vmatpush2.msra.mxu0 0.0
      %2761 = vmatprep.subr.mxu0 0.0
      %2762 = vmatpush2.msra.mxu0 0.0
      %2763 = vmatprep.subr.mxu0 0.0
      %2764 = vmatpush2.msra.mxu0 0.0
      %2765 = vmatprep.subr.mxu0 0.0
      %2766 = vmatpush2.msra.mxu0 0.0
      %2767 = vmatprep.mubr.f32.mxu0 0.0
      %2768 = vmatmul.mubr.f32.gmra.mxu0 %v2701
      %v2769 = vpop.f32.mrf.mxu0
      %v2770 = vadd.f32 0.0, %v2769
      %v2771 = vpop.f32.mrf.mxu0
      %2772 = vdwg.mxu0
      %v2773 = vadd.f32 %v2534, %v2770
      %s2774 = scalar_lea.vmem %s14, 512
      %v2775 = vld [vmem:[%s2774] sm:$0xff]
      %v2776 = vld [vmem:[%s2774 + $0x8] sm:$0xff]
      %v2777 = vld [vmem:[%s2774 + $0x10] sm:$0xff]
      %v2778 = vld [vmem:[%s2774 + $0x18] sm:$0xff]
      %v2779 = vld [vmem:[%s2774 + $0x20] sm:$0xff]
      %v2780 = vld [vmem:[%s2774 + $0x28] sm:$0xff]
      %v2781 = vld [vmem:[%s2774 + $0x30] sm:$0xff]
      %v2782 = vld [vmem:[%s2774 + $0x38] sm:$0xff]
      %v2783 = vld [vmem:[%s2774 + $0x40] sm:$0xff]
      %v2784 = vld [vmem:[%s2774 + $0x48] sm:$0xff]
      %v2785 = vld [vmem:[%s2774 + $0x50] sm:$0xff]
      %v2786 = vld [vmem:[%s2774 + $0x58] sm:$0xff]
      %v2787 = vld [vmem:[%s2774 + $0x60] sm:$0xff]
      %v2788 = vld [vmem:[%s2774 + $0x68] sm:$0xff]
      %v2789 = vld [vmem:[%s2774 + $0x70] sm:$0xff]
      %v2790 = vld [vmem:[%s2774 + $0x78] sm:$0xff]
      %2791 = vmatprep.subr.mxu0 0.0
      %2792 = vmatpush1.msra.mxu0 %v2790
      %2793 = vmatprep.subr.mxu0 0.0
      %2794 = vmatpush1.msra.mxu0 %v2789
      %2795 = vmatprep.subr.mxu0 0.0
      %2796 = vmatpush1.msra.mxu0 %v2788
      %2797 = vmatprep.subr.mxu0 0.0
      %2798 = vmatpush1.msra.mxu0 %v2787
      %2799 = vmatprep.subr.mxu0 0.0
      %2800 = vmatpush1.msra.mxu0 %v2786
      %2801 = vmatprep.subr.mxu0 0.0
      %2802 = vmatpush1.msra.mxu0 %v2785
      %2803 = vmatprep.subr.mxu0 0.0
      %2804 = vmatpush1.msra.mxu0 %v2784
      %2805 = vmatprep.subr.mxu0 0.0
      %2806 = vmatpush1.msra.mxu0 %v2783
      %2807 = vmatprep.subr.mxu0 0.0
      %2808 = vmatpush1.msra.mxu0 %v2782
      %2809 = vmatprep.subr.mxu0 0.0
      %2810 = vmatpush1.msra.mxu0 %v2781
      %2811 = vmatprep.subr.mxu0 0.0
      %2812 = vmatpush1.msra.mxu0 %v2780
      %2813 = vmatprep.subr.mxu0 0.0
      %2814 = vmatpush1.msra.mxu0 %v2779
      %2815 = vmatprep.subr.mxu0 0.0
      %2816 = vmatpush1.msra.mxu0 %v2778
      %2817 = vmatprep.subr.mxu0 0.0
      %2818 = vmatpush1.msra.mxu0 %v2777
      %2819 = vmatprep.subr.mxu0 0.0
      %2820 = vmatpush1.msra.mxu0 %v2776
      %2821 = vmatprep.subr.mxu0 0.0
      %2822 = vmatpush1.msra.mxu0 %v2775
      %2823 = vmatprep.subr.mxu0 0.0
      %2824 = vmatpush2.msra.mxu0 0.0
      %2825 = vmatprep.subr.mxu0 0.0
      %2826 = vmatpush2.msra.mxu0 0.0
      %2827 = vmatprep.subr.mxu0 0.0
      %2828 = vmatpush2.msra.mxu0 0.0
      %2829 = vmatprep.subr.mxu0 0.0
      %2830 = vmatpush2.msra.mxu0 0.0
      %2831 = vmatprep.subr.mxu0 0.0
      %2832 = vmatpush2.msra.mxu0 0.0
      %2833 = vmatprep.subr.mxu0 0.0
      %2834 = vmatpush2.msra.mxu0 0.0
      %2835 = vmatprep.subr.mxu0 0.0
      %2836 = vmatpush2.msra.mxu0 0.0
      %2837 = vmatprep.subr.mxu0 0.0
      %2838 = vmatpush2.msra.mxu0 0.0
      %2839 = vmatprep.subr.mxu0 0.0
      %2840 = vmatpush2.msra.mxu0 0.0
      %2841 = vmatprep.subr.mxu0 0.0
      %2842 = vmatpush2.msra.mxu0 0.0
      %2843 = vmatprep.subr.mxu0 0.0
      %2844 = vmatpush2.msra.mxu0 0.0
      %2845 = vmatprep.subr.mxu0 0.0
      %2846 = vmatpush2.msra.mxu0 0.0
      %2847 = vmatprep.subr.mxu0 0.0
      %2848 = vmatpush2.msra.mxu0 0.0
      %2849 = vmatprep.subr.mxu0 0.0
      %2850 = vmatpush2.msra.mxu0 0.0
      %2851 = vmatprep.subr.mxu0 0.0
      %2852 = vmatpush2.msra.mxu0 0.0
      %2853 = vmatprep.subr.mxu0 0.0
      %2854 = vmatpush2.msra.mxu0 0.0
      %2855 = vmatprep.mubr.f32.mxu0 0.0
      %2856 = vmatmul.mubr.f32.gmra.mxu0 %v1813
      %v2857 = vpop.f32.mrf.mxu0
      %v2858 = vadd.f32 0.0, %v2857
      %v2859 = vpop.f32.mrf.mxu0
      %2860 = vdwg.mxu0
      %s2861 = scalar_lea.vmem %s15, 32
      %v2862 = vld [vmem:[%s2861] sm:$0xff]
      %v2864 = vsel %vm690, %v2862, 0
      %2866 = vmatprep.subr.mxu0 0.0
      %2867 = vmatpush1.msra.mxu0 0.0
      %2868 = vmatprep.subr.mxu0 0.0
      %2869 = vmatpush1.msra.mxu0 0.0
      %2870 = vmatprep.subr.mxu0 0.0
      %2871 = vmatpush1.msra.mxu0 0.0
      %2872 = vmatprep.subr.mxu0 0.0
      %2873 = vmatpush1.msra.mxu0 0.0
      %2874 = vmatprep.subr.mxu0 0.0
      %2875 = vmatpush1.msra.mxu0 0.0
      %2876 = vmatprep.subr.mxu0 0.0
      %2877 = vmatpush1.msra.mxu0 0.0
      %2878 = vmatprep.subr.mxu0 0.0
      %2879 = vmatpush1.msra.mxu0 0.0
      %2880 = vmatprep.subr.mxu0 0.0
      %2881 = vmatpush1.msra.mxu0 0.0
      %2882 = vmatprep.subr.mxu0 0.0
      %2883 = vmatpush1.msra.mxu0 0.0
      %2884 = vmatprep.subr.mxu0 0.0
      %2885 = vmatpush1.msra.mxu0 0.0
      %2886 = vmatprep.subr.mxu0 0.0
      %2887 = vmatpush1.msra.mxu0 0.0
      %2888 = vmatprep.subr.mxu0 0.0
      %2889 = vmatpush1.msra.mxu0 0.0
      %2890 = vmatprep.subr.mxu0 0.0
      %2891 = vmatpush1.msra.mxu0 0.0
      %2892 = vmatprep.subr.mxu0 0.0
      %2893 = vmatpush1.msra.mxu0 0.0
      %2894 = vmatprep.subr.mxu0 0.0
      %2895 = vmatpush1.msra.mxu0 0.0
      %2896 = vmatprep.subr.mxu0 0.0
      %2897 = vmatpush1.msra.mxu0 %v2858
      %2898 = vmatprep.subr.mxu0 0.0
      %2899 = vmatpush2.msra.mxu0 0.0
      %2900 = vmatprep.subr.mxu0 0.0
      %2901 = vmatpush2.msra.mxu0 0.0
      %2902 = vmatprep.subr.mxu0 0.0
      %2903 = vmatpush2.msra.mxu0 0.0
      %2904 = vmatprep.subr.mxu0 0.0
      %2905 = vmatpush2.msra.mxu0 0.0
      %2906 = vmatprep.subr.mxu0 0.0
      %2907 = vmatpush2.msra.mxu0 0.0
      %2908 = vmatprep.subr.mxu0 0.0
      %2909 = vmatpush2.msra.mxu0 0.0
      %2910 = vmatprep.subr.mxu0 0.0
      %2911 = vmatpush2.msra.mxu0 0.0
      %2912 = vmatprep.subr.mxu0 0.0
      %2913 = vmatpush2.msra.mxu0 0.0
      %2914 = vmatprep.subr.mxu0 0.0
      %2915 = vmatpush2.msra.mxu0 0.0
      %2916 = vmatprep.subr.mxu0 0.0
      %2917 = vmatpush2.msra.mxu0 0.0
      %2918 = vmatprep.subr.mxu0 0.0
      %2919 = vmatpush2.msra.mxu0 0.0
      %2920 = vmatprep.subr.mxu0 0.0
      %2921 = vmatpush2.msra.mxu0 0.0
      %2922 = vmatprep.subr.mxu0 0.0
      %2923 = vmatpush2.msra.mxu0 0.0
      %2924 = vmatprep.subr.mxu0 0.0
      %2925 = vmatpush2.msra.mxu0 0.0
      %2926 = vmatprep.subr.mxu0 0.0
      %2927 = vmatpush2.msra.mxu0 0.0
      %2928 = vmatprep.subr.mxu0 0.0
      %2929 = vmatpush2.msra.mxu0 0.0
      %2930 = vmatprep.mubr.f32.mxu0 0.0
      %2931 = vmatmul.mubr.f32.gmra.mxu0 %v2864
      %v2932 = vpop.f32.mrf.mxu0
      %v2933 = vadd.f32 0.0, %v2932
      %v2934 = vpop.f32.mrf.mxu0
      %2935 = vdwg.mxu0
      %v2936 = vadd.f32 %v2697, %v2933
      %s2937 = scalar_lea.vmem %s16, 32
      %v2938 = vld [vmem:[%s2937] sm:$0xff]
      %v2940 = vsel %vm690, %v2938, 0
      %2942 = vmatprep.subr.mxu0 0.0
      %2943 = vmatpush1.msra.mxu0 0.0
      %2944 = vmatprep.subr.mxu0 0.0
      %2945 = vmatpush1.msra.mxu0 0.0
      %2946 = vmatprep.subr.mxu0 0.0
      %2947 = vmatpush1.msra.mxu0 0.0
      %2948 = vmatprep.subr.mxu0 0.0
      %2949 = vmatpush1.msra.mxu0 0.0
      %2950 = vmatprep.subr.mxu0 0.0
      %2951 = vmatpush1.msra.mxu0 0.0
      %2952 = vmatprep.subr.mxu0 0.0
      %2953 = vmatpush1.msra.mxu0 0.0
      %2954 = vmatprep.subr.mxu0 0.0
      %2955 = vmatpush1.msra.mxu0 0.0
      %2956 = vmatprep.subr.mxu0 0.0
      %2957 = vmatpush1.msra.mxu0 0.0
      %2958 = vmatprep.subr.mxu0 0.0
      %2959 = vmatpush1.msra.mxu0 0.0
      %2960 = vmatprep.subr.mxu0 0.0
      %2961 = vmatpush1.msra.mxu0 0.0
      %2962 = vmatprep.subr.mxu0 0.0
      %2963 = vmatpush1.msra.mxu0 0.0
      %2964 = vmatprep.subr.mxu0 0.0
      %2965 = vmatpush1.msra.mxu0 0.0
      %2966 = vmatprep.subr.mxu0 0.0
      %2967 = vmatpush1.msra.mxu0 0.0
      %2968 = vmatprep.subr.mxu0 0.0
      %2969 = vmatpush1.msra.mxu0 0.0
      %2970 = vmatprep.subr.mxu0 0.0
      %2971 = vmatpush1.msra.mxu0 0.0
      %2972 = vmatprep.subr.mxu0 0.0
      %2973 = vmatpush1.msra.mxu0 %v2858
      %2974 = vmatprep.subr.mxu0 0.0
      %2975 = vmatpush2.msra.mxu0 0.0
      %2976 = vmatprep.subr.mxu0 0.0
      %2977 = vmatpush2.msra.mxu0 0.0
      %2978 = vmatprep.subr.mxu0 0.0
      %2979 = vmatpush2.msra.mxu0 0.0
      %2980 = vmatprep.subr.mxu0 0.0
      %2981 = vmatpush2.msra.mxu0 0.0
      %2982 = vmatprep.subr.mxu0 0.0
      %2983 = vmatpush2.msra.mxu0 0.0
      %2984 = vmatprep.subr.mxu0 0.0
      %2985 = vmatpush2.msra.mxu0 0.0
      %2986 = vmatprep.subr.mxu0 0.0
      %2987 = vmatpush2.msra.mxu0 0.0
      %2988 = vmatprep.subr.mxu0 0.0
      %2989 = vmatpush2.msra.mxu0 0.0
      %2990 = vmatprep.subr.mxu0 0.0
      %2991 = vmatpush2.msra.mxu0 0.0
      %2992 = vmatprep.subr.mxu0 0.0
      %2993 = vmatpush2.msra.mxu0 0.0
      %2994 = vmatprep.subr.mxu0 0.0
      %2995 = vmatpush2.msra.mxu0 0.0
      %2996 = vmatprep.subr.mxu0 0.0
      %2997 = vmatpush2.msra.mxu0 0.0
      %2998 = vmatprep.subr.mxu0 0.0
      %2999 = vmatpush2.msra.mxu0 0.0
      %3000 = vmatprep.subr.mxu0 0.0
      %3001 = vmatpush2.msra.mxu0 0.0
      %3002 = vmatprep.subr.mxu0 0.0
      %3003 = vmatpush2.msra.mxu0 0.0
      %3004 = vmatprep.subr.mxu0 0.0
      %3005 = vmatpush2.msra.mxu0 0.0
      %3006 = vmatprep.mubr.f32.mxu0 0.0
      %3007 = vmatmul.mubr.f32.gmra.mxu0 %v2940
      %v3008 = vpop.f32.mrf.mxu0
      %v3009 = vadd.f32 0.0, %v3008
      %v3010 = vpop.f32.mrf.mxu0
      %3011 = vdwg.mxu0
      %v3012 = vadd.f32 %v2773, %v3009
      %s3013 = scalar_lea.vmem %s14, 640
      %v3014 = vld [vmem:[%s3013] sm:$0xff]
      %v3015 = vld [vmem:[%s3013 + $0x8] sm:$0xff]
      %v3016 = vld [vmem:[%s3013 + $0x10] sm:$0xff]
      %v3017 = vld [vmem:[%s3013 + $0x18] sm:$0xff]
      %v3018 = vld [vmem:[%s3013 + $0x20] sm:$0xff]
      %v3019 = vld [vmem:[%s3013 + $0x28] sm:$0xff]
      %v3020 = vld [vmem:[%s3013 + $0x30] sm:$0xff]
      %v3021 = vld [vmem:[%s3013 + $0x38] sm:$0xff]
      %v3022 = vld [vmem:[%s3013 + $0x40] sm:$0xff]
      %v3023 = vld [vmem:[%s3013 + $0x48] sm:$0xff]
      %v3024 = vld [vmem:[%s3013 + $0x50] sm:$0xff]
      %v3025 = vld [vmem:[%s3013 + $0x58] sm:$0xff]
      %v3026 = vld [vmem:[%s3013 + $0x60] sm:$0xff]
      %v3027 = vld [vmem:[%s3013 + $0x68] sm:$0xff]
      %v3028 = vld [vmem:[%s3013 + $0x70] sm:$0xff]
      %v3029 = vld [vmem:[%s3013 + $0x78] sm:$0xff]
      %3030 = vmatprep.subr.mxu0 0.0
      %3031 = vmatpush1.msra.mxu0 %v3029
      %3032 = vmatprep.subr.mxu0 0.0
      %3033 = vmatpush1.msra.mxu0 %v3028
      %3034 = vmatprep.subr.mxu0 0.0
      %3035 = vmatpush1.msra.mxu0 %v3027
      %3036 = vmatprep.subr.mxu0 0.0
      %3037 = vmatpush1.msra.mxu0 %v3026
      %3038 = vmatprep.subr.mxu0 0.0
      %3039 = vmatpush1.msra.mxu0 %v3025
      %3040 = vmatprep.subr.mxu0 0.0
      %3041 = vmatpush1.msra.mxu0 %v3024
      %3042 = vmatprep.subr.mxu0 0.0
      %3043 = vmatpush1.msra.mxu0 %v3023
      %3044 = vmatprep.subr.mxu0 0.0
      %3045 = vmatpush1.msra.mxu0 %v3022
      %3046 = vmatprep.subr.mxu0 0.0
      %3047 = vmatpush1.msra.mxu0 %v3021
      %3048 = vmatprep.subr.mxu0 0.0
      %3049 = vmatpush1.msra.mxu0 %v3020
      %3050 = vmatprep.subr.mxu0 0.0
      %3051 = vmatpush1.msra.mxu0 %v3019
      %3052 = vmatprep.subr.mxu0 0.0
      %3053 = vmatpush1.msra.mxu0 %v3018
      %3054 = vmatprep.subr.mxu0 0.0
      %3055 = vmatpush1.msra.mxu0 %v3017
      %3056 = vmatprep.subr.mxu0 0.0
      %3057 = vmatpush1.msra.mxu0 %v3016
      %3058 = vmatprep.subr.mxu0 0.0
      %3059 = vmatpush1.msra.mxu0 %v3015
      %3060 = vmatprep.subr.mxu0 0.0
      %3061 = vmatpush1.msra.mxu0 %v3014
      %3062 = vmatprep.subr.mxu0 0.0
      %3063 = vmatpush2.msra.mxu0 0.0
      %3064 = vmatprep.subr.mxu0 0.0
      %3065 = vmatpush2.msra.mxu0 0.0
      %3066 = vmatprep.subr.mxu0 0.0
      %3067 = vmatpush2.msra.mxu0 0.0
      %3068 = vmatprep.subr.mxu0 0.0
      %3069 = vmatpush2.msra.mxu0 0.0
      %3070 = vmatprep.subr.mxu0 0.0
      %3071 = vmatpush2.msra.mxu0 0.0
      %3072 = vmatprep.subr.mxu0 0.0
      %3073 = vmatpush2.msra.mxu0 0.0
      %3074 = vmatprep.subr.mxu0 0.0
      %3075 = vmatpush2.msra.mxu0 0.0
      %3076 = vmatprep.subr.mxu0 0.0
      %3077 = vmatpush2.msra.mxu0 0.0
      %3078 = vmatprep.subr.mxu0 0.0
      %3079 = vmatpush2.msra.mxu0 0.0
      %3080 = vmatprep.subr.mxu0 0.0
      %3081 = vmatpush2.msra.mxu0 0.0
      %3082 = vmatprep.subr.mxu0 0.0
      %3083 = vmatpush2.msra.mxu0 0.0
      %3084 = vmatprep.subr.mxu0 0.0
      %3085 = vmatpush2.msra.mxu0 0.0
      %3086 = vmatprep.subr.mxu0 0.0
      %3087 = vmatpush2.msra.mxu0 0.0
      %3088 = vmatprep.subr.mxu0 0.0
      %3089 = vmatpush2.msra.mxu0 0.0
      %3090 = vmatprep.subr.mxu0 0.0
      %3091 = vmatpush2.msra.mxu0 0.0
      %3092 = vmatprep.subr.mxu0 0.0
      %3093 = vmatpush2.msra.mxu0 0.0
      %3094 = vmatprep.mubr.f32.mxu0 0.0
      %3095 = vmatmul.mubr.f32.gmra.mxu0 %v1813
      %v3096 = vpop.f32.mrf.mxu0
      %v3097 = vadd.f32 0.0, %v3096
      %v3098 = vpop.f32.mrf.mxu0
      %3099 = vdwg.mxu0
      %s3100 = scalar_lea.vmem %s15, 40
      %v3101 = vld [vmem:[%s3100] sm:$0xff]
      %v3103 = vsel %vm690, %v3101, 0
      %3105 = vmatprep.subr.mxu0 0.0
      %3106 = vmatpush1.msra.mxu0 0.0
      %3107 = vmatprep.subr.mxu0 0.0
      %3108 = vmatpush1.msra.mxu0 0.0
      %3109 = vmatprep.subr.mxu0 0.0
      %3110 = vmatpush1.msra.mxu0 0.0
      %3111 = vmatprep.subr.mxu0 0.0
      %3112 = vmatpush1.msra.mxu0 0.0
      %3113 = vmatprep.subr.mxu0 0.0
      %3114 = vmatpush1.msra.mxu0 0.0
      %3115 = vmatprep.subr.mxu0 0.0
      %3116 = vmatpush1.msra.mxu0 0.0
      %3117 = vmatprep.subr.mxu0 0.0
      %3118 = vmatpush1.msra.mxu0 0.0
      %3119 = vmatprep.subr.mxu0 0.0
      %3120 = vmatpush1.msra.mxu0 0.0
      %3121 = vmatprep.subr.mxu0 0.0
      %3122 = vmatpush1.msra.mxu0 0.0
      %3123 = vmatprep.subr.mxu0 0.0
      %3124 = vmatpush1.msra.mxu0 0.0
      %3125 = vmatprep.subr.mxu0 0.0
      %3126 = vmatpush1.msra.mxu0 0.0
      %3127 = vmatprep.subr.mxu0 0.0
      %3128 = vmatpush1.msra.mxu0 0.0
      %3129 = vmatprep.subr.mxu0 0.0
      %3130 = vmatpush1.msra.mxu0 0.0
      %3131 = vmatprep.subr.mxu0 0.0
      %3132 = vmatpush1.msra.mxu0 0.0
      %3133 = vmatprep.subr.mxu0 0.0
      %3134 = vmatpush1.msra.mxu0 0.0
      %3135 = vmatprep.subr.mxu0 0.0
      %3136 = vmatpush1.msra.mxu0 %v3097
      %3137 = vmatprep.subr.mxu0 0.0
      %3138 = vmatpush2.msra.mxu0 0.0
      %3139 = vmatprep.subr.mxu0 0.0
      %3140 = vmatpush2.msra.mxu0 0.0
      %3141 = vmatprep.subr.mxu0 0.0
      %3142 = vmatpush2.msra.mxu0 0.0
      %3143 = vmatprep.subr.mxu0 0.0
      %3144 = vmatpush2.msra.mxu0 0.0
      %3145 = vmatprep.subr.mxu0 0.0
      %3146 = vmatpush2.msra.mxu0 0.0
      %3147 = vmatprep.subr.mxu0 0.0
      %3148 = vmatpush2.msra.mxu0 0.0
      %3149 = vmatprep.subr.mxu0 0.0
      %3150 = vmatpush2.msra.mxu0 0.0
      %3151 = vmatprep.subr.mxu0 0.0
      %3152 = vmatpush2.msra.mxu0 0.0
      %3153 = vmatprep.subr.mxu0 0.0
      %3154 = vmatpush2.msra.mxu0 0.0
      %3155 = vmatprep.subr.mxu0 0.0
      %3156 = vmatpush2.msra.mxu0 0.0
      %3157 = vmatprep.subr.mxu0 0.0
      %3158 = vmatpush2.msra.mxu0 0.0
      %3159 = vmatprep.subr.mxu0 0.0
      %3160 = vmatpush2.msra.mxu0 0.0
      %3161 = vmatprep.subr.mxu0 0.0
      %3162 = vmatpush2.msra.mxu0 0.0
      %3163 = vmatprep.subr.mxu0 0.0
      %3164 = vmatpush2.msra.mxu0 0.0
      %3165 = vmatprep.subr.mxu0 0.0
      %3166 = vmatpush2.msra.mxu0 0.0
      %3167 = vmatprep.subr.mxu0 0.0
      %3168 = vmatpush2.msra.mxu0 0.0
      %3169 = vmatprep.mubr.f32.mxu0 0.0
      %3170 = vmatmul.mubr.f32.gmra.mxu0 %v3103
      %v3171 = vpop.f32.mrf.mxu0
      %v3172 = vadd.f32 0.0, %v3171
      %v3173 = vpop.f32.mrf.mxu0
      %3174 = vdwg.mxu0
      %v3175 = vadd.f32 %v2936, %v3172
      %s3176 = scalar_lea.vmem %s16, 40
      %v3177 = vld [vmem:[%s3176] sm:$0xff]
      %v3179 = vsel %vm690, %v3177, 0
      %3181 = vmatprep.subr.mxu0 0.0
      %3182 = vmatpush1.msra.mxu0 0.0
      %3183 = vmatprep.subr.mxu0 0.0
      %3184 = vmatpush1.msra.mxu0 0.0
      %3185 = vmatprep.subr.mxu0 0.0
      %3186 = vmatpush1.msra.mxu0 0.0
      %3187 = vmatprep.subr.mxu0 0.0
      %3188 = vmatpush1.msra.mxu0 0.0
      %3189 = vmatprep.subr.mxu0 0.0
      %3190 = vmatpush1.msra.mxu0 0.0
      %3191 = vmatprep.subr.mxu0 0.0
      %3192 = vmatpush1.msra.mxu0 0.0
      %3193 = vmatprep.subr.mxu0 0.0
      %3194 = vmatpush1.msra.mxu0 0.0
      %3195 = vmatprep.subr.mxu0 0.0
      %3196 = vmatpush1.msra.mxu0 0.0
      %3197 = vmatprep.subr.mxu0 0.0
      %3198 = vmatpush1.msra.mxu0 0.0
      %3199 = vmatprep.subr.mxu0 0.0
      %3200 = vmatpush1.msra.mxu0 0.0
      %3201 = vmatprep.subr.mxu0 0.0
      %3202 = vmatpush1.msra.mxu0 0.0
      %3203 = vmatprep.subr.mxu0 0.0
      %3204 = vmatpush1.msra.mxu0 0.0
      %3205 = vmatprep.subr.mxu0 0.0
      %3206 = vmatpush1.msra.mxu0 0.0
      %3207 = vmatprep.subr.mxu0 0.0
      %3208 = vmatpush1.msra.mxu0 0.0
      %3209 = vmatprep.subr.mxu0 0.0
      %3210 = vmatpush1.msra.mxu0 0.0
      %3211 = vmatprep.subr.mxu0 0.0
      %3212 = vmatpush1.msra.mxu0 %v3097
      %3213 = vmatprep.subr.mxu0 0.0
      %3214 = vmatpush2.msra.mxu0 0.0
      %3215 = vmatprep.subr.mxu0 0.0
      %3216 = vmatpush2.msra.mxu0 0.0
      %3217 = vmatprep.subr.mxu0 0.0
      %3218 = vmatpush2.msra.mxu0 0.0
      %3219 = vmatprep.subr.mxu0 0.0
      %3220 = vmatpush2.msra.mxu0 0.0
      %3221 = vmatprep.subr.mxu0 0.0
      %3222 = vmatpush2.msra.mxu0 0.0
      %3223 = vmatprep.subr.mxu0 0.0
      %3224 = vmatpush2.msra.mxu0 0.0
      %3225 = vmatprep.subr.mxu0 0.0
      %3226 = vmatpush2.msra.mxu0 0.0
      %3227 = vmatprep.subr.mxu0 0.0
      %3228 = vmatpush2.msra.mxu0 0.0
      %3229 = vmatprep.subr.mxu0 0.0
      %3230 = vmatpush2.msra.mxu0 0.0
      %3231 = vmatprep.subr.mxu0 0.0
      %3232 = vmatpush2.msra.mxu0 0.0
      %3233 = vmatprep.subr.mxu0 0.0
      %3234 = vmatpush2.msra.mxu0 0.0
      %3235 = vmatprep.subr.mxu0 0.0
      %3236 = vmatpush2.msra.mxu0 0.0
      %3237 = vmatprep.subr.mxu0 0.0
      %3238 = vmatpush2.msra.mxu0 0.0
      %3239 = vmatprep.subr.mxu0 0.0
      %3240 = vmatpush2.msra.mxu0 0.0
      %3241 = vmatprep.subr.mxu0 0.0
      %3242 = vmatpush2.msra.mxu0 0.0
      %3243 = vmatprep.subr.mxu0 0.0
      %3244 = vmatpush2.msra.mxu0 0.0
      %3245 = vmatprep.mubr.f32.mxu0 0.0
      %3246 = vmatmul.mubr.f32.gmra.mxu0 %v3179
      %v3247 = vpop.f32.mrf.mxu0
      %v3248 = vadd.f32 0.0, %v3247
      %v3249 = vpop.f32.mrf.mxu0
      %3250 = vdwg.mxu0
      %v3251 = vadd.f32 %v3012, %v3248
      %s3252 = scalar_lea.vmem %s14, 768
      %v3253 = vld [vmem:[%s3252] sm:$0xff]
      %v3254 = vld [vmem:[%s3252 + $0x8] sm:$0xff]
      %v3255 = vld [vmem:[%s3252 + $0x10] sm:$0xff]
      %v3256 = vld [vmem:[%s3252 + $0x18] sm:$0xff]
      %v3257 = vld [vmem:[%s3252 + $0x20] sm:$0xff]
      %v3258 = vld [vmem:[%s3252 + $0x28] sm:$0xff]
      %v3259 = vld [vmem:[%s3252 + $0x30] sm:$0xff]
      %v3260 = vld [vmem:[%s3252 + $0x38] sm:$0xff]
      %v3261 = vld [vmem:[%s3252 + $0x40] sm:$0xff]
      %v3262 = vld [vmem:[%s3252 + $0x48] sm:$0xff]
      %v3263 = vld [vmem:[%s3252 + $0x50] sm:$0xff]
      %v3264 = vld [vmem:[%s3252 + $0x58] sm:$0xff]
      %v3265 = vld [vmem:[%s3252 + $0x60] sm:$0xff]
      %v3266 = vld [vmem:[%s3252 + $0x68] sm:$0xff]
      %v3267 = vld [vmem:[%s3252 + $0x70] sm:$0xff]
      %v3268 = vld [vmem:[%s3252 + $0x78] sm:$0xff]
      %3269 = vmatprep.subr.mxu0 0.0
      %3270 = vmatpush1.msra.mxu0 %v3268
      %3271 = vmatprep.subr.mxu0 0.0
      %3272 = vmatpush1.msra.mxu0 %v3267
      %3273 = vmatprep.subr.mxu0 0.0
      %3274 = vmatpush1.msra.mxu0 %v3266
      %3275 = vmatprep.subr.mxu0 0.0
      %3276 = vmatpush1.msra.mxu0 %v3265
      %3277 = vmatprep.subr.mxu0 0.0
      %3278 = vmatpush1.msra.mxu0 %v3264
      %3279 = vmatprep.subr.mxu0 0.0
      %3280 = vmatpush1.msra.mxu0 %v3263
      %3281 = vmatprep.subr.mxu0 0.0
      %3282 = vmatpush1.msra.mxu0 %v3262
      %3283 = vmatprep.subr.mxu0 0.0
      %3284 = vmatpush1.msra.mxu0 %v3261
      %3285 = vmatprep.subr.mxu0 0.0
      %3286 = vmatpush1.msra.mxu0 %v3260
      %3287 = vmatprep.subr.mxu0 0.0
      %3288 = vmatpush1.msra.mxu0 %v3259
      %3289 = vmatprep.subr.mxu0 0.0
      %3290 = vmatpush1.msra.mxu0 %v3258
      %3291 = vmatprep.subr.mxu0 0.0
      %3292 = vmatpush1.msra.mxu0 %v3257
      %3293 = vmatprep.subr.mxu0 0.0
      %3294 = vmatpush1.msra.mxu0 %v3256
      %3295 = vmatprep.subr.mxu0 0.0
      %3296 = vmatpush1.msra.mxu0 %v3255
      %3297 = vmatprep.subr.mxu0 0.0
      %3298 = vmatpush1.msra.mxu0 %v3254
      %3299 = vmatprep.subr.mxu0 0.0
      %3300 = vmatpush1.msra.mxu0 %v3253
      %3301 = vmatprep.subr.mxu0 0.0
      %3302 = vmatpush2.msra.mxu0 0.0
      %3303 = vmatprep.subr.mxu0 0.0
      %3304 = vmatpush2.msra.mxu0 0.0
      %3305 = vmatprep.subr.mxu0 0.0
      %3306 = vmatpush2.msra.mxu0 0.0
      %3307 = vmatprep.subr.mxu0 0.0
      %3308 = vmatpush2.msra.mxu0 0.0
      %3309 = vmatprep.subr.mxu0 0.0
      %3310 = vmatpush2.msra.mxu0 0.0
      %3311 = vmatprep.subr.mxu0 0.0
      %3312 = vmatpush2.msra.mxu0 0.0
      %3313 = vmatprep.subr.mxu0 0.0
      %3314 = vmatpush2.msra.mxu0 0.0
      %3315 = vmatprep.subr.mxu0 0.0
      %3316 = vmatpush2.msra.mxu0 0.0
      %3317 = vmatprep.subr.mxu0 0.0
      %3318 = vmatpush2.msra.mxu0 0.0
      %3319 = vmatprep.subr.mxu0 0.0
      %3320 = vmatpush2.msra.mxu0 0.0
      %3321 = vmatprep.subr.mxu0 0.0
      %3322 = vmatpush2.msra.mxu0 0.0
      %3323 = vmatprep.subr.mxu0 0.0
      %3324 = vmatpush2.msra.mxu0 0.0
      %3325 = vmatprep.subr.mxu0 0.0
      %3326 = vmatpush2.msra.mxu0 0.0
      %3327 = vmatprep.subr.mxu0 0.0
      %3328 = vmatpush2.msra.mxu0 0.0
      %3329 = vmatprep.subr.mxu0 0.0
      %3330 = vmatpush2.msra.mxu0 0.0
      %3331 = vmatprep.subr.mxu0 0.0
      %3332 = vmatpush2.msra.mxu0 0.0
      %3333 = vmatprep.mubr.f32.mxu0 0.0
      %3334 = vmatmul.mubr.f32.gmra.mxu0 %v1813
      %v3335 = vpop.f32.mrf.mxu0
      %v3336 = vadd.f32 0.0, %v3335
      %v3337 = vpop.f32.mrf.mxu0
      %3338 = vdwg.mxu0
      %s3339 = scalar_lea.vmem %s15, 48
      %v3340 = vld [vmem:[%s3339] sm:$0xff]
      %v3342 = vsel %vm690, %v3340, 0
      %3344 = vmatprep.subr.mxu0 0.0
      %3345 = vmatpush1.msra.mxu0 0.0
      %3346 = vmatprep.subr.mxu0 0.0
      %3347 = vmatpush1.msra.mxu0 0.0
      %3348 = vmatprep.subr.mxu0 0.0
      %3349 = vmatpush1.msra.mxu0 0.0
      %3350 = vmatprep.subr.mxu0 0.0
      %3351 = vmatpush1.msra.mxu0 0.0
      %3352 = vmatprep.subr.mxu0 0.0
      %3353 = vmatpush1.msra.mxu0 0.0
      %3354 = vmatprep.subr.mxu0 0.0
      %3355 = vmatpush1.msra.mxu0 0.0
      %3356 = vmatprep.subr.mxu0 0.0
      %3357 = vmatpush1.msra.mxu0 0.0
      %3358 = vmatprep.subr.mxu0 0.0
      %3359 = vmatpush1.msra.mxu0 0.0
      %3360 = vmatprep.subr.mxu0 0.0
      %3361 = vmatpush1.msra.mxu0 0.0
      %3362 = vmatprep.subr.mxu0 0.0
      %3363 = vmatpush1.msra.mxu0 0.0
      %3364 = vmatprep.subr.mxu0 0.0
      %3365 = vmatpush1.msra.mxu0 0.0
      %3366 = vmatprep.subr.mxu0 0.0
      %3367 = vmatpush1.msra.mxu0 0.0
      %3368 = vmatprep.subr.mxu0 0.0
      %3369 = vmatpush1.msra.mxu0 0.0
      %3370 = vmatprep.subr.mxu0 0.0
      %3371 = vmatpush1.msra.mxu0 0.0
      %3372 = vmatprep.subr.mxu0 0.0
      %3373 = vmatpush1.msra.mxu0 0.0
      %3374 = vmatprep.subr.mxu0 0.0
      %3375 = vmatpush1.msra.mxu0 %v3336
      %3376 = vmatprep.subr.mxu0 0.0
      %3377 = vmatpush2.msra.mxu0 0.0
      %3378 = vmatprep.subr.mxu0 0.0
      %3379 = vmatpush2.msra.mxu0 0.0
      %3380 = vmatprep.subr.mxu0 0.0
      %3381 = vmatpush2.msra.mxu0 0.0
      %3382 = vmatprep.subr.mxu0 0.0
      %3383 = vmatpush2.msra.mxu0 0.0
      %3384 = vmatprep.subr.mxu0 0.0
      %3385 = vmatpush2.msra.mxu0 0.0
      %3386 = vmatprep.subr.mxu0 0.0
      %3387 = vmatpush2.msra.mxu0 0.0
      %3388 = vmatprep.subr.mxu0 0.0
      %3389 = vmatpush2.msra.mxu0 0.0
      %3390 = vmatprep.subr.mxu0 0.0
      %3391 = vmatpush2.msra.mxu0 0.0
      %3392 = vmatprep.subr.mxu0 0.0
      %3393 = vmatpush2.msra.mxu0 0.0
      %3394 = vmatprep.subr.mxu0 0.0
      %3395 = vmatpush2.msra.mxu0 0.0
      %3396 = vmatprep.subr.mxu0 0.0
      %3397 = vmatpush2.msra.mxu0 0.0
      %3398 = vmatprep.subr.mxu0 0.0
      %3399 = vmatpush2.msra.mxu0 0.0
      %3400 = vmatprep.subr.mxu0 0.0
      %3401 = vmatpush2.msra.mxu0 0.0
      %3402 = vmatprep.subr.mxu0 0.0
      %3403 = vmatpush2.msra.mxu0 0.0
      %3404 = vmatprep.subr.mxu0 0.0
      %3405 = vmatpush2.msra.mxu0 0.0
      %3406 = vmatprep.subr.mxu0 0.0
      %3407 = vmatpush2.msra.mxu0 0.0
      %3408 = vmatprep.mubr.f32.mxu0 0.0
      %3409 = vmatmul.mubr.f32.gmra.mxu0 %v3342
      %v3410 = vpop.f32.mrf.mxu0
      %v3411 = vadd.f32 0.0, %v3410
      %v3412 = vpop.f32.mrf.mxu0
      %3413 = vdwg.mxu0
      %v3414 = vadd.f32 %v3175, %v3411
      %s3415 = scalar_lea.vmem %s16, 48
      %v3416 = vld [vmem:[%s3415] sm:$0xff]
      %v3418 = vsel %vm690, %v3416, 0
      %3420 = vmatprep.subr.mxu0 0.0
      %3421 = vmatpush1.msra.mxu0 0.0
      %3422 = vmatprep.subr.mxu0 0.0
      %3423 = vmatpush1.msra.mxu0 0.0
      %3424 = vmatprep.subr.mxu0 0.0
      %3425 = vmatpush1.msra.mxu0 0.0
      %3426 = vmatprep.subr.mxu0 0.0
      %3427 = vmatpush1.msra.mxu0 0.0
      %3428 = vmatprep.subr.mxu0 0.0
      %3429 = vmatpush1.msra.mxu0 0.0
      %3430 = vmatprep.subr.mxu0 0.0
      %3431 = vmatpush1.msra.mxu0 0.0
      %3432 = vmatprep.subr.mxu0 0.0
      %3433 = vmatpush1.msra.mxu0 0.0
      %3434 = vmatprep.subr.mxu0 0.0
      %3435 = vmatpush1.msra.mxu0 0.0
      %3436 = vmatprep.subr.mxu0 0.0
      %3437 = vmatpush1.msra.mxu0 0.0
      %3438 = vmatprep.subr.mxu0 0.0
      %3439 = vmatpush1.msra.mxu0 0.0
      %3440 = vmatprep.subr.mxu0 0.0
      %3441 = vmatpush1.msra.mxu0 0.0
      %3442 = vmatprep.subr.mxu0 0.0
      %3443 = vmatpush1.msra.mxu0 0.0
      %3444 = vmatprep.subr.mxu0 0.0
      %3445 = vmatpush1.msra.mxu0 0.0
      %3446 = vmatprep.subr.mxu0 0.0
      %3447 = vmatpush1.msra.mxu0 0.0
      %3448 = vmatprep.subr.mxu0 0.0
      %3449 = vmatpush1.msra.mxu0 0.0
      %3450 = vmatprep.subr.mxu0 0.0
      %3451 = vmatpush1.msra.mxu0 %v3336
      %3452 = vmatprep.subr.mxu0 0.0
      %3453 = vmatpush2.msra.mxu0 0.0
      %3454 = vmatprep.subr.mxu0 0.0
      %3455 = vmatpush2.msra.mxu0 0.0
      %3456 = vmatprep.subr.mxu0 0.0
      %3457 = vmatpush2.msra.mxu0 0.0
      %3458 = vmatprep.subr.mxu0 0.0
      %3459 = vmatpush2.msra.mxu0 0.0
      %3460 = vmatprep.subr.mxu0 0.0
      %3461 = vmatpush2.msra.mxu0 0.0
      %3462 = vmatprep.subr.mxu0 0.0
      %3463 = vmatpush2.msra.mxu0 0.0
      %3464 = vmatprep.subr.mxu0 0.0
      %3465 = vmatpush2.msra.mxu0 0.0
      %3466 = vmatprep.subr.mxu0 0.0
      %3467 = vmatpush2.msra.mxu0 0.0
      %3468 = vmatprep.subr.mxu0 0.0
      %3469 = vmatpush2.msra.mxu0 0.0
      %3470 = vmatprep.subr.mxu0 0.0
      %3471 = vmatpush2.msra.mxu0 0.0
      %3472 = vmatprep.subr.mxu0 0.0
      %3473 = vmatpush2.msra.mxu0 0.0
      %3474 = vmatprep.subr.mxu0 0.0
      %3475 = vmatpush2.msra.mxu0 0.0
      %3476 = vmatprep.subr.mxu0 0.0
      %3477 = vmatpush2.msra.mxu0 0.0
      %3478 = vmatprep.subr.mxu0 0.0
      %3479 = vmatpush2.msra.mxu0 0.0
      %3480 = vmatprep.subr.mxu0 0.0
      %3481 = vmatpush2.msra.mxu0 0.0
      %3482 = vmatprep.subr.mxu0 0.0
      %3483 = vmatpush2.msra.mxu0 0.0
      %3484 = vmatprep.mubr.f32.mxu0 0.0
      %3485 = vmatmul.mubr.f32.gmra.mxu0 %v3418
      %v3486 = vpop.f32.mrf.mxu0
      %v3487 = vadd.f32 0.0, %v3486
      %v3488 = vpop.f32.mrf.mxu0
      %3489 = vdwg.mxu0
      %v3490 = vadd.f32 %v3251, %v3487
      %s3491 = scalar_lea.vmem %s14, 896
      %v3492 = vld [vmem:[%s3491] sm:$0xff]
      %v3493 = vld [vmem:[%s3491 + $0x8] sm:$0xff]
      %v3494 = vld [vmem:[%s3491 + $0x10] sm:$0xff]
      %v3495 = vld [vmem:[%s3491 + $0x18] sm:$0xff]
      %v3496 = vld [vmem:[%s3491 + $0x20] sm:$0xff]
      %v3497 = vld [vmem:[%s3491 + $0x28] sm:$0xff]
      %v3498 = vld [vmem:[%s3491 + $0x30] sm:$0xff]
      %v3499 = vld [vmem:[%s3491 + $0x38] sm:$0xff]
      %v3500 = vld [vmem:[%s3491 + $0x40] sm:$0xff]
      %v3501 = vld [vmem:[%s3491 + $0x48] sm:$0xff]
      %v3502 = vld [vmem:[%s3491 + $0x50] sm:$0xff]
      %v3503 = vld [vmem:[%s3491 + $0x58] sm:$0xff]
      %v3504 = vld [vmem:[%s3491 + $0x60] sm:$0xff]
      %v3505 = vld [vmem:[%s3491 + $0x68] sm:$0xff]
      %v3506 = vld [vmem:[%s3491 + $0x70] sm:$0xff]
      %v3507 = vld [vmem:[%s3491 + $0x78] sm:$0xff]
      %3508 = vmatprep.subr.mxu0 0.0
      %3509 = vmatpush1.msra.mxu0 %v3507
      %3510 = vmatprep.subr.mxu0 0.0
      %3511 = vmatpush1.msra.mxu0 %v3506
      %3512 = vmatprep.subr.mxu0 0.0
      %3513 = vmatpush1.msra.mxu0 %v3505
      %3514 = vmatprep.subr.mxu0 0.0
      %3515 = vmatpush1.msra.mxu0 %v3504
      %3516 = vmatprep.subr.mxu0 0.0
      %3517 = vmatpush1.msra.mxu0 %v3503
      %3518 = vmatprep.subr.mxu0 0.0
      %3519 = vmatpush1.msra.mxu0 %v3502
      %3520 = vmatprep.subr.mxu0 0.0
      %3521 = vmatpush1.msra.mxu0 %v3501
      %3522 = vmatprep.subr.mxu0 0.0
      %3523 = vmatpush1.msra.mxu0 %v3500
      %3524 = vmatprep.subr.mxu0 0.0
      %3525 = vmatpush1.msra.mxu0 %v3499
      %3526 = vmatprep.subr.mxu0 0.0
      %3527 = vmatpush1.msra.mxu0 %v3498
      %3528 = vmatprep.subr.mxu0 0.0
      %3529 = vmatpush1.msra.mxu0 %v3497
      %3530 = vmatprep.subr.mxu0 0.0
      %3531 = vmatpush1.msra.mxu0 %v3496
      %3532 = vmatprep.subr.mxu0 0.0
      %3533 = vmatpush1.msra.mxu0 %v3495
      %3534 = vmatprep.subr.mxu0 0.0
      %3535 = vmatpush1.msra.mxu0 %v3494
      %3536 = vmatprep.subr.mxu0 0.0
      %3537 = vmatpush1.msra.mxu0 %v3493
      %3538 = vmatprep.subr.mxu0 0.0
      %3539 = vmatpush1.msra.mxu0 %v3492
      %3540 = vmatprep.subr.mxu0 0.0
      %3541 = vmatpush2.msra.mxu0 0.0
      %3542 = vmatprep.subr.mxu0 0.0
      %3543 = vmatpush2.msra.mxu0 0.0
      %3544 = vmatprep.subr.mxu0 0.0
      %3545 = vmatpush2.msra.mxu0 0.0
      %3546 = vmatprep.subr.mxu0 0.0
      %3547 = vmatpush2.msra.mxu0 0.0
      %3548 = vmatprep.subr.mxu0 0.0
      %3549 = vmatpush2.msra.mxu0 0.0
      %3550 = vmatprep.subr.mxu0 0.0
      %3551 = vmatpush2.msra.mxu0 0.0
      %3552 = vmatprep.subr.mxu0 0.0
      %3553 = vmatpush2.msra.mxu0 0.0
      %3554 = vmatprep.subr.mxu0 0.0
      %3555 = vmatpush2.msra.mxu0 0.0
      %3556 = vmatprep.subr.mxu0 0.0
      %3557 = vmatpush2.msra.mxu0 0.0
      %3558 = vmatprep.subr.mxu0 0.0
      %3559 = vmatpush2.msra.mxu0 0.0
      %3560 = vmatprep.subr.mxu0 0.0
      %3561 = vmatpush2.msra.mxu0 0.0
      %3562 = vmatprep.subr.mxu0 0.0
      %3563 = vmatpush2.msra.mxu0 0.0
      %3564 = vmatprep.subr.mxu0 0.0
      %3565 = vmatpush2.msra.mxu0 0.0
      %3566 = vmatprep.subr.mxu0 0.0
      %3567 = vmatpush2.msra.mxu0 0.0
      %3568 = vmatprep.subr.mxu0 0.0
      %3569 = vmatpush2.msra.mxu0 0.0
      %3570 = vmatprep.subr.mxu0 0.0
      %3571 = vmatpush2.msra.mxu0 0.0
      %3572 = vmatprep.mubr.f32.mxu0 0.0
      %3573 = vmatmul.mubr.f32.gmra.mxu0 %v1813
      %v3574 = vpop.f32.mrf.mxu0
      %v3575 = vadd.f32 0.0, %v3574
      %v3576 = vpop.f32.mrf.mxu0
      %3577 = vdwg.mxu0
      %s3578 = scalar_lea.vmem %s15, 56
      %v3579 = vld [vmem:[%s3578] sm:$0xff]
      %v3581 = vsel %vm690, %v3579, 0
      %3583 = vmatprep.subr.mxu0 0.0
      %3584 = vmatpush1.msra.mxu0 0.0
      %3585 = vmatprep.subr.mxu0 0.0
      %3586 = vmatpush1.msra.mxu0 0.0
      %3587 = vmatprep.subr.mxu0 0.0
      %3588 = vmatpush1.msra.mxu0 0.0
      %3589 = vmatprep.subr.mxu0 0.0
      %3590 = vmatpush1.msra.mxu0 0.0
      %3591 = vmatprep.subr.mxu0 0.0
      %3592 = vmatpush1.msra.mxu0 0.0
      %3593 = vmatprep.subr.mxu0 0.0
      %3594 = vmatpush1.msra.mxu0 0.0
      %3595 = vmatprep.subr.mxu0 0.0
      %3596 = vmatpush1.msra.mxu0 0.0
      %3597 = vmatprep.subr.mxu0 0.0
      %3598 = vmatpush1.msra.mxu0 0.0
      %3599 = vmatprep.subr.mxu0 0.0
      %3600 = vmatpush1.msra.mxu0 0.0
      %3601 = vmatprep.subr.mxu0 0.0
      %3602 = vmatpush1.msra.mxu0 0.0
      %3603 = vmatprep.subr.mxu0 0.0
      %3604 = vmatpush1.msra.mxu0 0.0
      %3605 = vmatprep.subr.mxu0 0.0
      %3606 = vmatpush1.msra.mxu0 0.0
      %3607 = vmatprep.subr.mxu0 0.0
      %3608 = vmatpush1.msra.mxu0 0.0
      %3609 = vmatprep.subr.mxu0 0.0
      %3610 = vmatpush1.msra.mxu0 0.0
      %3611 = vmatprep.subr.mxu0 0.0
      %3612 = vmatpush1.msra.mxu0 0.0
      %3613 = vmatprep.subr.mxu0 0.0
      %3614 = vmatpush1.msra.mxu0 %v3575
      %3615 = vmatprep.subr.mxu0 0.0
      %3616 = vmatpush2.msra.mxu0 0.0
      %3617 = vmatprep.subr.mxu0 0.0
      %3618 = vmatpush2.msra.mxu0 0.0
      %3619 = vmatprep.subr.mxu0 0.0
      %3620 = vmatpush2.msra.mxu0 0.0
      %3621 = vmatprep.subr.mxu0 0.0
      %3622 = vmatpush2.msra.mxu0 0.0
      %3623 = vmatprep.subr.mxu0 0.0
      %3624 = vmatpush2.msra.mxu0 0.0
      %3625 = vmatprep.subr.mxu0 0.0
      %3626 = vmatpush2.msra.mxu0 0.0
      %3627 = vmatprep.subr.mxu0 0.0
      %3628 = vmatpush2.msra.mxu0 0.0
      %3629 = vmatprep.subr.mxu0 0.0
      %3630 = vmatpush2.msra.mxu0 0.0
      %3631 = vmatprep.subr.mxu0 0.0
      %3632 = vmatpush2.msra.mxu0 0.0
      %3633 = vmatprep.subr.mxu0 0.0
      %3634 = vmatpush2.msra.mxu0 0.0
      %3635 = vmatprep.subr.mxu0 0.0
      %3636 = vmatpush2.msra.mxu0 0.0
      %3637 = vmatprep.subr.mxu0 0.0
      %3638 = vmatpush2.msra.mxu0 0.0
      %3639 = vmatprep.subr.mxu0 0.0
      %3640 = vmatpush2.msra.mxu0 0.0
      %3641 = vmatprep.subr.mxu0 0.0
      %3642 = vmatpush2.msra.mxu0 0.0
      %3643 = vmatprep.subr.mxu0 0.0
      %3644 = vmatpush2.msra.mxu0 0.0
      %3645 = vmatprep.subr.mxu0 0.0
      %3646 = vmatpush2.msra.mxu0 0.0
      %3647 = vmatprep.mubr.f32.mxu0 0.0
      %3648 = vmatmul.mubr.f32.gmra.mxu0 %v3581
      %v3649 = vpop.f32.mrf.mxu0
      %v3650 = vadd.f32 0.0, %v3649
      %v3651 = vpop.f32.mrf.mxu0
      %3652 = vdwg.mxu0
      %v3653 = vadd.f32 %v3414, %v3650
      %s3654 = scalar_lea.vmem %s16, 56
      %v3655 = vld [vmem:[%s3654] sm:$0xff]
      %v3657 = vsel %vm690, %v3655, 0
      %3659 = vmatprep.subr.mxu0 0.0
      %3660 = vmatpush1.msra.mxu0 0.0
      %3661 = vmatprep.subr.mxu0 0.0
      %3662 = vmatpush1.msra.mxu0 0.0
      %3663 = vmatprep.subr.mxu0 0.0
      %3664 = vmatpush1.msra.mxu0 0.0
      %3665 = vmatprep.subr.mxu0 0.0
      %3666 = vmatpush1.msra.mxu0 0.0
      %3667 = vmatprep.subr.mxu0 0.0
      %3668 = vmatpush1.msra.mxu0 0.0
      %3669 = vmatprep.subr.mxu0 0.0
      %3670 = vmatpush1.msra.mxu0 0.0
      %3671 = vmatprep.subr.mxu0 0.0
      %3672 = vmatpush1.msra.mxu0 0.0
      %3673 = vmatprep.subr.mxu0 0.0
      %3674 = vmatpush1.msra.mxu0 0.0
      %3675 = vmatprep.subr.mxu0 0.0
      %3676 = vmatpush1.msra.mxu0 0.0
      %3677 = vmatprep.subr.mxu0 0.0
      %3678 = vmatpush1.msra.mxu0 0.0
      %3679 = vmatprep.subr.mxu0 0.0
      %3680 = vmatpush1.msra.mxu0 0.0
      %3681 = vmatprep.subr.mxu0 0.0
      %3682 = vmatpush1.msra.mxu0 0.0
      %3683 = vmatprep.subr.mxu0 0.0
      %3684 = vmatpush1.msra.mxu0 0.0
      %3685 = vmatprep.subr.mxu0 0.0
      %3686 = vmatpush1.msra.mxu0 0.0
      %3687 = vmatprep.subr.mxu0 0.0
      %3688 = vmatpush1.msra.mxu0 0.0
      %3689 = vmatprep.subr.mxu0 0.0
      %3690 = vmatpush1.msra.mxu0 %v3575
      %3691 = vmatprep.subr.mxu0 0.0
      %3692 = vmatpush2.msra.mxu0 0.0
      %3693 = vmatprep.subr.mxu0 0.0
      %3694 = vmatpush2.msra.mxu0 0.0
      %3695 = vmatprep.subr.mxu0 0.0
      %3696 = vmatpush2.msra.mxu0 0.0
      %3697 = vmatprep.subr.mxu0 0.0
      %3698 = vmatpush2.msra.mxu0 0.0
      %3699 = vmatprep.subr.mxu0 0.0
      %3700 = vmatpush2.msra.mxu0 0.0
      %3701 = vmatprep.subr.mxu0 0.0
      %3702 = vmatpush2.msra.mxu0 0.0
      %3703 = vmatprep.subr.mxu0 0.0
      %3704 = vmatpush2.msra.mxu0 0.0
      %3705 = vmatprep.subr.mxu0 0.0
      %3706 = vmatpush2.msra.mxu0 0.0
      %3707 = vmatprep.subr.mxu0 0.0
      %3708 = vmatpush2.msra.mxu0 0.0
      %3709 = vmatprep.subr.mxu0 0.0
      %3710 = vmatpush2.msra.mxu0 0.0
      %3711 = vmatprep.subr.mxu0 0.0
      %3712 = vmatpush2.msra.mxu0 0.0
      %3713 = vmatprep.subr.mxu0 0.0
      %3714 = vmatpush2.msra.mxu0 0.0
      %3715 = vmatprep.subr.mxu0 0.0
      %3716 = vmatpush2.msra.mxu0 0.0
      %3717 = vmatprep.subr.mxu0 0.0
      %3718 = vmatpush2.msra.mxu0 0.0
      %3719 = vmatprep.subr.mxu0 0.0
      %3720 = vmatpush2.msra.mxu0 0.0
      %3721 = vmatprep.subr.mxu0 0.0
      %3722 = vmatpush2.msra.mxu0 0.0
      %3723 = vmatprep.mubr.f32.mxu0 0.0
      %3724 = vmatmul.mubr.f32.gmra.mxu0 %v3657
      %v3725 = vpop.f32.mrf.mxu0
      %v3726 = vadd.f32 0.0, %v3725
      %v3727 = vpop.f32.mrf.mxu0
      %3728 = vdwg.mxu0
      %v3729 = vadd.f32 %v3490, %v3726
      %s3730 = scalar_lea.vmem %s14, 1024
      %v3731 = vld [vmem:[%s3730] sm:$0xff]
      %v3732 = vld [vmem:[%s3730 + $0x8] sm:$0xff]
      %v3733 = vld [vmem:[%s3730 + $0x10] sm:$0xff]
      %v3734 = vld [vmem:[%s3730 + $0x18] sm:$0xff]
      %v3735 = vld [vmem:[%s3730 + $0x20] sm:$0xff]
      %v3736 = vld [vmem:[%s3730 + $0x28] sm:$0xff]
      %v3737 = vld [vmem:[%s3730 + $0x30] sm:$0xff]
      %v3738 = vld [vmem:[%s3730 + $0x38] sm:$0xff]
      %v3739 = vld [vmem:[%s3730 + $0x40] sm:$0xff]
      %v3740 = vld [vmem:[%s3730 + $0x48] sm:$0xff]
      %v3741 = vld [vmem:[%s3730 + $0x50] sm:$0xff]
      %v3742 = vld [vmem:[%s3730 + $0x58] sm:$0xff]
      %v3743 = vld [vmem:[%s3730 + $0x60] sm:$0xff]
      %v3744 = vld [vmem:[%s3730 + $0x68] sm:$0xff]
      %v3745 = vld [vmem:[%s3730 + $0x70] sm:$0xff]
      %v3746 = vld [vmem:[%s3730 + $0x78] sm:$0xff]
      %3747 = vmatprep.subr.mxu0 0.0
      %3748 = vmatpush1.msra.mxu0 %v3746
      %3749 = vmatprep.subr.mxu0 0.0
      %3750 = vmatpush1.msra.mxu0 %v3745
      %3751 = vmatprep.subr.mxu0 0.0
      %3752 = vmatpush1.msra.mxu0 %v3744
      %3753 = vmatprep.subr.mxu0 0.0
      %3754 = vmatpush1.msra.mxu0 %v3743
      %3755 = vmatprep.subr.mxu0 0.0
      %3756 = vmatpush1.msra.mxu0 %v3742
      %3757 = vmatprep.subr.mxu0 0.0
      %3758 = vmatpush1.msra.mxu0 %v3741
      %3759 = vmatprep.subr.mxu0 0.0
      %3760 = vmatpush1.msra.mxu0 %v3740
      %3761 = vmatprep.subr.mxu0 0.0
      %3762 = vmatpush1.msra.mxu0 %v3739
      %3763 = vmatprep.subr.mxu0 0.0
      %3764 = vmatpush1.msra.mxu0 %v3738
      %3765 = vmatprep.subr.mxu0 0.0
      %3766 = vmatpush1.msra.mxu0 %v3737
      %3767 = vmatprep.subr.mxu0 0.0
      %3768 = vmatpush1.msra.mxu0 %v3736
      %3769 = vmatprep.subr.mxu0 0.0
      %3770 = vmatpush1.msra.mxu0 %v3735
      %3771 = vmatprep.subr.mxu0 0.0
      %3772 = vmatpush1.msra.mxu0 %v3734
      %3773 = vmatprep.subr.mxu0 0.0
      %3774 = vmatpush1.msra.mxu0 %v3733
      %3775 = vmatprep.subr.mxu0 0.0
      %3776 = vmatpush1.msra.mxu0 %v3732
      %3777 = vmatprep.subr.mxu0 0.0
      %3778 = vmatpush1.msra.mxu0 %v3731
      %3779 = vmatprep.subr.mxu0 0.0
      %3780 = vmatpush2.msra.mxu0 0.0
      %3781 = vmatprep.subr.mxu0 0.0
      %3782 = vmatpush2.msra.mxu0 0.0
      %3783 = vmatprep.subr.mxu0 0.0
      %3784 = vmatpush2.msra.mxu0 0.0
      %3785 = vmatprep.subr.mxu0 0.0
      %3786 = vmatpush2.msra.mxu0 0.0
      %3787 = vmatprep.subr.mxu0 0.0
      %3788 = vmatpush2.msra.mxu0 0.0
      %3789 = vmatprep.subr.mxu0 0.0
      %3790 = vmatpush2.msra.mxu0 0.0
      %3791 = vmatprep.subr.mxu0 0.0
      %3792 = vmatpush2.msra.mxu0 0.0
      %3793 = vmatprep.subr.mxu0 0.0
      %3794 = vmatpush2.msra.mxu0 0.0
      %3795 = vmatprep.subr.mxu0 0.0
      %3796 = vmatpush2.msra.mxu0 0.0
      %3797 = vmatprep.subr.mxu0 0.0
      %3798 = vmatpush2.msra.mxu0 0.0
      %3799 = vmatprep.subr.mxu0 0.0
      %3800 = vmatpush2.msra.mxu0 0.0
      %3801 = vmatprep.subr.mxu0 0.0
      %3802 = vmatpush2.msra.mxu0 0.0
      %3803 = vmatprep.subr.mxu0 0.0
      %3804 = vmatpush2.msra.mxu0 0.0
      %3805 = vmatprep.subr.mxu0 0.0
      %3806 = vmatpush2.msra.mxu0 0.0
      %3807 = vmatprep.subr.mxu0 0.0
      %3808 = vmatpush2.msra.mxu0 0.0
      %3809 = vmatprep.subr.mxu0 0.0
      %3810 = vmatpush2.msra.mxu0 0.0
      %3811 = vmatprep.mubr.f32.mxu0 0.0
      %3812 = vmatmul.mubr.f32.gmra.mxu0 %v1813
      %v3813 = vpop.f32.mrf.mxu0
      %v3814 = vadd.f32 0.0, %v3813
      %v3815 = vpop.f32.mrf.mxu0
      %3816 = vdwg.mxu0
      %s3817 = scalar_lea.vmem %s15, 64
      %v3818 = vld [vmem:[%s3817] sm:$0xff]
      %v3820 = vsel %vm690, %v3818, 0
      %3822 = vmatprep.subr.mxu0 0.0
      %3823 = vmatpush1.msra.mxu0 0.0
      %3824 = vmatprep.subr.mxu0 0.0
      %3825 = vmatpush1.msra.mxu0 0.0
      %3826 = vmatprep.subr.mxu0 0.0
      %3827 = vmatpush1.msra.mxu0 0.0
      %3828 = vmatprep.subr.mxu0 0.0
      %3829 = vmatpush1.msra.mxu0 0.0
      %3830 = vmatprep.subr.mxu0 0.0
      %3831 = vmatpush1.msra.mxu0 0.0
      %3832 = vmatprep.subr.mxu0 0.0
      %3833 = vmatpush1.msra.mxu0 0.0
      %3834 = vmatprep.subr.mxu0 0.0
      %3835 = vmatpush1.msra.mxu0 0.0
      %3836 = vmatprep.subr.mxu0 0.0
      %3837 = vmatpush1.msra.mxu0 0.0
      %3838 = vmatprep.subr.mxu0 0.0
      %3839 = vmatpush1.msra.mxu0 0.0
      %3840 = vmatprep.subr.mxu0 0.0
      %3841 = vmatpush1.msra.mxu0 0.0
      %3842 = vmatprep.subr.mxu0 0.0
      %3843 = vmatpush1.msra.mxu0 0.0
      %3844 = vmatprep.subr.mxu0 0.0
      %3845 = vmatpush1.msra.mxu0 0.0
      %3846 = vmatprep.subr.mxu0 0.0
      %3847 = vmatpush1.msra.mxu0 0.0
      %3848 = vmatprep.subr.mxu0 0.0
      %3849 = vmatpush1.msra.mxu0 0.0
      %3850 = vmatprep.subr.mxu0 0.0
      %3851 = vmatpush1.msra.mxu0 0.0
      %3852 = vmatprep.subr.mxu0 0.0
      %3853 = vmatpush1.msra.mxu0 %v3814
      %3854 = vmatprep.subr.mxu0 0.0
      %3855 = vmatpush2.msra.mxu0 0.0
      %3856 = vmatprep.subr.mxu0 0.0
      %3857 = vmatpush2.msra.mxu0 0.0
      %3858 = vmatprep.subr.mxu0 0.0
      %3859 = vmatpush2.msra.mxu0 0.0
      %3860 = vmatprep.subr.mxu0 0.0
      %3861 = vmatpush2.msra.mxu0 0.0
      %3862 = vmatprep.subr.mxu0 0.0
      %3863 = vmatpush2.msra.mxu0 0.0
      %3864 = vmatprep.subr.mxu0 0.0
      %3865 = vmatpush2.msra.mxu0 0.0
      %3866 = vmatprep.subr.mxu0 0.0
      %3867 = vmatpush2.msra.mxu0 0.0
      %3868 = vmatprep.subr.mxu0 0.0
      %3869 = vmatpush2.msra.mxu0 0.0
      %3870 = vmatprep.subr.mxu0 0.0
      %3871 = vmatpush2.msra.mxu0 0.0
      %3872 = vmatprep.subr.mxu0 0.0
      %3873 = vmatpush2.msra.mxu0 0.0
      %3874 = vmatprep.subr.mxu0 0.0
      %3875 = vmatpush2.msra.mxu0 0.0
      %3876 = vmatprep.subr.mxu0 0.0
      %3877 = vmatpush2.msra.mxu0 0.0
      %3878 = vmatprep.subr.mxu0 0.0
      %3879 = vmatpush2.msra.mxu0 0.0
      %3880 = vmatprep.subr.mxu0 0.0
      %3881 = vmatpush2.msra.mxu0 0.0
      %3882 = vmatprep.subr.mxu0 0.0
      %3883 = vmatpush2.msra.mxu0 0.0
      %3884 = vmatprep.subr.mxu0 0.0
      %3885 = vmatpush2.msra.mxu0 0.0
      %3886 = vmatprep.mubr.f32.mxu0 0.0
      %3887 = vmatmul.mubr.f32.gmra.mxu0 %v3820
      %v3888 = vpop.f32.mrf.mxu0
      %v3889 = vadd.f32 0.0, %v3888
      %v3890 = vpop.f32.mrf.mxu0
      %3891 = vdwg.mxu0
      %v3892 = vadd.f32 %v3653, %v3889
      %s3893 = scalar_lea.vmem %s16, 64
      %v3894 = vld [vmem:[%s3893] sm:$0xff]
      %v3896 = vsel %vm690, %v3894, 0
      %3898 = vmatprep.subr.mxu0 0.0
      %3899 = vmatpush1.msra.mxu0 0.0
      %3900 = vmatprep.subr.mxu0 0.0
      %3901 = vmatpush1.msra.mxu0 0.0
      %3902 = vmatprep.subr.mxu0 0.0
      %3903 = vmatpush1.msra.mxu0 0.0
      %3904 = vmatprep.subr.mxu0 0.0
      %3905 = vmatpush1.msra.mxu0 0.0
      %3906 = vmatprep.subr.mxu0 0.0
      %3907 = vmatpush1.msra.mxu0 0.0
      %3908 = vmatprep.subr.mxu0 0.0
      %3909 = vmatpush1.msra.mxu0 0.0
      %3910 = vmatprep.subr.mxu0 0.0
      %3911 = vmatpush1.msra.mxu0 0.0
      %3912 = vmatprep.subr.mxu0 0.0
      %3913 = vmatpush1.msra.mxu0 0.0
      %3914 = vmatprep.subr.mxu0 0.0
      %3915 = vmatpush1.msra.mxu0 0.0
      %3916 = vmatprep.subr.mxu0 0.0
      %3917 = vmatpush1.msra.mxu0 0.0
      %3918 = vmatprep.subr.mxu0 0.0
      %3919 = vmatpush1.msra.mxu0 0.0
      %3920 = vmatprep.subr.mxu0 0.0
      %3921 = vmatpush1.msra.mxu0 0.0
      %3922 = vmatprep.subr.mxu0 0.0
      %3923 = vmatpush1.msra.mxu0 0.0
      %3924 = vmatprep.subr.mxu0 0.0
      %3925 = vmatpush1.msra.mxu0 0.0
      %3926 = vmatprep.subr.mxu0 0.0
      %3927 = vmatpush1.msra.mxu0 0.0
      %3928 = vmatprep.subr.mxu0 0.0
      %3929 = vmatpush1.msra.mxu0 %v3814
      %3930 = vmatprep.subr.mxu0 0.0
      %3931 = vmatpush2.msra.mxu0 0.0
      %3932 = vmatprep.subr.mxu0 0.0
      %3933 = vmatpush2.msra.mxu0 0.0
      %3934 = vmatprep.subr.mxu0 0.0
      %3935 = vmatpush2.msra.mxu0 0.0
      %3936 = vmatprep.subr.mxu0 0.0
      %3937 = vmatpush2.msra.mxu0 0.0
      %3938 = vmatprep.subr.mxu0 0.0
      %3939 = vmatpush2.msra.mxu0 0.0
      %3940 = vmatprep.subr.mxu0 0.0
      %3941 = vmatpush2.msra.mxu0 0.0
      %3942 = vmatprep.subr.mxu0 0.0
      %3943 = vmatpush2.msra.mxu0 0.0
      %3944 = vmatprep.subr.mxu0 0.0
      %3945 = vmatpush2.msra.mxu0 0.0
      %3946 = vmatprep.subr.mxu0 0.0
      %3947 = vmatpush2.msra.mxu0 0.0
      %3948 = vmatprep.subr.mxu0 0.0
      %3949 = vmatpush2.msra.mxu0 0.0
      %3950 = vmatprep.subr.mxu0 0.0
      %3951 = vmatpush2.msra.mxu0 0.0
      %3952 = vmatprep.subr.mxu0 0.0
      %3953 = vmatpush2.msra.mxu0 0.0
      %3954 = vmatprep.subr.mxu0 0.0
      %3955 = vmatpush2.msra.mxu0 0.0
      %3956 = vmatprep.subr.mxu0 0.0
      %3957 = vmatpush2.msra.mxu0 0.0
      %3958 = vmatprep.subr.mxu0 0.0
      %3959 = vmatpush2.msra.mxu0 0.0
      %3960 = vmatprep.subr.mxu0 0.0
      %3961 = vmatpush2.msra.mxu0 0.0
      %3962 = vmatprep.mubr.f32.mxu0 0.0
      %3963 = vmatmul.mubr.f32.gmra.mxu0 %v3896
      %v3964 = vpop.f32.mrf.mxu0
      %v3965 = vadd.f32 0.0, %v3964
      %v3966 = vpop.f32.mrf.mxu0
      %3967 = vdwg.mxu0
      %v3968 = vadd.f32 %v3729, %v3965
      %v3969 = vld [vmem:[%s17] sm:$0xff]
      %3971 = vset.pattern.permute.xlu0 0
      %3972 = vperm.xlu0 %3971, %v3969
      %v3973 = vpop.permute.xlu0 %3972
      %v3975 = vadd.f32 %v3892, %v3973
      %v3976 = vld [vmem:[%s18] sm:$0xff]
      %3978 = vset.pattern.permute.xlu0 0
      %3979 = vperm.xlu0 %3978, %v3976
      %v3980 = vpop.permute.xlu0 %3979
      %v3982 = vadd.f32 %v3968, %v3980
      %v3983 = vsub.f32 %v1813, %v3975
      %v3984 = vsub.f32 1.837877, %v3982
      %v3985 = vmul.f32 %v3983, %v3983
      %v3986 = vadd.f32 %v3984, %v3985
      %v3987 = vmul.f32 %v3986, -0.5
      %v3988 = vmul.f32 %v3982, -2.0
      %v3989 = vmul.f32 %v3988, 1.442695
      %v3990 = vpow.pop %v3989
      %v3991 = vmul.f32 %v3987, %v3990
      %v3992 = vsel %vm682, %v3991, 0.0
      %3993 = vadd.xlane.f32.xlu0 %v3992
      %v3994 = vpop.xlane.xlu0 %3993
      %v3995 = vrot.slane %v3994, 4
      %v3996 = vadd.f32 %v3994, %v3995
      %v3997 = vrot.slane %v3996, 2
      %v3998 = vadd.f32 %v3996, %v3997
      %v3999 = vrot.slane %v3998, 1
      %v4000 = vadd.f32 %v3998, %v3999
      %s4001 = vtos %v4000
      %4002 = vst [vmem:[%s648] sm:$0xff] %v1813
      %vm4003 = vcmp.eq.s32.totalorder %v681, 0
      %v4004 = vsel %vm4003, 1, 0
      %v4005 = vcvt.s32.f32 %v4004
      %v4006 = vmul.f32 %v1824, %v4005
      %vm4007 = vcmp.eq.s32.totalorder %v681, 1
      %v4008 = vsel %vm4007, 1, 0
      %v4009 = vcvt.s32.f32 %v4008
      %v4010 = vstv %s4001
      %v4011 = vmul.f32 %v4010, %v4009
      %v4012 = vadd.f32 %v4006, %v4011
      %4013 = vst [vmem:[%s652] sm:$0xff] %v4012
      %p4014 = scmp.lt.s32.totalorder %s32, 1
      %s4015 = scalar_select %p4014, %s32, 1
      %s4016 = smul.addr %s4015, 8
      %s4017 = scalar_lea.vmem %s19, %s4016
      %p4018 = scmp.lt.s32.totalorder %s32, 1
      %s4019 = scalar_select %p4018, %s32, 1
      %s4020 = smul.addr %s4019, 8
      %s4021 = scalar_lea.vmem %s20, %s4020
      // Predicated region
      $region97: #{block_forward.1} parent=95 // pred_check
        %p4022 = pneg %p459
      $region98: #{block_forward.1} parent=95 // pred_check_branch
        %4024 = sbr.rel (%p4022) target = $region100
      $region99: #{block_forward.1} parent=95 // pred_region
        _
      $region100: #{block_forward.1} parent=95 // pred_fallthru
        _
      // Predicated region
      $region101: #{block_forward.1} parent=95 // pred_check
        %p4025 = pneg %p485
      $region102: #{block_forward.1} parent=95 // pred_check_branch
        %4027 = sbr.rel (%p4025) target = $region104
      $region103: #{block_forward.1} parent=95 // pred_region
        _
      $region104: #{block_forward.1} parent=95 // pred_fallthru
        _
    $region96: #{block_forward.1} parent=5 // pred_fallthru
      _
    %p4028 = scmp.le.s32.totalorder 2, %s27
    // Predicated region
    $region105: #{block_forward.1} parent=5 // pred_check
      %p4029 = pneg %p4028
    $region106: #{block_forward.1} parent=5 // pred_check_branch
      %4031 = sbr.rel (%p4029) target = $region108
    $region107: #{block_forward.1} parent=5 // pred_region
      %s4032 = ssub.s32 %s27, 2
      // Predicated region
      $region109: #{block_forward.1} parent=107 // pred_check
        %p4033 = pneg %p465
      $region110: #{block_forward.1} parent=107 // pred_check_branch
        %4035 = sbr.rel (%p4033) target = $region112
      $region111: #{block_forward.1} parent=107 // pred_region
        %p4036 = scmp.lt.s32.totalorder %s33, 1
        %s4037 = scalar_select %p4036, %s33, 1
        %s4038 = smul.addr %s4037, 8
        %s4039 = scalar_lea.vmem %s19, %s4038
      $region112: #{block_forward.1} parent=107 // pred_fallthru
        _
      // Predicated region
      $region113: #{block_forward.1} parent=107 // pred_check
        %p4040 = pneg %p491
      $region114: #{block_forward.1} parent=107 // pred_check_branch
        %4042 = sbr.rel (%p4040) target = $region116
      $region115: #{block_forward.1} parent=107 // pred_region
        %p4043 = scmp.lt.s32.totalorder %s33, 1
        %s4044 = scalar_select %p4043, %s33, 1
        %s4045 = smul.addr %s4044, 8
        %s4046 = scalar_lea.vmem %s20, %s4045
      $region116: #{block_forward.1} parent=107 // pred_fallthru
        _
    $region108: #{block_forward.1} parent=5 // pred_fallthru
      _
  $region6: #{block_forward.1} parent=0 // loop_footer
    %s31 = sadd.s32 1, %s27
  $region7: #{block_forward.1} parent=0 // loop_footer_branch
    %26 = sbr.rel target = $region3
  $region8: #{block_forward.1} parent=0 // loop_exit
    _

</llo_original>
